<compile_context>
chip_gen: v5e
topology: v5e:2x2
jax: 0.10.0
libtpu: 0.0.40
codegen_flags: <defaults>
</compile_context>

<pallas_src>
import functools

import numpy as np
import jax
import jax.numpy as jnp
from jax import lax
from jax.experimental import pallas as pl
from jax.experimental.pallas import tpu as pltpu


_OFF3 = tuple((dh, dw) for dh in (-1, 0, 1) for dw in (-1, 0, 1))
_OFF4 = tuple((dh, dw) for dh in (-1, 0, 1, 2) for dw in (-1, 0, 1, 2))
# phase index (0: even output row/col, 1: odd) -> {coarse input offset: kernel index}
_KYKX_MAP = ({-1: 3, 0: 1}, {0: 2, 1: 0})

_LAYER_ORDER = ("e1", "e2a", "e2b", "e3", "e4a", "e4b", "e5",
                "d1", "d2a", "d2b", "d3", "d4a", "d4b", "d5")


def _mask_row(dh, dw):
    return (dh + 1) * 4 + (dw + 1)


# ----------------------------- in-kernel helpers ---------------------------- #

def _roll_cols(x, delta):
    """out[:, m] = x[:, (m + delta) % M].

    Uses a single XLU lane rotation (pltpu.roll) when the pixel axis is a
    multiple of 128 lanes; otherwise falls back to a (tiny) concat shift.
    Cross-row / cross-image wraps are zeroed by the per-tap masks (conv slabs)
    or provably land on zero phase positions (transposed-conv placement).
    """
    m = x.shape[1]
    s = (-delta) % m              # jnp.roll-style shift, always non-negative
    if s == 0:
        return x
    if m % 128 == 0:
        return pltpu.roll(x, s, axis=1)
    return jnp.concatenate([x[:, m - s:], x[:, :m - s]], axis=1)


def _build_slab(x, m_ref, img_w, offsets):
    """im2col slab (T*Cin, M) f32: row block t = mask_t * roll(x, tap_t)."""
    pieces = []
    for (dh, dw) in offsets:
        if dh == 0 and dw == 0:
            xt = x
        else:
            xt = _roll_cols(x, dh * img_w + dw)
            xt = xt * m_ref[pl.ds(_mask_row(dh, dw), 1), :]      # (1, M) mask
        pieces.append(xt)
    return jnp.concatenate(pieces, axis=0)


def _conv_mm(w_ref, meta, slab):
    """One MXU matmul per conv: (Cout_pad, K) bf16 @ (K, M) bf16 -> f32."""
    w = w_ref[pl.ds(meta["wo"], meta["wrp"]), pl.ds(0, meta["wk"])]
    y = jnp.dot(w, slab.astype(jnp.bfloat16),
                preferred_element_type=jnp.float32)
    return y[:meta["wr"], :]


def _bias(b_ref, meta):
    return b_ref[pl.ds(meta["bo"], meta["bc"]), :]


def _down_block(x, w_ref, b_ref, m_ref, sel_ref, img_w, meta):
    """ConvBlock: Conv(k=4, s=2, p=1) + folded BN + ReLU.

    Virtual stride-1 conv on the fine grid (one matmul), then subsample with a
    constant 0/1 selection matrix (one matmul).
    """
    slab = _build_slab(x, m_ref, img_w, _OFF4)                     # (16*Cin, Mf)
    v = _conv_mm(w_ref, meta, slab)                                # (Cout, Mf) f32
    y = jnp.dot(v.astype(jnp.bfloat16), sel_ref[...],
                preferred_element_type=jnp.float32)                # (Cout, Mc) f32
    return jnp.maximum(y + _bias(b_ref, meta), 0.0)


def _res_block(x, w_ref, b_ref, m_ref, img_w, meta1, meta2):
    """ResidualBlock: ReLU(x + BN(conv3x3(ReLU(BN(conv3x3(x))))))."""
    h = jnp.maximum(
        _conv_mm(w_ref, meta1, _build_slab(x, m_ref, img_w, _OFF3))
        + _bias(b_ref, meta1), 0.0)
    y = _conv_mm(w_ref, meta2, _build_slab(h, m_ref, img_w, _OFF3)) \
        + _bias(b_ref, meta2) + x
    return jnp.maximum(y, 0.0)


def _up_block(x, w_ref, b_ref, m_ref, up_ref, img_wc, img_wf, meta):
    """ConvTBlock: ConvTranspose(k=4, s=2, p=1) + folded BN + ReLU via
    sub-pixel (phase) decomposition.  One tap matmul produces all 4 phases,
    one matmul scatters them to the fine grid, phases are rolled and added."""
    cpad = meta["bc"]
    slab = _build_slab(x, m_ref, img_wc, _OFF3)                    # (9*Cin, Mc)
    yp = _conv_mm(w_ref, meta, slab)                               # (4*cpad, Mc)
    placed = jnp.dot(yp.astype(jnp.bfloat16), up_ref[...],
                     preferred_element_type=jnp.float32)           # (4*cpad, Mf)
    # Phase p = 2*pr + pc lands at fine pixel (2r+pr, 2c+pc).  The wrapped
    # columns of each roll provably come from odd-row/odd-col (i.e. zero)
    # positions of `placed`, so no mask is needed.
    acc = placed[0:cpad, :]
    acc = acc + _roll_cols(placed[cpad:2 * cpad, :], -1)
    acc = acc + _roll_cols(placed[2 * cpad:3 * cpad, :], -img_wf)
    acc = acc + _roll_cols(placed[3 * cpad:4 * cpad, :], -(img_wf + 1))
    return jnp.maximum(acc + _bias(b_ref, meta), 0.0)              # (cpad, Mf)


# --------------------------------- kernel ----------------------------------- #

def _enhancer_kernel(x_ref,
                     m0_ref, m1_ref, m2_ref, m3_ref,
                     sel01_ref, sel12_ref, sel23_ref,
                     up32_ref, up21_ref, up10_ref,
                     w_ref, b_ref,
                     out_ref, *, widths, meta):
    w0, w1, w2, w3 = widths
    x = x_ref[...]                                                 # (8, H*W) f32

    # ---- Encoder ----
    s1 = _down_block(x, w_ref, b_ref, m0_ref, sel01_ref, w0, meta["e1"])
    s2 = _res_block(s1, w_ref, b_ref, m1_ref, w1, meta["e2a"], meta["e2b"])
    s3 = _down_block(s2, w_ref, b_ref, m1_ref, sel12_ref, w1, meta["e3"])
    s4 = _res_block(s3, w_ref, b_ref, m2_ref, w2, meta["e4a"], meta["e4b"])
    z = _down_block(s4, w_ref, b_ref, m2_ref, sel23_ref, w2, meta["e5"])

    # ---- Decoder (skip adds fused in-kernel) ----
    z = _up_block(z, w_ref, b_ref, m3_ref, up32_ref, w3, w2, meta["d1"])
    z = _res_block(z + s4, w_ref, b_ref, m2_ref, w2, meta["d2a"], meta["d2b"])
    z = _up_block(z + s3, w_ref, b_ref, m2_ref, up21_ref, w2, w1, meta["d3"])
    z = _res_block(z + s2, w_ref, b_ref, m1_ref, w1, meta["d4a"], meta["d4b"])
    z = _up_block(z + s1, w_ref, b_ref, m1_ref, up10_ref, w1, w0, meta["d5"])

    out_ref[...] = z                                               # (8, H*W)


# --------------------------- host-side constants ---------------------------- #

def _build_masks(H, W):
    """(16, H*W) per-image validity masks for tap offsets dh, dw in {-1,0,1,2}."""
    m = np.arange(H * W)
    h = m // W
    w = m % W
    rows = []
    for dh in (-1, 0, 1, 2):
        for dw in (-1, 0, 1, 2):
            ok = (h + dh >= 0) & (h + dh < H) & (w + dw >= 0) & (w + dw < W)
            rows.append(ok.astype(np.float32))
    return jnp.asarray(np.stack(rows, axis=0))


def _build_sel_up(Hf, Wf):
    """sel (Mf, Mc): pick fine pixel (2r, 2c) for coarse (r, c); up = sel.T.
    TODO(synk): replace the dense 0/1 sel/up matrices with a phase-decomposed
    layout / strided gather before scaling B, H, W (they grow O(M_fine*M_coarse))."""
    Hc, Wc = Hf // 2, Wf // 2
    sel = np.zeros((Hf * Wf, Hc * Wc), np.float32)
    for r in range(Hc):
        for c in range(Wc):
            sel[2 * r * Wf + 2 * c, r * Wc + c] = 1.0
    return (jnp.asarray(sel, dtype=jnp.bfloat16),
            jnp.asarray(np.ascontiguousarray(sel.T), dtype=jnp.bfloat16))


# ------------------------- deterministic parameters ------------------------- #

def _fold_bn(key, out_c, bias):
    kg, kb = jax.random.split(key)
    gamma = 1.0 + 0.1 * jax.random.normal(kg, (out_c,), jnp.float32)
    beta = 0.1 * jax.random.normal(kb, (out_c,), jnp.float32)
    eps = 1e-5
    scale = gamma / jnp.sqrt(1.0 + eps)
    shift = beta + bias * scale
    return scale, shift


def _init_conv_raw(key, in_c, out_c, k):
    kw, kb, kbn = jax.random.split(key, 3)
    std = float(np.sqrt(2.0 / (in_c * k * k)))
    w = std * jax.random.normal(kw, (out_c, in_c, k, k), jnp.float32)   # Conv2d layout
    bias = 0.05 * jax.random.normal(kb, (out_c,), jnp.float32)
    scale, shift = _fold_bn(kbn, out_c, bias)
    return {"w": w, "scale": scale, "shift": shift}


def _init_convT_raw(key, in_c, out_c, k):
    kw, kb, kbn = jax.random.split(key, 3)
    std = float(np.sqrt(2.0 / (in_c * k * k)))
    w = std * jax.random.normal(kw, (in_c, out_c, k, k), jnp.float32)   # ConvTranspose2d layout
    bias = 0.05 * jax.random.normal(kb, (out_c,), jnp.float32)
    scale, shift = _fold_bn(kbn, out_c, bias)
    return {"w": w, "scale": scale, "shift": shift}


def _init_res_raw(key, c):
    k1, k2 = jax.random.split(key)
    return {"c1": _init_conv_raw(k1, c, c, 3), "c2": _init_conv_raw(k2, c, c, 3)}


def init_enhancer_raw(key, in_c, out_c, nf, k):
    ks = jax.random.split(key, 10)
    return {
        "e1": _init_conv_raw(ks[0], in_c, nf, k),
        "e2": _init_res_raw(ks[1], nf),
        "e3": _init_conv_raw(ks[2], nf, nf * 2, k),
        "e4": _init_res_raw(ks[3], nf * 2),
        "e5": _init_conv_raw(ks[4], nf * 2, nf * 4, k),
        "d1": _init_convT_raw(ks[5], nf * 4, nf * 2, k),
        "d2": _init_res_raw(ks[6], nf * 2),
        "d3": _init_convT_raw(ks[7], nf * 2, nf, k),
        "d4": _init_res_raw(ks[8], nf),
        "d5": _init_convT_raw(ks[9], nf, out_c, k),
    }


# -------------------------- packing (kernel layout) -------------------------- #

def _conv_mat(raw, k, cin_pad):
    """-> ((out_c, k*k*cin_pad) BN-scaled tap-major weight matrix, (out_c,1) shift)."""
    w, scale = np.asarray(raw["w"]), np.asarray(raw["scale"])
    out_c, in_c = w.shape[0], w.shape[1]
    mat = np.zeros((out_c, k * k * cin_pad), np.float32)
    t = 0
    for kh in range(k):
        for kw in range(k):
            mat[:, t * cin_pad:t * cin_pad + in_c] = w[:, :, kh, kw] * scale[:, None]
            t += 1
    return mat, np.asarray(raw["shift"]).reshape(out_c, 1).astype(np.float32)


def _convT_mat(raw):
    """Sub-pixel decomposition of ConvTranspose(k=4, s=2, p=1).
    -> ((4*cpad, 9*in_c) BN-scaled tap-major matrix, (cpad,1) shift);
    cpad = out_c rounded up to 8 so each phase block is sublane-aligned."""
    wt = np.asarray(raw["w"])                     # (in_c, out_c, 4, 4)
    scale = np.asarray(raw["scale"])
    shift = np.asarray(raw["shift"])
    in_c, out_c = wt.shape[0], wt.shape[1]
    cpad = ((out_c + 7) // 8) * 8
    mat = np.zeros((4 * cpad, 9 * in_c), np.float32)
    for t, (dy, dx) in enumerate(_OFF3):
        for pr in range(2):
            ky = _KYKX_MAP[pr].get(dy)
            if ky is None:
                continue
            for pc in range(2):
                kx = _KYKX_MAP[pc].get(dx)
                if kx is None:
                    continue
                p = 2 * pr + pc
                blk = wt[:, :, ky, kx].T * scale[:, None]         # (out_c, in_c)
                mat[p * cpad:p * cpad + out_c, t * in_c:(t + 1) * in_c] = blk
    b = np.zeros((cpad, 1), np.float32)
    b[:out_c, 0] = shift
    return mat, b


def pack_enhancer(raw, H, W, nf):
    assert H % 8 == 0 and W % 8 == 0, "H and W must be divisible by 8"
    cin0 = 8                                      # input channels padded to a sublane tile
    mats = {
        "e1":  _conv_mat(raw["e1"], 4, cin0),
        "e2a": _conv_mat(raw["e2"]["c1"], 3, nf),
        "e2b": _conv_mat(raw["e2"]["c2"], 3, nf),
        "e3":  _conv_mat(raw["e3"], 4, nf),
        "e4a": _conv_mat(raw["e4"]["c1"], 3, 2 * nf),
        "e4b": _conv_mat(raw["e4"]["c2"], 3, 2 * nf),
        "e5":  _conv_mat(raw["e5"], 4, 2 * nf),
        "d1":  _convT_mat(raw["d1"]),
        "d2a": _conv_mat(raw["d2"]["c1"], 3, 2 * nf),
        "d2b": _conv_mat(raw["d2"]["c2"], 3, 2 * nf),
        "d3":  _convT_mat(raw["d3"]),
        "d4a": _conv_mat(raw["d4"]["c1"], 3, nf),
        "d4b": _conv_mat(raw["d4"]["c2"], 3, nf),
        "d5":  _convT_mat(raw["d5"]),
    }

    # Pack every weight matrix into one bf16 slab (rows padded to a multiple of
    # 16 -> all static in-kernel slices are bf16 tile aligned) and every bias
    # into one f32 column.  Cuts ~30 tiny HBM->VMEM DMAs to 2.
    kmax = max(m.shape[1] for m, _ in mats.values())
    w_rows, b_rows, meta = [], [], {}
    ro = bo = 0
    for name in _LAYER_ORDER:
        m, b = mats[name]
        rows, k = m.shape
        rows_pad = ((rows + 15) // 16) * 16
        blk = np.zeros((rows_pad, kmax), np.float32)
        blk[:rows, :k] = m
        w_rows.append(blk)
        b_rows.append(b)
        meta[name] = dict(wo=ro, wrp=rows_pad, wr=rows, wk=k,
                          bo=bo, bc=b.shape[0])
        ro += rows_pad
        bo += b.shape[0]

    arrays = {
        "w": jnp.asarray(np.concatenate(w_rows, axis=0), dtype=jnp.bfloat16),
        "b": jnp.asarray(np.concatenate(b_rows, axis=0)),
        "masks": [_build_masks(H >> l, W >> l) for l in range(4)],
    }
    sels, ups = [], []
    for l in range(3):
        s, u = _build_sel_up(H >> l, W >> l)
        sels.append(s)
        ups.append(u)
    arrays["sels"] = sels            # [0]: level0->1, [1]: 1->2, [2]: 2->3
    arrays["ups"] = ups              # [0]: scatter 1->0, [1]: 2->1, [2]: 3->2
    return arrays, meta


# ------------------------------ pallas wrapper ------------------------------ #

def enhancer_forward_pallas(x_nchw, arrays, meta, H, W, out_c):
    B, in_c = x_nchw.shape[0], x_nchw.shape[1]
    cin0 = 8
    Mi = H * W
    cpad_out = meta["d5"]["bc"]

    xp = jnp.pad(x_nchw, ((0, 0), (0, cin0 - in_c), (0, 0), (0, 0)))
    x2 = jnp.transpose(xp, (1, 0, 2, 3)).reshape(cin0, B * Mi)     # lane-dense (C, B*H*W)

    kernel = functools.partial(
        _enhancer_kernel,
        widths=(W, W // 2, W // 4, W // 8),
        meta=meta)

    def _const(arr):
        # Resident across the batch grid: same block index for every step.
        return pl.BlockSpec(arr.shape, lambda b: (0, 0))

    masks, sels, ups = arrays["masks"], arrays["sels"], arrays["ups"]
    operands = [x2,
                masks[0], masks[1], masks[2], masks[3],
                sels[0], sels[1], sels[2],
                ups[2], ups[1], ups[0],
                arrays["w"], arrays["b"]]
    in_specs = ([pl.BlockSpec((cin0, Mi), lambda b: (0, b))]
                + [_const(a) for a in operands[1:]])

    out = pl.pallas_call(
        kernel,
        grid=(B,),
        in_specs=in_specs,
        out_specs=pl.BlockSpec((cpad_out, Mi), lambda b: (0, b)),
        out_shape=jax.ShapeDtypeStruct((cpad_out, B * Mi), jnp.float32),
        compiler_params=pltpu.CompilerParams(
            dimension_semantics=("parallel",)),
    )(*operands)

    out = jnp.transpose(out.reshape(cpad_out, B, H, W), (1, 0, 2, 3))
    return out[:, :out_c]                                          # channel slice in wrapper


# ----------------------- pure-XLA reference (for checks) -------------------- #

def _ref_conv(x, w, stride, pad):
    return lax.conv_general_dilated(
        x, w, (stride, stride), ((pad, pad), (pad, pad)),
        dimension_numbers=("NCHW", "OIHW", "NCHW"),
        precision=lax.Precision.HIGHEST)


def _ref_bn_relu(y, scale, shift):
    return jnp.maximum(y * scale[None, :, None, None] + shift[None, :, None, None], 0.0)


def _ref_conv_block(x, p, stride, pad):
    return _ref_bn_relu(_ref_conv(x, p["w"], stride, pad), p["scale"], p["shift"])


def _ref_convT_block(x, p, k, stride, pad):
    w_eq = jnp.transpose(jnp.flip(p["w"], (2, 3)), (1, 0, 2, 3))       # (out_c, in_c, k, k)
    y = lax.conv_general_dilated(
        x, w_eq, (1, 1), ((k - 1 - pad,) * 2, (k - 1 - pad,) * 2),
        lhs_dilation=(stride, stride),
        dimension_numbers=("NCHW", "OIHW", "NCHW"),
        precision=lax.Precision.HIGHEST)
    return _ref_bn_relu(y, p["scale"], p["shift"])


def _ref_res_block(x, p):
    h = _ref_conv_block(x, p["c1"], 1, 1)
    y = _ref_conv(h, p["c2"]["w"], 1, 1)
    y = y * p["c2"]["scale"][None, :, None, None] \
        + p["c2"]["shift"][None, :, None, None] + x
    return jnp.maximum(y, 0.0)


def enhancer_forward_reference(x, raw, k, stride, pad):
    s1 = _ref_conv_block(x, raw["e1"], stride, pad)
    s2 = _ref_res_block(s1, raw["e2"])
    s3 = _ref_conv_block(s2, raw["e3"], stride, pad)
    s4 = _ref_res_block(s3, raw["e4"])
    z = _ref_conv_block(s4, raw["e5"], stride, pad)
    z = _ref_convT_block(z, raw["d1"], k, stride, pad)
    z = _ref_res_block(z + s4, raw["d2"])
    z = _ref_convT_block(z + s3, raw["d3"], k, stride, pad)
    z = _ref_res_block(z + s2, raw["d4"])
    z = _ref_convT_block(z + s1, raw["d5"], k, stride, pad)
    return z


# ---------------------------------- main ------------------------------------ #

if __name__ == "__main__":
    IN_C, OUT_C, NF = 3, 3, 8
    K, S, P = 4, 2, 1          # kernel_size, stride, padding
    B, H, W = 2, 16, 16

    root = jax.random.PRNGKey(0)
    kparam, kx = jax.random.split(root)
    raw = init_enhancer_raw(kparam, IN_C, OUT_C, NF, K)
    x = jax.random.normal(kx, (B, IN_C, H, W), jnp.float32)

    arrays, meta = pack_enhancer(raw, H, W, NF)
    fwd = jax.jit(lambda xx: enhancer_forward_pallas(xx, arrays, meta, H, W, OUT_C))
    out = fwd(x)
    jax.block_until_ready(out)

    assert out.shape == (B, OUT_C, H, W), out.shape
    assert bool(jnp.all(jnp.isfinite(out)))

    # Cross-check the fused bf16-MXU Pallas kernel against a plain-XLA f32
    # reference of the same module.  Structural bugs give O(1) errors; the
    # tolerance absorbs bf16 operand rounding over the 14 fused conv matmuls.
    ref = jax.jit(lambda xx: enhancer_forward_reference(xx, raw, K, S, P))(x)
    err = float(jnp.max(jnp.abs(out - ref)))
    rng = float(jnp.max(jnp.abs(ref)))
    assert err <= 5e-2 * rng + 2e-2, ("numerical mismatch vs reference", err, rng)

    print("KERNEL_OK")
</pallas_src>

<mosaic_0001>
module attributes {stable_mosaic.version = 11 : i64} {
  func.func @_enhancer_kernel(%arg0: i32, %arg1: memref<8x256xf32, #tpu.memory_space<vmem>>, %arg2: memref<16x256xf32, #tpu.memory_space<vmem>>, %arg3: memref<16x64xf32, #tpu.memory_space<vmem>>, %arg4: memref<16x16xf32, #tpu.memory_space<vmem>>, %arg5: memref<16x4xf32, #tpu.memory_space<vmem>>, %arg6: memref<256x64xbf16, #tpu.memory_space<vmem>>, %arg7: memref<64x16xbf16, #tpu.memory_space<vmem>>, %arg8: memref<16x4xbf16, #tpu.memory_space<vmem>>, %arg9: memref<4x16xbf16, #tpu.memory_space<vmem>>, %arg10: memref<16x64xbf16, #tpu.memory_space<vmem>>, %arg11: memref<64x256xbf16, #tpu.memory_space<vmem>>, %arg12: memref<320x288xbf16, #tpu.memory_space<vmem>>, %arg13: memref<184x1xf32, #tpu.memory_space<vmem>>, %arg14: memref<8x256xf32, #tpu.memory_space<vmem>>) attributes {dimension_semantics = [#tpu.dimension_semantics<parallel>], iteration_bounds = array<i64: 2>, scalar_prefetch = 0 : i64, scratch_operands = 0 : i64, tpu.core_type = #tpu.core_type<tc>, window_params = [{transform_indices = @transform_0, window_bounds = array<i64: 8, 256>}, {pipeline_mode = #tpu.pipeline_mode<synchronous>, transform_indices = @transform_1, window_bounds = array<i64: 16, 256>}, {pipeline_mode = #tpu.pipeline_mode<synchronous>, transform_indices = @transform_2, window_bounds = array<i64: 16, 64>}, {pipeline_mode = #tpu.pipeline_mode<synchronous>, transform_indices = @transform_3, window_bounds = array<i64: 16, 16>}, {pipeline_mode = #tpu.pipeline_mode<synchronous>, transform_indices = @transform_4, window_bounds = array<i64: 16, 4>}, {pipeline_mode = #tpu.pipeline_mode<synchronous>, transform_indices = @transform_5, window_bounds = array<i64: 256, 64>}, {pipeline_mode = #tpu.pipeline_mode<synchronous>, transform_indices = @transform_6, window_bounds = array<i64: 64, 16>}, {pipeline_mode = #tpu.pipeline_mode<synchronous>, transform_indices = @transform_7, window_bounds = array<i64: 16, 4>}, {pipeline_mode = #tpu.pipeline_mode<synchronous>, transform_indices = @transform_8, window_bounds = array<i64: 4, 16>}, {pipeline_mode = #tpu.pipeline_mode<synchronous>, transform_indices = @transform_9, window_bounds = array<i64: 16, 64>}, {pipeline_mode = #tpu.pipeline_mode<synchronous>, transform_indices = @transform_10, window_bounds = array<i64: 64, 256>}, {pipeline_mode = #tpu.pipeline_mode<synchronous>, transform_indices = @transform_11, window_bounds = array<i64: 320, 288>}, {pipeline_mode = #tpu.pipeline_mode<synchronous>, transform_indices = @transform_12, window_bounds = array<i64: 184, 1>}, {transform_indices = @transform_13, window_bounds = array<i64: 8, 256>}]} {
    %c0 = arith.constant 0 : index
    %c0_0 = arith.constant 0 : index
    %0 = vector.load %arg1[%c0, %c0_0] : memref<8x256xf32, #tpu.memory_space<vmem>>, vector<8x256xf32>
    %c17_i32 = arith.constant 17 : i32
    %1 = tpu.dynamic_rotate %0 by %c17_i32 dim 1 : vector<8x256xf32>, i32 -> vector<8x256xf32>
    %c0_1 = arith.constant 0 : index
    %c0_2 = arith.constant 0 : index
    %2 = vector.load %arg2[%c0_1, %c0_2] : memref<16x256xf32, #tpu.memory_space<vmem>>, vector<1x256xf32>
    %3 = vector.broadcast %2 : vector<1x256xf32> to vector<8x256xf32>
    %4 = arith.mulf %1, %3 : vector<8x256xf32>
    %c16_i32 = arith.constant 16 : i32
    %5 = tpu.dynamic_rotate %0 by %c16_i32 dim 1 : vector<8x256xf32>, i32 -> vector<8x256xf32>
    %c1 = arith.constant 1 : index
    %c0_3 = arith.constant 0 : index
    %6 = vector.load %arg2[%c1, %c0_3] : memref<16x256xf32, #tpu.memory_space<vmem>>, vector<1x256xf32>
    %7 = vector.broadcast %6 : vector<1x256xf32> to vector<8x256xf32>
    %8 = arith.mulf %5, %7 : vector<8x256xf32>
    %c15_i32 = arith.constant 15 : i32
    %9 = tpu.dynamic_rotate %0 by %c15_i32 dim 1 : vector<8x256xf32>, i32 -> vector<8x256xf32>
    %c2 = arith.constant 2 : index
    %c0_4 = arith.constant 0 : index
    %10 = vector.load %arg2[%c2, %c0_4] : memref<16x256xf32, #tpu.memory_space<vmem>>, vector<1x256xf32>
    %11 = vector.broadcast %10 : vector<1x256xf32> to vector<8x256xf32>
    %12 = arith.mulf %9, %11 : vector<8x256xf32>
    %c14_i32 = arith.constant 14 : i32
    %13 = tpu.dynamic_rotate %0 by %c14_i32 dim 1 : vector<8x256xf32>, i32 -> vector<8x256xf32>
    %c3 = arith.constant 3 : index
    %c0_5 = arith.constant 0 : index
    %14 = vector.load %arg2[%c3, %c0_5] : memref<16x256xf32, #tpu.memory_space<vmem>>, vector<1x256xf32>
    %15 = vector.broadcast %14 : vector<1x256xf32> to vector<8x256xf32>
    %16 = arith.mulf %13, %15 : vector<8x256xf32>
    %c1_i32 = arith.constant 1 : i32
    %17 = tpu.dynamic_rotate %0 by %c1_i32 dim 1 : vector<8x256xf32>, i32 -> vector<8x256xf32>
    %c4 = arith.constant 4 : index
    %c0_6 = arith.constant 0 : index
    %18 = vector.load %arg2[%c4, %c0_6] : memref<16x256xf32, #tpu.memory_space<vmem>>, vector<1x256xf32>
    %19 = vector.broadcast %18 : vector<1x256xf32> to vector<8x256xf32>
    %20 = arith.mulf %17, %19 : vector<8x256xf32>
    %c255_i32 = arith.constant 255 : i32
    %21 = tpu.dynamic_rotate %0 by %c255_i32 dim 1 : vector<8x256xf32>, i32 -> vector<8x256xf32>
    %c6 = arith.constant 6 : index
    %c0_7 = arith.constant 0 : index
    %22 = vector.load %arg2[%c6, %c0_7] : memref<16x256xf32, #tpu.memory_space<vmem>>, vector<1x256xf32>
    %23 = vector.broadcast %22 : vector<1x256xf32> to vector<8x256xf32>
    %24 = arith.mulf %21, %23 : vector<8x256xf32>
    %c254_i32 = arith.constant 254 : i32
    %25 = tpu.dynamic_rotate %0 by %c254_i32 dim 1 : vector<8x256xf32>, i32 -> vector<8x256xf32>
    %c7 = arith.constant 7 : index
    %c0_8 = arith.constant 0 : index
    %26 = vector.load %arg2[%c7, %c0_8] : memref<16x256xf32, #tpu.memory_space<vmem>>, vector<1x256xf32>
    %27 = vector.broadcast %26 : vector<1x256xf32> to vector<8x256xf32>
    %28 = arith.mulf %25, %27 : vector<8x256xf32>
    %c241_i32 = arith.constant 241 : i32
    %29 = tpu.dynamic_rotate %0 by %c241_i32 dim 1 : vector<8x256xf32>, i32 -> vector<8x256xf32>
    %c8 = arith.constant 8 : index
    %c0_9 = arith.constant 0 : index
    %30 = vector.load %arg2[%c8, %c0_9] : memref<16x256xf32, #tpu.memory_space<vmem>>, vector<1x256xf32>
    %31 = vector.broadcast %30 : vector<1x256xf32> to vector<8x256xf32>
    %32 = arith.mulf %29, %31 : vector<8x256xf32>
    %c240_i32 = arith.constant 240 : i32
    %33 = tpu.dynamic_rotate %0 by %c240_i32 dim 1 : vector<8x256xf32>, i32 -> vector<8x256xf32>
    %c9 = arith.constant 9 : index
    %c0_10 = arith.constant 0 : index
    %34 = vector.load %arg2[%c9, %c0_10] : memref<16x256xf32, #tpu.memory_space<vmem>>, vector<1x256xf32>
    %35 = vector.broadcast %34 : vector<1x256xf32> to vector<8x256xf32>
    %36 = arith.mulf %33, %35 : vector<8x256xf32>
    %c239_i32 = arith.constant 239 : i32
    %37 = tpu.dynamic_rotate %0 by %c239_i32 dim 1 : vector<8x256xf32>, i32 -> vector<8x256xf32>
    %c10 = arith.constant 10 : index
    %c0_11 = arith.constant 0 : index
    %38 = vector.load %arg2[%c10, %c0_11] : memref<16x256xf32, #tpu.memory_space<vmem>>, vector<1x256xf32>
    %39 = vector.broadcast %38 : vector<1x256xf32> to vector<8x256xf32>
    %40 = arith.mulf %37, %39 : vector<8x256xf32>
    %c238_i32 = arith.constant 238 : i32
    %41 = tpu.dynamic_rotate %0 by %c238_i32 dim 1 : vector<8x256xf32>, i32 -> vector<8x256xf32>
    %c11 = arith.constant 11 : index
    %c0_12 = arith.constant 0 : index
    %42 = vector.load %arg2[%c11, %c0_12] : memref<16x256xf32, #tpu.memory_space<vmem>>, vector<1x256xf32>
    %43 = vector.broadcast %42 : vector<1x256xf32> to vector<8x256xf32>
    %44 = arith.mulf %41, %43 : vector<8x256xf32>
    %c225_i32 = arith.constant 225 : i32
    %45 = tpu.dynamic_rotate %0 by %c225_i32 dim 1 : vector<8x256xf32>, i32 -> vector<8x256xf32>
    %c12 = arith.constant 12 : index
    %c0_13 = arith.constant 0 : index
    %46 = vector.load %arg2[%c12, %c0_13] : memref<16x256xf32, #tpu.memory_space<vmem>>, vector<1x256xf32>
    %47 = vector.broadcast %46 : vector<1x256xf32> to vector<8x256xf32>
    %48 = arith.mulf %45, %47 : vector<8x256xf32>
    %c224_i32 = arith.constant 224 : i32
    %49 = tpu.dynamic_rotate %0 by %c224_i32 dim 1 : vector<8x256xf32>, i32 -> vector<8x256xf32>
    %c13 = arith.constant 13 : index
    %c0_14 = arith.constant 0 : index
    %50 = vector.load %arg2[%c13, %c0_14] : memref<16x256xf32, #tpu.memory_space<vmem>>, vector<1x256xf32>
    %51 = vector.broadcast %50 : vector<1x256xf32> to vector<8x256xf32>
    %52 = arith.mulf %49, %51 : vector<8x256xf32>
    %c223_i32 = arith.constant 223 : i32
    %53 = tpu.dynamic_rotate %0 by %c223_i32 dim 1 : vector<8x256xf32>, i32 -> vector<8x256xf32>
    %c14 = arith.constant 14 : index
    %c0_15 = arith.constant 0 : index
    %54 = vector.load %arg2[%c14, %c0_15] : memref<16x256xf32, #tpu.memory_space<vmem>>, vector<1x256xf32>
    %55 = vector.broadcast %54 : vector<1x256xf32> to vector<8x256xf32>
    %56 = arith.mulf %53, %55 : vector<8x256xf32>
    %c222_i32 = arith.constant 222 : i32
    %57 = tpu.dynamic_rotate %0 by %c222_i32 dim 1 : vector<8x256xf32>, i32 -> vector<8x256xf32>
    %c15 = arith.constant 15 : index
    %c0_16 = arith.constant 0 : index
    %58 = vector.load %arg2[%c15, %c0_16] : memref<16x256xf32, #tpu.memory_space<vmem>>, vector<1x256xf32>
    %59 = vector.broadcast %58 : vector<1x256xf32> to vector<8x256xf32>
    %60 = arith.mulf %57, %59 : vector<8x256xf32>
    %61 = tpu.concatenate %4, %8, %12, %16, %20, %0, %24, %28, %32, %36, %40, %44, %48, %52, %56, %60 in 0 : vector<8x256xf32>, vector<8x256xf32>, vector<8x256xf32>, vector<8x256xf32>, vector<8x256xf32>, vector<8x256xf32>, vector<8x256xf32>, vector<8x256xf32>, vector<8x256xf32>, vector<8x256xf32>, vector<8x256xf32>, vector<8x256xf32>, vector<8x256xf32>, vector<8x256xf32>, vector<8x256xf32>, vector<8x256xf32> -> vector<128x256xf32>
    %c0_17 = arith.constant 0 : index
    %c0_18 = arith.constant 0 : index
    %62 = vector.load %arg12[%c0_17, %c0_18] : memref<320x288xbf16, #tpu.memory_space<vmem>>, vector<16x128xbf16>
    %63 = arith.truncf %61 : vector<128x256xf32> to vector<128x256xbf16>
    %cst = arith.constant dense<0.000000e+00> : vector<16x256xf32>
    %64 = tpu.matmul %62, %63, %cst {dimension_numbers = #tpu.dot_dimension_numbers<[1], [0], [0], [1], [0, 0, 1, 1], [], []>} : vector<16x128xbf16>, vector<128x256xbf16>, vector<16x256xf32> -> vector<16x256xf32>
    %65 = vector.extract_strided_slice %64 {offsets = [0, 0], sizes = [8, 256], strides = [1, 1]} : vector<16x256xf32> to vector<8x256xf32>
    %66 = arith.truncf %65 : vector<8x256xf32> to vector<8x256xbf16>
    %c0_19 = arith.constant 0 : index
    %c0_20 = arith.constant 0 : index
    %67 = vector.load %arg6[%c0_19, %c0_20] : memref<256x64xbf16, #tpu.memory_space<vmem>>, vector<256x64xbf16>
    %cst_21 = arith.constant dense<0.000000e+00> : vector<8x64xf32>
    %68 = tpu.matmul %66, %67, %cst_21 {dimension_numbers = #tpu.dot_dimension_numbers<[1], [0], [0], [1], [0, 0, 1, 1], [], []>} : vector<8x256xbf16>, vector<256x64xbf16>, vector<8x64xf32> -> vector<8x64xf32>
    %c0_22 = arith.constant 0 : index
    %c0_23 = arith.constant 0 : index
    %69 = vector.load %arg13[%c0_22, %c0_23] : memref<184x1xf32, #tpu.memory_space<vmem>>, vector<8x1xf32>
    %70 = vector.broadcast %69 : vector<8x1xf32> to vector<8x64xf32>
    %71 = arith.addf %68, %70 : vector<8x64xf32>
    %cst_24 = arith.constant 0.000000e+00 : f32
    %72 = vector.broadcast %cst_24 : f32 to vector<8x64xf32>
    %73 = arith.maximumf %71, %72 : vector<8x64xf32>
    %74 = vector.extract_strided_slice %73 {offsets = [0, 55], sizes = [8, 9], strides = [1, 1]} : vector<8x64xf32> to vector<8x9xf32>
    %75 = vector.extract_strided_slice %73 {offsets = [0, 0], sizes = [8, 55], strides = [1, 1]} : vector<8x64xf32> to vector<8x55xf32>
    %76 = tpu.concatenate %74, %75 in 1 : vector<8x9xf32>, vector<8x55xf32> -> vector<8x64xf32>
    %c0_25 = arith.constant 0 : index
    %c0_26 = arith.constant 0 : index
    %77 = vector.load %arg3[%c0_25, %c0_26] : memref<16x64xf32, #tpu.memory_space<vmem>>, vector<1x64xf32>
    %78 = vector.broadcast %77 : vector<1x64xf32> to vector<8x64xf32>
    %79 = arith.mulf %76, %78 : vector<8x64xf32>
    %80 = vector.extract_strided_slice %73 {offsets = [0, 56], sizes = [8, 8], strides = [1, 1]} : vector<8x64xf32> to vector<8x8xf32>
    %81 = vector.extract_strided_slice %73 {offsets = [0, 0], sizes = [8, 56], strides = [1, 1]} : vector<8x64xf32> to vector<8x56xf32>
    %82 = tpu.concatenate %80, %81 in 1 : vector<8x8xf32>, vector<8x56xf32> -> vector<8x64xf32>
    %c1_27 = arith.constant 1 : index
    %c0_28 = arith.constant 0 : index
    %83 = vector.load %arg3[%c1_27, %c0_28] : memref<16x64xf32, #tpu.memory_space<vmem>>, vector<1x64xf32>
    %84 = vector.broadcast %83 : vector<1x64xf32> to vector<8x64xf32>
    %85 = arith.mulf %82, %84 : vector<8x64xf32>
    %86 = vector.extract_strided_slice %73 {offsets = [0, 57], sizes = [8, 7], strides = [1, 1]} : vector<8x64xf32> to vector<8x7xf32>
    %87 = vector.extract_strided_slice %73 {offsets = [0, 0], sizes = [8, 57], strides = [1, 1]} : vector<8x64xf32> to vector<8x57xf32>
    %88 = tpu.concatenate %86, %87 in 1 : vector<8x7xf32>, vector<8x57xf32> -> vector<8x64xf32>
    %c2_29 = arith.constant 2 : index
    %c0_30 = arith.constant 0 : index
    %89 = vector.load %arg3[%c2_29, %c0_30] : memref<16x64xf32, #tpu.memory_space<vmem>>, vector<1x64xf32>
    %90 = vector.broadcast %89 : vector<1x64xf32> to vector<8x64xf32>
    %91 = arith.mulf %88, %90 : vector<8x64xf32>
    %92 = vector.extract_strided_slice %73 {offsets = [0, 63], sizes = [8, 1], strides = [1, 1]} : vector<8x64xf32> to vector<8x1xf32>
    %93 = vector.extract_strided_slice %73 {offsets = [0, 0], sizes = [8, 63], strides = [1, 1]} : vector<8x64xf32> to vector<8x63xf32>
    %94 = tpu.concatenate %92, %93 in 1 : vector<8x1xf32>, vector<8x63xf32> -> vector<8x64xf32>
    %c4_31 = arith.constant 4 : index
    %c0_32 = arith.constant 0 : index
    %95 = vector.load %arg3[%c4_31, %c0_32] : memref<16x64xf32, #tpu.memory_space<vmem>>, vector<1x64xf32>
    %96 = vector.broadcast %95 : vector<1x64xf32> to vector<8x64xf32>
    %97 = arith.mulf %94, %96 : vector<8x64xf32>
    %98 = vector.extract_strided_slice %73 {offsets = [0, 1], sizes = [8, 63], strides = [1, 1]} : vector<8x64xf32> to vector<8x63xf32>
    %99 = vector.extract_strided_slice %73 {offsets = [0, 0], sizes = [8, 1], strides = [1, 1]} : vector<8x64xf32> to vector<8x1xf32>
    %100 = tpu.concatenate %98, %99 in 1 : vector<8x63xf32>, vector<8x1xf32> -> vector<8x64xf32>
    %c6_33 = arith.constant 6 : index
    %c0_34 = arith.constant 0 : index
    %101 = vector.load %arg3[%c6_33, %c0_34] : memref<16x64xf32, #tpu.memory_space<vmem>>, vector<1x64xf32>
    %102 = vector.broadcast %101 : vector<1x64xf32> to vector<8x64xf32>
    %103 = arith.mulf %100, %102 : vector<8x64xf32>
    %104 = vector.extract_strided_slice %73 {offsets = [0, 7], sizes = [8, 57], strides = [1, 1]} : vector<8x64xf32> to vector<8x57xf32>
    %105 = vector.extract_strided_slice %73 {offsets = [0, 0], sizes = [8, 7], strides = [1, 1]} : vector<8x64xf32> to vector<8x7xf32>
    %106 = tpu.concatenate %104, %105 in 1 : vector<8x57xf32>, vector<8x7xf32> -> vector<8x64xf32>
    %c8_35 = arith.constant 8 : index
    %c0_36 = arith.constant 0 : index
    %107 = vector.load %arg3[%c8_35, %c0_36] : memref<16x64xf32, #tpu.memory_space<vmem>>, vector<1x64xf32>
    %108 = vector.broadcast %107 : vector<1x64xf32> to vector<8x64xf32>
    %109 = arith.mulf %106, %108 : vector<8x64xf32>
    %110 = vector.extract_strided_slice %73 {offsets = [0, 8], sizes = [8, 56], strides = [1, 1]} : vector<8x64xf32> to vector<8x56xf32>
    %111 = vector.extract_strided_slice %73 {offsets = [0, 0], sizes = [8, 8], strides = [1, 1]} : vector<8x64xf32> to vector<8x8xf32>
    %112 = tpu.concatenate %110, %111 in 1 : vector<8x56xf32>, vector<8x8xf32> -> vector<8x64xf32>
    %c9_37 = arith.constant 9 : index
    %c0_38 = arith.constant 0 : index
    %113 = vector.load %arg3[%c9_37, %c0_38] : memref<16x64xf32, #tpu.memory_space<vmem>>, vector<1x64xf32>
    %114 = vector.broadcast %113 : vector<1x64xf32> to vector<8x64xf32>
    %115 = arith.mulf %112, %114 : vector<8x64xf32>
    %116 = vector.extract_strided_slice %73 {offsets = [0, 9], sizes = [8, 55], strides = [1, 1]} : vector<8x64xf32> to vector<8x55xf32>
    %117 = vector.extract_strided_slice %73 {offsets = [0, 0], sizes = [8, 9], strides = [1, 1]} : vector<8x64xf32> to vector<8x9xf32>
    %118 = tpu.concatenate %116, %117 in 1 : vector<8x55xf32>, vector<8x9xf32> -> vector<8x64xf32>
    %c10_39 = arith.constant 10 : index
    %c0_40 = arith.constant 0 : index
    %119 = vector.load %arg3[%c10_39, %c0_40] : memref<16x64xf32, #tpu.memory_space<vmem>>, vector<1x64xf32>
    %120 = vector.broadcast %119 : vector<1x64xf32> to vector<8x64xf32>
    %121 = arith.mulf %118, %120 : vector<8x64xf32>
    %122 = tpu.concatenate %79, %85, %91, %97, %73, %103, %109, %115, %121 in 0 : vector<8x64xf32>, vector<8x64xf32>, vector<8x64xf32>, vector<8x64xf32>, vector<8x64xf32>, vector<8x64xf32>, vector<8x64xf32>, vector<8x64xf32>, vector<8x64xf32> -> vector<72x64xf32>
    %c16 = arith.constant 16 : index
    %c0_41 = arith.constant 0 : index
    %123 = vector.load %arg12[%c16, %c0_41] : memref<320x288xbf16, #tpu.memory_space<vmem>>, vector<16x72xbf16>
    %124 = arith.truncf %122 : vector<72x64xf32> to vector<72x64xbf16>
    %cst_42 = arith.constant dense<0.000000e+00> : vector<16x64xf32>
    %125 = tpu.matmul %123, %124, %cst_42 {dimension_numbers = #tpu.dot_dimension_numbers<[1], [0], [0], [1], [0, 0, 1, 1], [], []>} : vector<16x72xbf16>, vector<72x64xbf16>, vector<16x64xf32> -> vector<16x64xf32>
    %126 = vector.extract_strided_slice %125 {offsets = [0, 0], sizes = [8, 64], strides = [1, 1]} : vector<16x64xf32> to vector<8x64xf32>
    %c8_43 = arith.constant 8 : index
    %c0_44 = arith.constant 0 : index
    %127 = vector.load %arg13[%c8_43, %c0_44] : memref<184x1xf32, #tpu.memory_space<vmem>>, vector<8x1xf32>
    %128 = vector.broadcast %127 : vector<8x1xf32> to vector<8x64xf32>
    %129 = arith.addf %126, %128 : vector<8x64xf32>
    %cst_45 = arith.constant 0.000000e+00 : f32
    %130 = vector.broadcast %cst_45 : f32 to vector<8x64xf32>
    %131 = arith.maximumf %129, %130 : vector<8x64xf32>
    %132 = vector.extract_strided_slice %131 {offsets = [0, 55], sizes = [8, 9], strides = [1, 1]} : vector<8x64xf32> to vector<8x9xf32>
    %133 = vector.extract_strided_slice %131 {offsets = [0, 0], sizes = [8, 55], strides = [1, 1]} : vector<8x64xf32> to vector<8x55xf32>
    %134 = tpu.concatenate %132, %133 in 1 : vector<8x9xf32>, vector<8x55xf32> -> vector<8x64xf32>
    %c0_46 = arith.constant 0 : index
    %c0_47 = arith.constant 0 : index
    %135 = vector.load %arg3[%c0_46, %c0_47] : memref<16x64xf32, #tpu.memory_space<vmem>>, vector<1x64xf32>
    %136 = vector.broadcast %135 : vector<1x64xf32> to vector<8x64xf32>
    %137 = arith.mulf %134, %136 : vector<8x64xf32>
    %138 = vector.extract_strided_slice %131 {offsets = [0, 56], sizes = [8, 8], strides = [1, 1]} : vector<8x64xf32> to vector<8x8xf32>
    %139 = vector.extract_strided_slice %131 {offsets = [0, 0], sizes = [8, 56], strides = [1, 1]} : vector<8x64xf32> to vector<8x56xf32>
    %140 = tpu.concatenate %138, %139 in 1 : vector<8x8xf32>, vector<8x56xf32> -> vector<8x64xf32>
    %c1_48 = arith.constant 1 : index
    %c0_49 = arith.constant 0 : index
    %141 = vector.load %arg3[%c1_48, %c0_49] : memref<16x64xf32, #tpu.memory_space<vmem>>, vector<1x64xf32>
    %142 = vector.broadcast %141 : vector<1x64xf32> to vector<8x64xf32>
    %143 = arith.mulf %140, %142 : vector<8x64xf32>
    %144 = vector.extract_strided_slice %131 {offsets = [0, 57], sizes = [8, 7], strides = [1, 1]} : vector<8x64xf32> to vector<8x7xf32>
    %145 = vector.extract_strided_slice %131 {offsets = [0, 0], sizes = [8, 57], strides = [1, 1]} : vector<8x64xf32> to vector<8x57xf32>
    %146 = tpu.concatenate %144, %145 in 1 : vector<8x7xf32>, vector<8x57xf32> -> vector<8x64xf32>
    %c2_50 = arith.constant 2 : index
    %c0_51 = arith.constant 0 : index
    %147 = vector.load %arg3[%c2_50, %c0_51] : memref<16x64xf32, #tpu.memory_space<vmem>>, vector<1x64xf32>
    %148 = vector.broadcast %147 : vector<1x64xf32> to vector<8x64xf32>
    %149 = arith.mulf %146, %148 : vector<8x64xf32>
    %150 = vector.extract_strided_slice %131 {offsets = [0, 63], sizes = [8, 1], strides = [1, 1]} : vector<8x64xf32> to vector<8x1xf32>
    %151 = vector.extract_strided_slice %131 {offsets = [0, 0], sizes = [8, 63], strides = [1, 1]} : vector<8x64xf32> to vector<8x63xf32>
    %152 = tpu.concatenate %150, %151 in 1 : vector<8x1xf32>, vector<8x63xf32> -> vector<8x64xf32>
    %c4_52 = arith.constant 4 : index
    %c0_53 = arith.constant 0 : index
    %153 = vector.load %arg3[%c4_52, %c0_53] : memref<16x64xf32, #tpu.memory_space<vmem>>, vector<1x64xf32>
    %154 = vector.broadcast %153 : vector<1x64xf32> to vector<8x64xf32>
    %155 = arith.mulf %152, %154 : vector<8x64xf32>
    %156 = vector.extract_strided_slice %131 {offsets = [0, 1], sizes = [8, 63], strides = [1, 1]} : vector<8x64xf32> to vector<8x63xf32>
    %157 = vector.extract_strided_slice %131 {offsets = [0, 0], sizes = [8, 1], strides = [1, 1]} : vector<8x64xf32> to vector<8x1xf32>
    %158 = tpu.concatenate %156, %157 in 1 : vector<8x63xf32>, vector<8x1xf32> -> vector<8x64xf32>
    %c6_54 = arith.constant 6 : index
    %c0_55 = arith.constant 0 : index
    %159 = vector.load %arg3[%c6_54, %c0_55] : memref<16x64xf32, #tpu.memory_space<vmem>>, vector<1x64xf32>
    %160 = vector.broadcast %159 : vector<1x64xf32> to vector<8x64xf32>
    %161 = arith.mulf %158, %160 : vector<8x64xf32>
    %162 = vector.extract_strided_slice %131 {offsets = [0, 7], sizes = [8, 57], strides = [1, 1]} : vector<8x64xf32> to vector<8x57xf32>
    %163 = vector.extract_strided_slice %131 {offsets = [0, 0], sizes = [8, 7], strides = [1, 1]} : vector<8x64xf32> to vector<8x7xf32>
    %164 = tpu.concatenate %162, %163 in 1 : vector<8x57xf32>, vector<8x7xf32> -> vector<8x64xf32>
    %c8_56 = arith.constant 8 : index
    %c0_57 = arith.constant 0 : index
    %165 = vector.load %arg3[%c8_56, %c0_57] : memref<16x64xf32, #tpu.memory_space<vmem>>, vector<1x64xf32>
    %166 = vector.broadcast %165 : vector<1x64xf32> to vector<8x64xf32>
    %167 = arith.mulf %164, %166 : vector<8x64xf32>
    %168 = vector.extract_strided_slice %131 {offsets = [0, 8], sizes = [8, 56], strides = [1, 1]} : vector<8x64xf32> to vector<8x56xf32>
    %169 = vector.extract_strided_slice %131 {offsets = [0, 0], sizes = [8, 8], strides = [1, 1]} : vector<8x64xf32> to vector<8x8xf32>
    %170 = tpu.concatenate %168, %169 in 1 : vector<8x56xf32>, vector<8x8xf32> -> vector<8x64xf32>
    %c9_58 = arith.constant 9 : index
    %c0_59 = arith.constant 0 : index
    %171 = vector.load %arg3[%c9_58, %c0_59] : memref<16x64xf32, #tpu.memory_space<vmem>>, vector<1x64xf32>
    %172 = vector.broadcast %171 : vector<1x64xf32> to vector<8x64xf32>
    %173 = arith.mulf %170, %172 : vector<8x64xf32>
    %174 = vector.extract_strided_slice %131 {offsets = [0, 9], sizes = [8, 55], strides = [1, 1]} : vector<8x64xf32> to vector<8x55xf32>
    %175 = vector.extract_strided_slice %131 {offsets = [0, 0], sizes = [8, 9], strides = [1, 1]} : vector<8x64xf32> to vector<8x9xf32>
    %176 = tpu.concatenate %174, %175 in 1 : vector<8x55xf32>, vector<8x9xf32> -> vector<8x64xf32>
    %c10_60 = arith.constant 10 : index
    %c0_61 = arith.constant 0 : index
    %177 = vector.load %arg3[%c10_60, %c0_61] : memref<16x64xf32, #tpu.memory_space<vmem>>, vector<1x64xf32>
    %178 = vector.broadcast %177 : vector<1x64xf32> to vector<8x64xf32>
    %179 = arith.mulf %176, %178 : vector<8x64xf32>
    %180 = tpu.concatenate %137, %143, %149, %155, %131, %161, %167, %173, %179 in 0 : vector<8x64xf32>, vector<8x64xf32>, vector<8x64xf32>, vector<8x64xf32>, vector<8x64xf32>, vector<8x64xf32>, vector<8x64xf32>, vector<8x64xf32>, vector<8x64xf32> -> vector<72x64xf32>
    %c32 = arith.constant 32 : index
    %c0_62 = arith.constant 0 : index
    %181 = vector.load %arg12[%c32, %c0_62] : memref<320x288xbf16, #tpu.memory_space<vmem>>, vector<16x72xbf16>
    %182 = arith.truncf %180 : vector<72x64xf32> to vector<72x64xbf16>
    %cst_63 = arith.constant dense<0.000000e+00> : vector<16x64xf32>
    %183 = tpu.matmul %181, %182, %cst_63 {dimension_numbers = #tpu.dot_dimension_numbers<[1], [0], [0], [1], [0, 0, 1, 1], [], []>} : vector<16x72xbf16>, vector<72x64xbf16>, vector<16x64xf32> -> vector<16x64xf32>
    %184 = vector.extract_strided_slice %183 {offsets = [0, 0], sizes = [8, 64], strides = [1, 1]} : vector<16x64xf32> to vector<8x64xf32>
    %c16_64 = arith.constant 16 : index
    %c0_65 = arith.constant 0 : index
    %185 = vector.load %arg13[%c16_64, %c0_65] : memref<184x1xf32, #tpu.memory_space<vmem>>, vector<8x1xf32>
    %186 = vector.broadcast %185 : vector<8x1xf32> to vector<8x64xf32>
    %187 = arith.addf %184, %186 : vector<8x64xf32>
    %188 = arith.addf %187, %73 : vector<8x64xf32>
    %cst_66 = arith.constant 0.000000e+00 : f32
    %189 = vector.broadcast %cst_66 : f32 to vector<8x64xf32>
    %190 = arith.maximumf %188, %189 : vector<8x64xf32>
    %191 = vector.extract_strided_slice %190 {offsets = [0, 55], sizes = [8, 9], strides = [1, 1]} : vector<8x64xf32> to vector<8x9xf32>
    %192 = vector.extract_strided_slice %190 {offsets = [0, 0], sizes = [8, 55], strides = [1, 1]} : vector<8x64xf32> to vector<8x55xf32>
    %193 = tpu.concatenate %191, %192 in 1 : vector<8x9xf32>, vector<8x55xf32> -> vector<8x64xf32>
    %c0_67 = arith.constant 0 : index
    %c0_68 = arith.constant 0 : index
    %194 = vector.load %arg3[%c0_67, %c0_68] : memref<16x64xf32, #tpu.memory_space<vmem>>, vector<1x64xf32>
    %195 = vector.broadcast %194 : vector<1x64xf32> to vector<8x64xf32>
    %196 = arith.mulf %193, %195 : vector<8x64xf32>
    %197 = vector.extract_strided_slice %190 {offsets = [0, 56], sizes = [8, 8], strides = [1, 1]} : vector<8x64xf32> to vector<8x8xf32>
    %198 = vector.extract_strided_slice %190 {offsets = [0, 0], sizes = [8, 56], strides = [1, 1]} : vector<8x64xf32> to vector<8x56xf32>
    %199 = tpu.concatenate %197, %198 in 1 : vector<8x8xf32>, vector<8x56xf32> -> vector<8x64xf32>
    %c1_69 = arith.constant 1 : index
    %c0_70 = arith.constant 0 : index
    %200 = vector.load %arg3[%c1_69, %c0_70] : memref<16x64xf32, #tpu.memory_space<vmem>>, vector<1x64xf32>
    %201 = vector.broadcast %200 : vector<1x64xf32> to vector<8x64xf32>
    %202 = arith.mulf %199, %201 : vector<8x64xf32>
    %203 = vector.extract_strided_slice %190 {offsets = [0, 57], sizes = [8, 7], strides = [1, 1]} : vector<8x64xf32> to vector<8x7xf32>
    %204 = vector.extract_strided_slice %190 {offsets = [0, 0], sizes = [8, 57], strides = [1, 1]} : vector<8x64xf32> to vector<8x57xf32>
    %205 = tpu.concatenate %203, %204 in 1 : vector<8x7xf32>, vector<8x57xf32> -> vector<8x64xf32>
    %c2_71 = arith.constant 2 : index
    %c0_72 = arith.constant 0 : index
    %206 = vector.load %arg3[%c2_71, %c0_72] : memref<16x64xf32, #tpu.memory_space<vmem>>, vector<1x64xf32>
    %207 = vector.broadcast %206 : vector<1x64xf32> to vector<8x64xf32>
    %208 = arith.mulf %205, %207 : vector<8x64xf32>
    %209 = vector.extract_strided_slice %190 {offsets = [0, 58], sizes = [8, 6], strides = [1, 1]} : vector<8x64xf32> to vector<8x6xf32>
    %210 = vector.extract_strided_slice %190 {offsets = [0, 0], sizes = [8, 58], strides = [1, 1]} : vector<8x64xf32> to vector<8x58xf32>
    %211 = tpu.concatenate %209, %210 in 1 : vector<8x6xf32>, vector<8x58xf32> -> vector<8x64xf32>
    %c3_73 = arith.constant 3 : index
    %c0_74 = arith.constant 0 : index
    %212 = vector.load %arg3[%c3_73, %c0_74] : memref<16x64xf32, #tpu.memory_space<vmem>>, vector<1x64xf32>
    %213 = vector.broadcast %212 : vector<1x64xf32> to vector<8x64xf32>
    %214 = arith.mulf %211, %213 : vector<8x64xf32>
    %215 = vector.extract_strided_slice %190 {offsets = [0, 63], sizes = [8, 1], strides = [1, 1]} : vector<8x64xf32> to vector<8x1xf32>
    %216 = vector.extract_strided_slice %190 {offsets = [0, 0], sizes = [8, 63], strides = [1, 1]} : vector<8x64xf32> to vector<8x63xf32>
    %217 = tpu.concatenate %215, %216 in 1 : vector<8x1xf32>, vector<8x63xf32> -> vector<8x64xf32>
    %c4_75 = arith.constant 4 : index
    %c0_76 = arith.constant 0 : index
    %218 = vector.load %arg3[%c4_75, %c0_76] : memref<16x64xf32, #tpu.memory_space<vmem>>, vector<1x64xf32>
    %219 = vector.broadcast %218 : vector<1x64xf32> to vector<8x64xf32>
    %220 = arith.mulf %217, %219 : vector<8x64xf32>
    %221 = vector.extract_strided_slice %190 {offsets = [0, 1], sizes = [8, 63], strides = [1, 1]} : vector<8x64xf32> to vector<8x63xf32>
    %222 = vector.extract_strided_slice %190 {offsets = [0, 0], sizes = [8, 1], strides = [1, 1]} : vector<8x64xf32> to vector<8x1xf32>
    %223 = tpu.concatenate %221, %222 in 1 : vector<8x63xf32>, vector<8x1xf32> -> vector<8x64xf32>
    %c6_77 = arith.constant 6 : index
    %c0_78 = arith.constant 0 : index
    %224 = vector.load %arg3[%c6_77, %c0_78] : memref<16x64xf32, #tpu.memory_space<vmem>>, vector<1x64xf32>
    %225 = vector.broadcast %224 : vector<1x64xf32> to vector<8x64xf32>
    %226 = arith.mulf %223, %225 : vector<8x64xf32>
    %227 = vector.extract_strided_slice %190 {offsets = [0, 2], sizes = [8, 62], strides = [1, 1]} : vector<8x64xf32> to vector<8x62xf32>
    %228 = vector.extract_strided_slice %190 {offsets = [0, 0], sizes = [8, 2], strides = [1, 1]} : vector<8x64xf32> to vector<8x2xf32>
    %229 = tpu.concatenate %227, %228 in 1 : vector<8x62xf32>, vector<8x2xf32> -> vector<8x64xf32>
    %c7_79 = arith.constant 7 : index
    %c0_80 = arith.constant 0 : index
    %230 = vector.load %arg3[%c7_79, %c0_80] : memref<16x64xf32, #tpu.memory_space<vmem>>, vector<1x64xf32>
    %231 = vector.broadcast %230 : vector<1x64xf32> to vector<8x64xf32>
    %232 = arith.mulf %229, %231 : vector<8x64xf32>
    %233 = vector.extract_strided_slice %190 {offsets = [0, 7], sizes = [8, 57], strides = [1, 1]} : vector<8x64xf32> to vector<8x57xf32>
    %234 = vector.extract_strided_slice %190 {offsets = [0, 0], sizes = [8, 7], strides = [1, 1]} : vector<8x64xf32> to vector<8x7xf32>
    %235 = tpu.concatenate %233, %234 in 1 : vector<8x57xf32>, vector<8x7xf32> -> vector<8x64xf32>
    %c8_81 = arith.constant 8 : index
    %c0_82 = arith.constant 0 : index
    %236 = vector.load %arg3[%c8_81, %c0_82] : memref<16x64xf32, #tpu.memory_space<vmem>>, vector<1x64xf32>
    %237 = vector.broadcast %236 : vector<1x64xf32> to vector<8x64xf32>
    %238 = arith.mulf %235, %237 : vector<8x64xf32>
    %239 = vector.extract_strided_slice %190 {offsets = [0, 8], sizes = [8, 56], strides = [1, 1]} : vector<8x64xf32> to vector<8x56xf32>
    %240 = vector.extract_strided_slice %190 {offsets = [0, 0], sizes = [8, 8], strides = [1, 1]} : vector<8x64xf32> to vector<8x8xf32>
    %241 = tpu.concatenate %239, %240 in 1 : vector<8x56xf32>, vector<8x8xf32> -> vector<8x64xf32>
    %c9_83 = arith.constant 9 : index
    %c0_84 = arith.constant 0 : index
    %242 = vector.load %arg3[%c9_83, %c0_84] : memref<16x64xf32, #tpu.memory_space<vmem>>, vector<1x64xf32>
    %243 = vector.broadcast %242 : vector<1x64xf32> to vector<8x64xf32>
    %244 = arith.mulf %241, %243 : vector<8x64xf32>
    %245 = vector.extract_strided_slice %190 {offsets = [0, 9], sizes = [8, 55], strides = [1, 1]} : vector<8x64xf32> to vector<8x55xf32>
    %246 = vector.extract_strided_slice %190 {offsets = [0, 0], sizes = [8, 9], strides = [1, 1]} : vector<8x64xf32> to vector<8x9xf32>
    %247 = tpu.concatenate %245, %246 in 1 : vector<8x55xf32>, vector<8x9xf32> -> vector<8x64xf32>
    %c10_85 = arith.constant 10 : index
    %c0_86 = arith.constant 0 : index
    %248 = vector.load %arg3[%c10_85, %c0_86] : memref<16x64xf32, #tpu.memory_space<vmem>>, vector<1x64xf32>
    %249 = vector.broadcast %248 : vector<1x64xf32> to vector<8x64xf32>
    %250 = arith.mulf %247, %249 : vector<8x64xf32>
    %251 = vector.extract_strided_slice %190 {offsets = [0, 10], sizes = [8, 54], strides = [1, 1]} : vector<8x64xf32> to vector<8x54xf32>
    %252 = vector.extract_strided_slice %190 {offsets = [0, 0], sizes = [8, 10], strides = [1, 1]} : vector<8x64xf32> to vector<8x10xf32>
    %253 = tpu.concatenate %251, %252 in 1 : vector<8x54xf32>, vector<8x10xf32> -> vector<8x64xf32>
    %c11_87 = arith.constant 11 : index
    %c0_88 = arith.constant 0 : index
    %254 = vector.load %arg3[%c11_87, %c0_88] : memref<16x64xf32, #tpu.memory_space<vmem>>, vector<1x64xf32>
    %255 = vector.broadcast %254 : vector<1x64xf32> to vector<8x64xf32>
    %256 = arith.mulf %253, %255 : vector<8x64xf32>
    %257 = vector.extract_strided_slice %190 {offsets = [0, 15], sizes = [8, 49], strides = [1, 1]} : vector<8x64xf32> to vector<8x49xf32>
    %258 = vector.extract_strided_slice %190 {offsets = [0, 0], sizes = [8, 15], strides = [1, 1]} : vector<8x64xf32> to vector<8x15xf32>
    %259 = tpu.concatenate %257, %258 in 1 : vector<8x49xf32>, vector<8x15xf32> -> vector<8x64xf32>
    %c12_89 = arith.constant 12 : index
    %c0_90 = arith.constant 0 : index
    %260 = vector.load %arg3[%c12_89, %c0_90] : memref<16x64xf32, #tpu.memory_space<vmem>>, vector<1x64xf32>
    %261 = vector.broadcast %260 : vector<1x64xf32> to vector<8x64xf32>
    %262 = arith.mulf %259, %261 : vector<8x64xf32>
    %263 = vector.extract_strided_slice %190 {offsets = [0, 16], sizes = [8, 48], strides = [1, 1]} : vector<8x64xf32> to vector<8x48xf32>
    %264 = vector.extract_strided_slice %190 {offsets = [0, 0], sizes = [8, 16], strides = [1, 1]} : vector<8x64xf32> to vector<8x16xf32>
    %265 = tpu.concatenate %263, %264 in 1 : vector<8x48xf32>, vector<8x16xf32> -> vector<8x64xf32>
    %c13_91 = arith.constant 13 : index
    %c0_92 = arith.constant 0 : index
    %266 = vector.load %arg3[%c13_91, %c0_92] : memref<16x64xf32, #tpu.memory_space<vmem>>, vector<1x64xf32>
    %267 = vector.broadcast %266 : vector<1x64xf32> to vector<8x64xf32>
    %268 = arith.mulf %265, %267 : vector<8x64xf32>
    %269 = vector.extract_strided_slice %190 {offsets = [0, 17], sizes = [8, 47], strides = [1, 1]} : vector<8x64xf32> to vector<8x47xf32>
    %270 = vector.extract_strided_slice %190 {offsets = [0, 0], sizes = [8, 17], strides = [1, 1]} : vector<8x64xf32> to vector<8x17xf32>
    %271 = tpu.concatenate %269, %270 in 1 : vector<8x47xf32>, vector<8x17xf32> -> vector<8x64xf32>
    %c14_93 = arith.constant 14 : index
    %c0_94 = arith.constant 0 : index
    %272 = vector.load %arg3[%c14_93, %c0_94] : memref<16x64xf32, #tpu.memory_space<vmem>>, vector<1x64xf32>
    %273 = vector.broadcast %272 : vector<1x64xf32> to vector<8x64xf32>
    %274 = arith.mulf %271, %273 : vector<8x64xf32>
    %275 = vector.extract_strided_slice %190 {offsets = [0, 18], sizes = [8, 46], strides = [1, 1]} : vector<8x64xf32> to vector<8x46xf32>
    %276 = vector.extract_strided_slice %190 {offsets = [0, 0], sizes = [8, 18], strides = [1, 1]} : vector<8x64xf32> to vector<8x18xf32>
    %277 = tpu.concatenate %275, %276 in 1 : vector<8x46xf32>, vector<8x18xf32> -> vector<8x64xf32>
    %c15_95 = arith.constant 15 : index
    %c0_96 = arith.constant 0 : index
    %278 = vector.load %arg3[%c15_95, %c0_96] : memref<16x64xf32, #tpu.memory_space<vmem>>, vector<1x64xf32>
    %279 = vector.broadcast %278 : vector<1x64xf32> to vector<8x64xf32>
    %280 = arith.mulf %277, %279 : vector<8x64xf32>
    %281 = tpu.concatenate %196, %202, %208, %214, %220, %190, %226, %232, %238, %244, %250, %256, %262, %268, %274, %280 in 0 : vector<8x64xf32>, vector<8x64xf32>, vector<8x64xf32>, vector<8x64xf32>, vector<8x64xf32>, vector<8x64xf32>, vector<8x64xf32>, vector<8x64xf32>, vector<8x64xf32>, vector<8x64xf32>, vector<8x64xf32>, vector<8x64xf32>, vector<8x64xf32>, vector<8x64xf32>, vector<8x64xf32>, vector<8x64xf32> -> vector<128x64xf32>
    %c48 = arith.constant 48 : index
    %c0_97 = arith.constant 0 : index
    %282 = vector.load %arg12[%c48, %c0_97] : memref<320x288xbf16, #tpu.memory_space<vmem>>, vector<16x128xbf16>
    %283 = arith.truncf %281 : vector<128x64xf32> to vector<128x64xbf16>
    %cst_98 = arith.constant dense<0.000000e+00> : vector<16x64xf32>
    %284 = tpu.matmul %282, %283, %cst_98 {dimension_numbers = #tpu.dot_dimension_numbers<[1], [0], [0], [1], [0, 0, 1, 1], [], []>} : vector<16x128xbf16>, vector<128x64xbf16>, vector<16x64xf32> -> vector<16x64xf32>
    %285 = arith.truncf %284 : vector<16x64xf32> to vector<16x64xbf16>
    %c0_99 = arith.constant 0 : index
    %c0_100 = arith.constant 0 : index
    %286 = vector.load %arg7[%c0_99, %c0_100] : memref<64x16xbf16, #tpu.memory_space<vmem>>, vector<64x16xbf16>
    %cst_101 = arith.constant dense<0.000000e+00> : vector<16x16xf32>
    %287 = tpu.matmul %285, %286, %cst_101 {dimension_numbers = #tpu.dot_dimension_numbers<[1], [0], [0], [1], [0, 0, 1, 1], [], []>} : vector<16x64xbf16>, vector<64x16xbf16>, vector<16x16xf32> -> vector<16x16xf32>
    %c24 = arith.constant 24 : index
    %c0_102 = arith.constant 0 : index
    %288 = vector.load %arg13[%c24, %c0_102] : memref<184x1xf32, #tpu.memory_space<vmem>>, vector<16x1xf32>
    %289 = vector.broadcast %288 : vector<16x1xf32> to vector<16x16xf32>
    %290 = arith.addf %287, %289 : vector<16x16xf32>
    %cst_103 = arith.constant 0.000000e+00 : f32
    %291 = vector.broadcast %cst_103 : f32 to vector<16x16xf32>
    %292 = arith.maximumf %290, %291 : vector<16x16xf32>
    %293 = vector.extract_strided_slice %292 {offsets = [0, 11], sizes = [16, 5], strides = [1, 1]} : vector<16x16xf32> to vector<16x5xf32>
    %294 = vector.extract_strided_slice %292 {offsets = [0, 0], sizes = [16, 11], strides = [1, 1]} : vector<16x16xf32> to vector<16x11xf32>
    %295 = tpu.concatenate %293, %294 in 1 : vector<16x5xf32>, vector<16x11xf32> -> vector<16x16xf32>
    %c0_104 = arith.constant 0 : index
    %c0_105 = arith.constant 0 : index
    %296 = vector.load %arg4[%c0_104, %c0_105] : memref<16x16xf32, #tpu.memory_space<vmem>>, vector<1x16xf32>
    %297 = vector.broadcast %296 : vector<1x16xf32> to vector<16x16xf32>
    %298 = arith.mulf %295, %297 : vector<16x16xf32>
    %299 = vector.extract_strided_slice %292 {offsets = [0, 12], sizes = [16, 4], strides = [1, 1]} : vector<16x16xf32> to vector<16x4xf32>
    %300 = vector.extract_strided_slice %292 {offsets = [0, 0], sizes = [16, 12], strides = [1, 1]} : vector<16x16xf32> to vector<16x12xf32>
    %301 = tpu.concatenate %299, %300 in 1 : vector<16x4xf32>, vector<16x12xf32> -> vector<16x16xf32>
    %c1_106 = arith.constant 1 : index
    %c0_107 = arith.constant 0 : index
    %302 = vector.load %arg4[%c1_106, %c0_107] : memref<16x16xf32, #tpu.memory_space<vmem>>, vector<1x16xf32>
    %303 = vector.broadcast %302 : vector<1x16xf32> to vector<16x16xf32>
    %304 = arith.mulf %301, %303 : vector<16x16xf32>
    %305 = vector.extract_strided_slice %292 {offsets = [0, 13], sizes = [16, 3], strides = [1, 1]} : vector<16x16xf32> to vector<16x3xf32>
    %306 = vector.extract_strided_slice %292 {offsets = [0, 0], sizes = [16, 13], strides = [1, 1]} : vector<16x16xf32> to vector<16x13xf32>
    %307 = tpu.concatenate %305, %306 in 1 : vector<16x3xf32>, vector<16x13xf32> -> vector<16x16xf32>
    %c2_108 = arith.constant 2 : index
    %c0_109 = arith.constant 0 : index
    %308 = vector.load %arg4[%c2_108, %c0_109] : memref<16x16xf32, #tpu.memory_space<vmem>>, vector<1x16xf32>
    %309 = vector.broadcast %308 : vector<1x16xf32> to vector<16x16xf32>
    %310 = arith.mulf %307, %309 : vector<16x16xf32>
    %311 = vector.extract_strided_slice %292 {offsets = [0, 15], sizes = [16, 1], strides = [1, 1]} : vector<16x16xf32> to vector<16x1xf32>
    %312 = vector.extract_strided_slice %292 {offsets = [0, 0], sizes = [16, 15], strides = [1, 1]} : vector<16x16xf32> to vector<16x15xf32>
    %313 = tpu.concatenate %311, %312 in 1 : vector<16x1xf32>, vector<16x15xf32> -> vector<16x16xf32>
    %c4_110 = arith.constant 4 : index
    %c0_111 = arith.constant 0 : index
    %314 = vector.load %arg4[%c4_110, %c0_111] : memref<16x16xf32, #tpu.memory_space<vmem>>, vector<1x16xf32>
    %315 = vector.broadcast %314 : vector<1x16xf32> to vector<16x16xf32>
    %316 = arith.mulf %313, %315 : vector<16x16xf32>
    %317 = vector.extract_strided_slice %292 {offsets = [0, 1], sizes = [16, 15], strides = [1, 1]} : vector<16x16xf32> to vector<16x15xf32>
    %318 = vector.extract_strided_slice %292 {offsets = [0, 0], sizes = [16, 1], strides = [1, 1]} : vector<16x16xf32> to vector<16x1xf32>
    %319 = tpu.concatenate %317, %318 in 1 : vector<16x15xf32>, vector<16x1xf32> -> vector<16x16xf32>
    %c6_112 = arith.constant 6 : index
    %c0_113 = arith.constant 0 : index
    %320 = vector.load %arg4[%c6_112, %c0_113] : memref<16x16xf32, #tpu.memory_space<vmem>>, vector<1x16xf32>
    %321 = vector.broadcast %320 : vector<1x16xf32> to vector<16x16xf32>
    %322 = arith.mulf %319, %321 : vector<16x16xf32>
    %323 = vector.extract_strided_slice %292 {offsets = [0, 3], sizes = [16, 13], strides = [1, 1]} : vector<16x16xf32> to vector<16x13xf32>
    %324 = vector.extract_strided_slice %292 {offsets = [0, 0], sizes = [16, 3], strides = [1, 1]} : vector<16x16xf32> to vector<16x3xf32>
    %325 = tpu.concatenate %323, %324 in 1 : vector<16x13xf32>, vector<16x3xf32> -> vector<16x16xf32>
    %c8_114 = arith.constant 8 : index
    %c0_115 = arith.constant 0 : index
    %326 = vector.load %arg4[%c8_114, %c0_115] : memref<16x16xf32, #tpu.memory_space<vmem>>, vector<1x16xf32>
    %327 = vector.broadcast %326 : vector<1x16xf32> to vector<16x16xf32>
    %328 = arith.mulf %325, %327 : vector<16x16xf32>
    %329 = vector.extract_strided_slice %292 {offsets = [0, 4], sizes = [16, 12], strides = [1, 1]} : vector<16x16xf32> to vector<16x12xf32>
    %330 = vector.extract_strided_slice %292 {offsets = [0, 0], sizes = [16, 4], strides = [1, 1]} : vector<16x16xf32> to vector<16x4xf32>
    %331 = tpu.concatenate %329, %330 in 1 : vector<16x12xf32>, vector<16x4xf32> -> vector<16x16xf32>
    %c9_116 = arith.constant 9 : index
    %c0_117 = arith.constant 0 : index
    %332 = vector.load %arg4[%c9_116, %c0_117] : memref<16x16xf32, #tpu.memory_space<vmem>>, vector<1x16xf32>
    %333 = vector.broadcast %332 : vector<1x16xf32> to vector<16x16xf32>
    %334 = arith.mulf %331, %333 : vector<16x16xf32>
    %335 = vector.extract_strided_slice %292 {offsets = [0, 5], sizes = [16, 11], strides = [1, 1]} : vector<16x16xf32> to vector<16x11xf32>
    %336 = vector.extract_strided_slice %292 {offsets = [0, 0], sizes = [16, 5], strides = [1, 1]} : vector<16x16xf32> to vector<16x5xf32>
    %337 = tpu.concatenate %335, %336 in 1 : vector<16x11xf32>, vector<16x5xf32> -> vector<16x16xf32>
    %c10_118 = arith.constant 10 : index
    %c0_119 = arith.constant 0 : index
    %338 = vector.load %arg4[%c10_118, %c0_119] : memref<16x16xf32, #tpu.memory_space<vmem>>, vector<1x16xf32>
    %339 = vector.broadcast %338 : vector<1x16xf32> to vector<16x16xf32>
    %340 = arith.mulf %337, %339 : vector<16x16xf32>
    %341 = tpu.concatenate %298, %304, %310, %316, %292, %322, %328, %334, %340 in 0 : vector<16x16xf32>, vector<16x16xf32>, vector<16x16xf32>, vector<16x16xf32>, vector<16x16xf32>, vector<16x16xf32>, vector<16x16xf32>, vector<16x16xf32>, vector<16x16xf32> -> vector<144x16xf32>
    %c64 = arith.constant 64 : index
    %c0_120 = arith.constant 0 : index
    %342 = vector.load %arg12[%c64, %c0_120] : memref<320x288xbf16, #tpu.memory_space<vmem>>, vector<16x144xbf16>
    %343 = arith.truncf %341 : vector<144x16xf32> to vector<144x16xbf16>
    %cst_121 = arith.constant dense<0.000000e+00> : vector<16x16xf32>
    %344 = tpu.matmul %342, %343, %cst_121 {dimension_numbers = #tpu.dot_dimension_numbers<[1], [0], [0], [1], [0, 0, 1, 1], [], []>} : vector<16x144xbf16>, vector<144x16xbf16>, vector<16x16xf32> -> vector<16x16xf32>
    %c40 = arith.constant 40 : index
    %c0_122 = arith.constant 0 : index
    %345 = vector.load %arg13[%c40, %c0_122] : memref<184x1xf32, #tpu.memory_space<vmem>>, vector<16x1xf32>
    %346 = vector.broadcast %345 : vector<16x1xf32> to vector<16x16xf32>
    %347 = arith.addf %344, %346 : vector<16x16xf32>
    %cst_123 = arith.constant 0.000000e+00 : f32
    %348 = vector.broadcast %cst_123 : f32 to vector<16x16xf32>
    %349 = arith.maximumf %347, %348 : vector<16x16xf32>
    %350 = vector.extract_strided_slice %349 {offsets = [0, 11], sizes = [16, 5], strides = [1, 1]} : vector<16x16xf32> to vector<16x5xf32>
    %351 = vector.extract_strided_slice %349 {offsets = [0, 0], sizes = [16, 11], strides = [1, 1]} : vector<16x16xf32> to vector<16x11xf32>
    %352 = tpu.concatenate %350, %351 in 1 : vector<16x5xf32>, vector<16x11xf32> -> vector<16x16xf32>
    %c0_124 = arith.constant 0 : index
    %c0_125 = arith.constant 0 : index
    %353 = vector.load %arg4[%c0_124, %c0_125] : memref<16x16xf32, #tpu.memory_space<vmem>>, vector<1x16xf32>
    %354 = vector.broadcast %353 : vector<1x16xf32> to vector<16x16xf32>
    %355 = arith.mulf %352, %354 : vector<16x16xf32>
    %356 = vector.extract_strided_slice %349 {offsets = [0, 12], sizes = [16, 4], strides = [1, 1]} : vector<16x16xf32> to vector<16x4xf32>
    %357 = vector.extract_strided_slice %349 {offsets = [0, 0], sizes = [16, 12], strides = [1, 1]} : vector<16x16xf32> to vector<16x12xf32>
    %358 = tpu.concatenate %356, %357 in 1 : vector<16x4xf32>, vector<16x12xf32> -> vector<16x16xf32>
    %c1_126 = arith.constant 1 : index
    %c0_127 = arith.constant 0 : index
    %359 = vector.load %arg4[%c1_126, %c0_127] : memref<16x16xf32, #tpu.memory_space<vmem>>, vector<1x16xf32>
    %360 = vector.broadcast %359 : vector<1x16xf32> to vector<16x16xf32>
    %361 = arith.mulf %358, %360 : vector<16x16xf32>
    %362 = vector.extract_strided_slice %349 {offsets = [0, 13], sizes = [16, 3], strides = [1, 1]} : vector<16x16xf32> to vector<16x3xf32>
    %363 = vector.extract_strided_slice %349 {offsets = [0, 0], sizes = [16, 13], strides = [1, 1]} : vector<16x16xf32> to vector<16x13xf32>
    %364 = tpu.concatenate %362, %363 in 1 : vector<16x3xf32>, vector<16x13xf32> -> vector<16x16xf32>
    %c2_128 = arith.constant 2 : index
    %c0_129 = arith.constant 0 : index
    %365 = vector.load %arg4[%c2_128, %c0_129] : memref<16x16xf32, #tpu.memory_space<vmem>>, vector<1x16xf32>
    %366 = vector.broadcast %365 : vector<1x16xf32> to vector<16x16xf32>
    %367 = arith.mulf %364, %366 : vector<16x16xf32>
    %368 = vector.extract_strided_slice %349 {offsets = [0, 15], sizes = [16, 1], strides = [1, 1]} : vector<16x16xf32> to vector<16x1xf32>
    %369 = vector.extract_strided_slice %349 {offsets = [0, 0], sizes = [16, 15], strides = [1, 1]} : vector<16x16xf32> to vector<16x15xf32>
    %370 = tpu.concatenate %368, %369 in 1 : vector<16x1xf32>, vector<16x15xf32> -> vector<16x16xf32>
    %c4_130 = arith.constant 4 : index
    %c0_131 = arith.constant 0 : index
    %371 = vector.load %arg4[%c4_130, %c0_131] : memref<16x16xf32, #tpu.memory_space<vmem>>, vector<1x16xf32>
    %372 = vector.broadcast %371 : vector<1x16xf32> to vector<16x16xf32>
    %373 = arith.mulf %370, %372 : vector<16x16xf32>
    %374 = vector.extract_strided_slice %349 {offsets = [0, 1], sizes = [16, 15], strides = [1, 1]} : vector<16x16xf32> to vector<16x15xf32>
    %375 = vector.extract_strided_slice %349 {offsets = [0, 0], sizes = [16, 1], strides = [1, 1]} : vector<16x16xf32> to vector<16x1xf32>
    %376 = tpu.concatenate %374, %375 in 1 : vector<16x15xf32>, vector<16x1xf32> -> vector<16x16xf32>
    %c6_132 = arith.constant 6 : index
    %c0_133 = arith.constant 0 : index
    %377 = vector.load %arg4[%c6_132, %c0_133] : memref<16x16xf32, #tpu.memory_space<vmem>>, vector<1x16xf32>
    %378 = vector.broadcast %377 : vector<1x16xf32> to vector<16x16xf32>
    %379 = arith.mulf %376, %378 : vector<16x16xf32>
    %380 = vector.extract_strided_slice %349 {offsets = [0, 3], sizes = [16, 13], strides = [1, 1]} : vector<16x16xf32> to vector<16x13xf32>
    %381 = vector.extract_strided_slice %349 {offsets = [0, 0], sizes = [16, 3], strides = [1, 1]} : vector<16x16xf32> to vector<16x3xf32>
    %382 = tpu.concatenate %380, %381 in 1 : vector<16x13xf32>, vector<16x3xf32> -> vector<16x16xf32>
    %c8_134 = arith.constant 8 : index
    %c0_135 = arith.constant 0 : index
    %383 = vector.load %arg4[%c8_134, %c0_135] : memref<16x16xf32, #tpu.memory_space<vmem>>, vector<1x16xf32>
    %384 = vector.broadcast %383 : vector<1x16xf32> to vector<16x16xf32>
    %385 = arith.mulf %382, %384 : vector<16x16xf32>
    %386 = vector.extract_strided_slice %349 {offsets = [0, 4], sizes = [16, 12], strides = [1, 1]} : vector<16x16xf32> to vector<16x12xf32>
    %387 = vector.extract_strided_slice %349 {offsets = [0, 0], sizes = [16, 4], strides = [1, 1]} : vector<16x16xf32> to vector<16x4xf32>
    %388 = tpu.concatenate %386, %387 in 1 : vector<16x12xf32>, vector<16x4xf32> -> vector<16x16xf32>
    %c9_136 = arith.constant 9 : index
    %c0_137 = arith.constant 0 : index
    %389 = vector.load %arg4[%c9_136, %c0_137] : memref<16x16xf32, #tpu.memory_space<vmem>>, vector<1x16xf32>
    %390 = vector.broadcast %389 : vector<1x16xf32> to vector<16x16xf32>
    %391 = arith.mulf %388, %390 : vector<16x16xf32>
    %392 = vector.extract_strided_slice %349 {offsets = [0, 5], sizes = [16, 11], strides = [1, 1]} : vector<16x16xf32> to vector<16x11xf32>
    %393 = vector.extract_strided_slice %349 {offsets = [0, 0], sizes = [16, 5], strides = [1, 1]} : vector<16x16xf32> to vector<16x5xf32>
    %394 = tpu.concatenate %392, %393 in 1 : vector<16x11xf32>, vector<16x5xf32> -> vector<16x16xf32>
    %c10_138 = arith.constant 10 : index
    %c0_139 = arith.constant 0 : index
    %395 = vector.load %arg4[%c10_138, %c0_139] : memref<16x16xf32, #tpu.memory_space<vmem>>, vector<1x16xf32>
    %396 = vector.broadcast %395 : vector<1x16xf32> to vector<16x16xf32>
    %397 = arith.mulf %394, %396 : vector<16x16xf32>
    %398 = tpu.concatenate %355, %361, %367, %373, %349, %379, %385, %391, %397 in 0 : vector<16x16xf32>, vector<16x16xf32>, vector<16x16xf32>, vector<16x16xf32>, vector<16x16xf32>, vector<16x16xf32>, vector<16x16xf32>, vector<16x16xf32>, vector<16x16xf32> -> vector<144x16xf32>
    %c80 = arith.constant 80 : index
    %c0_140 = arith.constant 0 : index
    %399 = vector.load %arg12[%c80, %c0_140] : memref<320x288xbf16, #tpu.memory_space<vmem>>, vector<16x144xbf16>
    %400 = arith.truncf %398 : vector<144x16xf32> to vector<144x16xbf16>
    %cst_141 = arith.constant dense<0.000000e+00> : vector<16x16xf32>
    %401 = tpu.matmul %399, %400, %cst_141 {dimension_numbers = #tpu.dot_dimension_numbers<[1], [0], [0], [1], [0, 0, 1, 1], [], []>} : vector<16x144xbf16>, vector<144x16xbf16>, vector<16x16xf32> -> vector<16x16xf32>
    %c56 = arith.constant 56 : index
    %c0_142 = arith.constant 0 : index
    %402 = vector.load %arg13[%c56, %c0_142] : memref<184x1xf32, #tpu.memory_space<vmem>>, vector<16x1xf32>
    %403 = vector.broadcast %402 : vector<16x1xf32> to vector<16x16xf32>
    %404 = arith.addf %401, %403 : vector<16x16xf32>
    %405 = arith.addf %404, %292 : vector<16x16xf32>
    %cst_143 = arith.constant 0.000000e+00 : f32
    %406 = vector.broadcast %cst_143 : f32 to vector<16x16xf32>
    %407 = arith.maximumf %405, %406 : vector<16x16xf32>
    %408 = vector.extract_strided_slice %407 {offsets = [0, 11], sizes = [16, 5], strides = [1, 1]} : vector<16x16xf32> to vector<16x5xf32>
    %409 = vector.extract_strided_slice %407 {offsets = [0, 0], sizes = [16, 11], strides = [1, 1]} : vector<16x16xf32> to vector<16x11xf32>
    %410 = tpu.concatenate %408, %409 in 1 : vector<16x5xf32>, vector<16x11xf32> -> vector<16x16xf32>
    %c0_144 = arith.constant 0 : index
    %c0_145 = arith.constant 0 : index
    %411 = vector.load %arg4[%c0_144, %c0_145] : memref<16x16xf32, #tpu.memory_space<vmem>>, vector<1x16xf32>
    %412 = vector.broadcast %411 : vector<1x16xf32> to vector<16x16xf32>
    %413 = arith.mulf %410, %412 : vector<16x16xf32>
    %414 = vector.extract_strided_slice %407 {offsets = [0, 12], sizes = [16, 4], strides = [1, 1]} : vector<16x16xf32> to vector<16x4xf32>
    %415 = vector.extract_strided_slice %407 {offsets = [0, 0], sizes = [16, 12], strides = [1, 1]} : vector<16x16xf32> to vector<16x12xf32>
    %416 = tpu.concatenate %414, %415 in 1 : vector<16x4xf32>, vector<16x12xf32> -> vector<16x16xf32>
    %c1_146 = arith.constant 1 : index
    %c0_147 = arith.constant 0 : index
    %417 = vector.load %arg4[%c1_146, %c0_147] : memref<16x16xf32, #tpu.memory_space<vmem>>, vector<1x16xf32>
    %418 = vector.broadcast %417 : vector<1x16xf32> to vector<16x16xf32>
    %419 = arith.mulf %416, %418 : vector<16x16xf32>
    %420 = vector.extract_strided_slice %407 {offsets = [0, 13], sizes = [16, 3], strides = [1, 1]} : vector<16x16xf32> to vector<16x3xf32>
    %421 = vector.extract_strided_slice %407 {offsets = [0, 0], sizes = [16, 13], strides = [1, 1]} : vector<16x16xf32> to vector<16x13xf32>
    %422 = tpu.concatenate %420, %421 in 1 : vector<16x3xf32>, vector<16x13xf32> -> vector<16x16xf32>
    %c2_148 = arith.constant 2 : index
    %c0_149 = arith.constant 0 : index
    %423 = vector.load %arg4[%c2_148, %c0_149] : memref<16x16xf32, #tpu.memory_space<vmem>>, vector<1x16xf32>
    %424 = vector.broadcast %423 : vector<1x16xf32> to vector<16x16xf32>
    %425 = arith.mulf %422, %424 : vector<16x16xf32>
    %426 = vector.extract_strided_slice %407 {offsets = [0, 14], sizes = [16, 2], strides = [1, 1]} : vector<16x16xf32> to vector<16x2xf32>
    %427 = vector.extract_strided_slice %407 {offsets = [0, 0], sizes = [16, 14], strides = [1, 1]} : vector<16x16xf32> to vector<16x14xf32>
    %428 = tpu.concatenate %426, %427 in 1 : vector<16x2xf32>, vector<16x14xf32> -> vector<16x16xf32>
    %c3_150 = arith.constant 3 : index
    %c0_151 = arith.constant 0 : index
    %429 = vector.load %arg4[%c3_150, %c0_151] : memref<16x16xf32, #tpu.memory_space<vmem>>, vector<1x16xf32>
    %430 = vector.broadcast %429 : vector<1x16xf32> to vector<16x16xf32>
    %431 = arith.mulf %428, %430 : vector<16x16xf32>
    %432 = vector.extract_strided_slice %407 {offsets = [0, 15], sizes = [16, 1], strides = [1, 1]} : vector<16x16xf32> to vector<16x1xf32>
    %433 = vector.extract_strided_slice %407 {offsets = [0, 0], sizes = [16, 15], strides = [1, 1]} : vector<16x16xf32> to vector<16x15xf32>
    %434 = tpu.concatenate %432, %433 in 1 : vector<16x1xf32>, vector<16x15xf32> -> vector<16x16xf32>
    %c4_152 = arith.constant 4 : index
    %c0_153 = arith.constant 0 : index
    %435 = vector.load %arg4[%c4_152, %c0_153] : memref<16x16xf32, #tpu.memory_space<vmem>>, vector<1x16xf32>
    %436 = vector.broadcast %435 : vector<1x16xf32> to vector<16x16xf32>
    %437 = arith.mulf %434, %436 : vector<16x16xf32>
    %438 = vector.extract_strided_slice %407 {offsets = [0, 1], sizes = [16, 15], strides = [1, 1]} : vector<16x16xf32> to vector<16x15xf32>
    %439 = vector.extract_strided_slice %407 {offsets = [0, 0], sizes = [16, 1], strides = [1, 1]} : vector<16x16xf32> to vector<16x1xf32>
    %440 = tpu.concatenate %438, %439 in 1 : vector<16x15xf32>, vector<16x1xf32> -> vector<16x16xf32>
    %c6_154 = arith.constant 6 : index
    %c0_155 = arith.constant 0 : index
    %441 = vector.load %arg4[%c6_154, %c0_155] : memref<16x16xf32, #tpu.memory_space<vmem>>, vector<1x16xf32>
    %442 = vector.broadcast %441 : vector<1x16xf32> to vector<16x16xf32>
    %443 = arith.mulf %440, %442 : vector<16x16xf32>
    %444 = vector.extract_strided_slice %407 {offsets = [0, 2], sizes = [16, 14], strides = [1, 1]} : vector<16x16xf32> to vector<16x14xf32>
    %445 = vector.extract_strided_slice %407 {offsets = [0, 0], sizes = [16, 2], strides = [1, 1]} : vector<16x16xf32> to vector<16x2xf32>
    %446 = tpu.concatenate %444, %445 in 1 : vector<16x14xf32>, vector<16x2xf32> -> vector<16x16xf32>
    %c7_156 = arith.constant 7 : index
    %c0_157 = arith.constant 0 : index
    %447 = vector.load %arg4[%c7_156, %c0_157] : memref<16x16xf32, #tpu.memory_space<vmem>>, vector<1x16xf32>
    %448 = vector.broadcast %447 : vector<1x16xf32> to vector<16x16xf32>
    %449 = arith.mulf %446, %448 : vector<16x16xf32>
    %450 = vector.extract_strided_slice %407 {offsets = [0, 3], sizes = [16, 13], strides = [1, 1]} : vector<16x16xf32> to vector<16x13xf32>
    %451 = vector.extract_strided_slice %407 {offsets = [0, 0], sizes = [16, 3], strides = [1, 1]} : vector<16x16xf32> to vector<16x3xf32>
    %452 = tpu.concatenate %450, %451 in 1 : vector<16x13xf32>, vector<16x3xf32> -> vector<16x16xf32>
    %c8_158 = arith.constant 8 : index
    %c0_159 = arith.constant 0 : index
    %453 = vector.load %arg4[%c8_158, %c0_159] : memref<16x16xf32, #tpu.memory_space<vmem>>, vector<1x16xf32>
    %454 = vector.broadcast %453 : vector<1x16xf32> to vector<16x16xf32>
    %455 = arith.mulf %452, %454 : vector<16x16xf32>
    %456 = vector.extract_strided_slice %407 {offsets = [0, 4], sizes = [16, 12], strides = [1, 1]} : vector<16x16xf32> to vector<16x12xf32>
    %457 = vector.extract_strided_slice %407 {offsets = [0, 0], sizes = [16, 4], strides = [1, 1]} : vector<16x16xf32> to vector<16x4xf32>
    %458 = tpu.concatenate %456, %457 in 1 : vector<16x12xf32>, vector<16x4xf32> -> vector<16x16xf32>
    %c9_160 = arith.constant 9 : index
    %c0_161 = arith.constant 0 : index
    %459 = vector.load %arg4[%c9_160, %c0_161] : memref<16x16xf32, #tpu.memory_space<vmem>>, vector<1x16xf32>
    %460 = vector.broadcast %459 : vector<1x16xf32> to vector<16x16xf32>
    %461 = arith.mulf %458, %460 : vector<16x16xf32>
    %462 = vector.extract_strided_slice %407 {offsets = [0, 5], sizes = [16, 11], strides = [1, 1]} : vector<16x16xf32> to vector<16x11xf32>
    %463 = vector.extract_strided_slice %407 {offsets = [0, 0], sizes = [16, 5], strides = [1, 1]} : vector<16x16xf32> to vector<16x5xf32>
    %464 = tpu.concatenate %462, %463 in 1 : vector<16x11xf32>, vector<16x5xf32> -> vector<16x16xf32>
    %c10_162 = arith.constant 10 : index
    %c0_163 = arith.constant 0 : index
    %465 = vector.load %arg4[%c10_162, %c0_163] : memref<16x16xf32, #tpu.memory_space<vmem>>, vector<1x16xf32>
    %466 = vector.broadcast %465 : vector<1x16xf32> to vector<16x16xf32>
    %467 = arith.mulf %464, %466 : vector<16x16xf32>
    %468 = vector.extract_strided_slice %407 {offsets = [0, 6], sizes = [16, 10], strides = [1, 1]} : vector<16x16xf32> to vector<16x10xf32>
    %469 = vector.extract_strided_slice %407 {offsets = [0, 0], sizes = [16, 6], strides = [1, 1]} : vector<16x16xf32> to vector<16x6xf32>
    %470 = tpu.concatenate %468, %469 in 1 : vector<16x10xf32>, vector<16x6xf32> -> vector<16x16xf32>
    %c11_164 = arith.constant 11 : index
    %c0_165 = arith.constant 0 : index
    %471 = vector.load %arg4[%c11_164, %c0_165] : memref<16x16xf32, #tpu.memory_space<vmem>>, vector<1x16xf32>
    %472 = vector.broadcast %471 : vector<1x16xf32> to vector<16x16xf32>
    %473 = arith.mulf %470, %472 : vector<16x16xf32>
    %474 = vector.extract_strided_slice %407 {offsets = [0, 7], sizes = [16, 9], strides = [1, 1]} : vector<16x16xf32> to vector<16x9xf32>
    %475 = vector.extract_strided_slice %407 {offsets = [0, 0], sizes = [16, 7], strides = [1, 1]} : vector<16x16xf32> to vector<16x7xf32>
    %476 = tpu.concatenate %474, %475 in 1 : vector<16x9xf32>, vector<16x7xf32> -> vector<16x16xf32>
    %c12_166 = arith.constant 12 : index
    %c0_167 = arith.constant 0 : index
    %477 = vector.load %arg4[%c12_166, %c0_167] : memref<16x16xf32, #tpu.memory_space<vmem>>, vector<1x16xf32>
    %478 = vector.broadcast %477 : vector<1x16xf32> to vector<16x16xf32>
    %479 = arith.mulf %476, %478 : vector<16x16xf32>
    %480 = vector.extract_strided_slice %407 {offsets = [0, 8], sizes = [16, 8], strides = [1, 1]} : vector<16x16xf32> to vector<16x8xf32>
    %481 = vector.extract_strided_slice %407 {offsets = [0, 0], sizes = [16, 8], strides = [1, 1]} : vector<16x16xf32> to vector<16x8xf32>
    %482 = tpu.concatenate %480, %481 in 1 : vector<16x8xf32>, vector<16x8xf32> -> vector<16x16xf32>
    %c13_168 = arith.constant 13 : index
    %c0_169 = arith.constant 0 : index
    %483 = vector.load %arg4[%c13_168, %c0_169] : memref<16x16xf32, #tpu.memory_space<vmem>>, vector<1x16xf32>
    %484 = vector.broadcast %483 : vector<1x16xf32> to vector<16x16xf32>
    %485 = arith.mulf %482, %484 : vector<16x16xf32>
    %486 = vector.extract_strided_slice %407 {offsets = [0, 9], sizes = [16, 7], strides = [1, 1]} : vector<16x16xf32> to vector<16x7xf32>
    %487 = vector.extract_strided_slice %407 {offsets = [0, 0], sizes = [16, 9], strides = [1, 1]} : vector<16x16xf32> to vector<16x9xf32>
    %488 = tpu.concatenate %486, %487 in 1 : vector<16x7xf32>, vector<16x9xf32> -> vector<16x16xf32>
    %c14_170 = arith.constant 14 : index
    %c0_171 = arith.constant 0 : index
    %489 = vector.load %arg4[%c14_170, %c0_171] : memref<16x16xf32, #tpu.memory_space<vmem>>, vector<1x16xf32>
    %490 = vector.broadcast %489 : vector<1x16xf32> to vector<16x16xf32>
    %491 = arith.mulf %488, %490 : vector<16x16xf32>
    %492 = vector.extract_strided_slice %407 {offsets = [0, 10], sizes = [16, 6], strides = [1, 1]} : vector<16x16xf32> to vector<16x6xf32>
    %493 = vector.extract_strided_slice %407 {offsets = [0, 0], sizes = [16, 10], strides = [1, 1]} : vector<16x16xf32> to vector<16x10xf32>
    %494 = tpu.concatenate %492, %493 in 1 : vector<16x6xf32>, vector<16x10xf32> -> vector<16x16xf32>
    %c15_172 = arith.constant 15 : index
    %c0_173 = arith.constant 0 : index
    %495 = vector.load %arg4[%c15_172, %c0_173] : memref<16x16xf32, #tpu.memory_space<vmem>>, vector<1x16xf32>
    %496 = vector.broadcast %495 : vector<1x16xf32> to vector<16x16xf32>
    %497 = arith.mulf %494, %496 : vector<16x16xf32>
    %498 = tpu.concatenate %413, %419, %425, %431, %437, %407, %443, %449, %455, %461, %467, %473, %479, %485, %491, %497 in 0 : vector<16x16xf32>, vector<16x16xf32>, vector<16x16xf32>, vector<16x16xf32>, vector<16x16xf32>, vector<16x16xf32>, vector<16x16xf32>, vector<16x16xf32>, vector<16x16xf32>, vector<16x16xf32>, vector<16x16xf32>, vector<16x16xf32>, vector<16x16xf32>, vector<16x16xf32>, vector<16x16xf32>, vector<16x16xf32> -> vector<256x16xf32>
    %c96 = arith.constant 96 : index
    %c0_174 = arith.constant 0 : index
    %499 = vector.load %arg12[%c96, %c0_174] : memref<320x288xbf16, #tpu.memory_space<vmem>>, vector<32x256xbf16>
    %500 = arith.truncf %498 : vector<256x16xf32> to vector<256x16xbf16>
    %cst_175 = arith.constant dense<0.000000e+00> : vector<32x16xf32>
    %501 = tpu.matmul %499, %500, %cst_175 {dimension_numbers = #tpu.dot_dimension_numbers<[1], [0], [0], [1], [0, 0, 1, 1], [], []>} : vector<32x256xbf16>, vector<256x16xbf16>, vector<32x16xf32> -> vector<32x16xf32>
    %502 = arith.truncf %501 : vector<32x16xf32> to vector<32x16xbf16>
    %c0_176 = arith.constant 0 : index
    %c0_177 = arith.constant 0 : index
    %503 = vector.load %arg8[%c0_176, %c0_177] : memref<16x4xbf16, #tpu.memory_space<vmem>>, vector<16x4xbf16>
    %cst_178 = arith.constant dense<0.000000e+00> : vector<32x4xf32>
    %504 = tpu.matmul %502, %503, %cst_178 {dimension_numbers = #tpu.dot_dimension_numbers<[1], [0], [0], [1], [0, 0, 1, 1], [], []>} : vector<32x16xbf16>, vector<16x4xbf16>, vector<32x4xf32> -> vector<32x4xf32>
    %c72 = arith.constant 72 : index
    %c0_179 = arith.constant 0 : index
    %505 = vector.load %arg13[%c72, %c0_179] : memref<184x1xf32, #tpu.memory_space<vmem>>, vector<32x1xf32>
    %506 = vector.broadcast %505 : vector<32x1xf32> to vector<32x4xf32>
    %507 = arith.addf %504, %506 : vector<32x4xf32>
    %cst_180 = arith.constant 0.000000e+00 : f32
    %508 = vector.broadcast %cst_180 : f32 to vector<32x4xf32>
    %509 = arith.maximumf %507, %508 : vector<32x4xf32>
    %510 = vector.extract_strided_slice %509 {offsets = [0, 1], sizes = [32, 3], strides = [1, 1]} : vector<32x4xf32> to vector<32x3xf32>
    %511 = vector.extract_strided_slice %509 {offsets = [0, 0], sizes = [32, 1], strides = [1, 1]} : vector<32x4xf32> to vector<32x1xf32>
    %512 = tpu.concatenate %510, %511 in 1 : vector<32x3xf32>, vector<32x1xf32> -> vector<32x4xf32>
    %c0_181 = arith.constant 0 : index
    %c0_182 = arith.constant 0 : index
    %513 = vector.load %arg5[%c0_181, %c0_182] : memref<16x4xf32, #tpu.memory_space<vmem>>, vector<1x4xf32>
    %514 = vector.broadcast %513 : vector<1x4xf32> to vector<32x4xf32>
    %515 = arith.mulf %512, %514 : vector<32x4xf32>
    %516 = vector.extract_strided_slice %509 {offsets = [0, 2], sizes = [32, 2], strides = [1, 1]} : vector<32x4xf32> to vector<32x2xf32>
    %517 = vector.extract_strided_slice %509 {offsets = [0, 0], sizes = [32, 2], strides = [1, 1]} : vector<32x4xf32> to vector<32x2xf32>
    %518 = tpu.concatenate %516, %517 in 1 : vector<32x2xf32>, vector<32x2xf32> -> vector<32x4xf32>
    %c1_183 = arith.constant 1 : index
    %c0_184 = arith.constant 0 : index
    %519 = vector.load %arg5[%c1_183, %c0_184] : memref<16x4xf32, #tpu.memory_space<vmem>>, vector<1x4xf32>
    %520 = vector.broadcast %519 : vector<1x4xf32> to vector<32x4xf32>
    %521 = arith.mulf %518, %520 : vector<32x4xf32>
    %522 = vector.extract_strided_slice %509 {offsets = [0, 3], sizes = [32, 1], strides = [1, 1]} : vector<32x4xf32> to vector<32x1xf32>
    %523 = vector.extract_strided_slice %509 {offsets = [0, 0], sizes = [32, 3], strides = [1, 1]} : vector<32x4xf32> to vector<32x3xf32>
    %524 = tpu.concatenate %522, %523 in 1 : vector<32x1xf32>, vector<32x3xf32> -> vector<32x4xf32>
    %c2_185 = arith.constant 2 : index
    %c0_186 = arith.constant 0 : index
    %525 = vector.load %arg5[%c2_185, %c0_186] : memref<16x4xf32, #tpu.memory_space<vmem>>, vector<1x4xf32>
    %526 = vector.broadcast %525 : vector<1x4xf32> to vector<32x4xf32>
    %527 = arith.mulf %524, %526 : vector<32x4xf32>
    %528 = vector.extract_strided_slice %509 {offsets = [0, 3], sizes = [32, 1], strides = [1, 1]} : vector<32x4xf32> to vector<32x1xf32>
    %529 = vector.extract_strided_slice %509 {offsets = [0, 0], sizes = [32, 3], strides = [1, 1]} : vector<32x4xf32> to vector<32x3xf32>
    %530 = tpu.concatenate %528, %529 in 1 : vector<32x1xf32>, vector<32x3xf32> -> vector<32x4xf32>
    %c4_187 = arith.constant 4 : index
    %c0_188 = arith.constant 0 : index
    %531 = vector.load %arg5[%c4_187, %c0_188] : memref<16x4xf32, #tpu.memory_space<vmem>>, vector<1x4xf32>
    %532 = vector.broadcast %531 : vector<1x4xf32> to vector<32x4xf32>
    %533 = arith.mulf %530, %532 : vector<32x4xf32>
    %534 = vector.extract_strided_slice %509 {offsets = [0, 1], sizes = [32, 3], strides = [1, 1]} : vector<32x4xf32> to vector<32x3xf32>
    %535 = vector.extract_strided_slice %509 {offsets = [0, 0], sizes = [32, 1], strides = [1, 1]} : vector<32x4xf32> to vector<32x1xf32>
    %536 = tpu.concatenate %534, %535 in 1 : vector<32x3xf32>, vector<32x1xf32> -> vector<32x4xf32>
    %c6_189 = arith.constant 6 : index
    %c0_190 = arith.constant 0 : index
    %537 = vector.load %arg5[%c6_189, %c0_190] : memref<16x4xf32, #tpu.memory_space<vmem>>, vector<1x4xf32>
    %538 = vector.broadcast %537 : vector<1x4xf32> to vector<32x4xf32>
    %539 = arith.mulf %536, %538 : vector<32x4xf32>
    %540 = vector.extract_strided_slice %509 {offsets = [0, 1], sizes = [32, 3], strides = [1, 1]} : vector<32x4xf32> to vector<32x3xf32>
    %541 = vector.extract_strided_slice %509 {offsets = [0, 0], sizes = [32, 1], strides = [1, 1]} : vector<32x4xf32> to vector<32x1xf32>
    %542 = tpu.concatenate %540, %541 in 1 : vector<32x3xf32>, vector<32x1xf32> -> vector<32x4xf32>
    %c8_191 = arith.constant 8 : index
    %c0_192 = arith.constant 0 : index
    %543 = vector.load %arg5[%c8_191, %c0_192] : memref<16x4xf32, #tpu.memory_space<vmem>>, vector<1x4xf32>
    %544 = vector.broadcast %543 : vector<1x4xf32> to vector<32x4xf32>
    %545 = arith.mulf %542, %544 : vector<32x4xf32>
    %546 = vector.extract_strided_slice %509 {offsets = [0, 2], sizes = [32, 2], strides = [1, 1]} : vector<32x4xf32> to vector<32x2xf32>
    %547 = vector.extract_strided_slice %509 {offsets = [0, 0], sizes = [32, 2], strides = [1, 1]} : vector<32x4xf32> to vector<32x2xf32>
    %548 = tpu.concatenate %546, %547 in 1 : vector<32x2xf32>, vector<32x2xf32> -> vector<32x4xf32>
    %c9_193 = arith.constant 9 : index
    %c0_194 = arith.constant 0 : index
    %549 = vector.load %arg5[%c9_193, %c0_194] : memref<16x4xf32, #tpu.memory_space<vmem>>, vector<1x4xf32>
    %550 = vector.broadcast %549 : vector<1x4xf32> to vector<32x4xf32>
    %551 = arith.mulf %548, %550 : vector<32x4xf32>
    %552 = vector.extract_strided_slice %509 {offsets = [0, 3], sizes = [32, 1], strides = [1, 1]} : vector<32x4xf32> to vector<32x1xf32>
    %553 = vector.extract_strided_slice %509 {offsets = [0, 0], sizes = [32, 3], strides = [1, 1]} : vector<32x4xf32> to vector<32x3xf32>
    %554 = tpu.concatenate %552, %553 in 1 : vector<32x1xf32>, vector<32x3xf32> -> vector<32x4xf32>
    %c10_195 = arith.constant 10 : index
    %c0_196 = arith.constant 0 : index
    %555 = vector.load %arg5[%c10_195, %c0_196] : memref<16x4xf32, #tpu.memory_space<vmem>>, vector<1x4xf32>
    %556 = vector.broadcast %555 : vector<1x4xf32> to vector<32x4xf32>
    %557 = arith.mulf %554, %556 : vector<32x4xf32>
    %558 = tpu.concatenate %515, %521, %527, %533, %509, %539, %545, %551, %557 in 0 : vector<32x4xf32>, vector<32x4xf32>, vector<32x4xf32>, vector<32x4xf32>, vector<32x4xf32>, vector<32x4xf32>, vector<32x4xf32>, vector<32x4xf32>, vector<32x4xf32> -> vector<288x4xf32>
    %c128 = arith.constant 128 : index
    %c0_197 = arith.constant 0 : index
    %559 = vector.load %arg12[%c128, %c0_197] : memref<320x288xbf16, #tpu.memory_space<vmem>>, vector<64x288xbf16>
    %560 = arith.truncf %558 : vector<288x4xf32> to vector<288x4xbf16>
    %cst_198 = arith.constant dense<0.000000e+00> : vector<64x4xf32>
    %561 = tpu.matmul %559, %560, %cst_198 {dimension_numbers = #tpu.dot_dimension_numbers<[1], [0], [0], [1], [0, 0, 1, 1], [], []>} : vector<64x288xbf16>, vector<288x4xbf16>, vector<64x4xf32> -> vector<64x4xf32>
    %562 = arith.truncf %561 : vector<64x4xf32> to vector<64x4xbf16>
    %c0_199 = arith.constant 0 : index
    %c0_200 = arith.constant 0 : index
    %563 = vector.load %arg9[%c0_199, %c0_200] : memref<4x16xbf16, #tpu.memory_space<vmem>>, vector<4x16xbf16>
    %cst_201 = arith.constant dense<0.000000e+00> : vector<64x16xf32>
    %564 = tpu.matmul %562, %563, %cst_201 {dimension_numbers = #tpu.dot_dimension_numbers<[1], [0], [0], [1], [0, 0, 1, 1], [], []>} : vector<64x4xbf16>, vector<4x16xbf16>, vector<64x16xf32> -> vector<64x16xf32>
    %565 = vector.extract_strided_slice %564 {offsets = [0, 0], sizes = [16, 16], strides = [1, 1]} : vector<64x16xf32> to vector<16x16xf32>
    %566 = vector.extract_strided_slice %564 {offsets = [16, 0], sizes = [16, 16], strides = [1, 1]} : vector<64x16xf32> to vector<16x16xf32>
    %567 = vector.extract_strided_slice %566 {offsets = [0, 15], sizes = [16, 1], strides = [1, 1]} : vector<16x16xf32> to vector<16x1xf32>
    %568 = vector.extract_strided_slice %566 {offsets = [0, 0], sizes = [16, 15], strides = [1, 1]} : vector<16x16xf32> to vector<16x15xf32>
    %569 = tpu.concatenate %567, %568 in 1 : vector<16x1xf32>, vector<16x15xf32> -> vector<16x16xf32>
    %570 = arith.addf %565, %569 : vector<16x16xf32>
    %571 = vector.extract_strided_slice %564 {offsets = [32, 0], sizes = [16, 16], strides = [1, 1]} : vector<64x16xf32> to vector<16x16xf32>
    %572 = vector.extract_strided_slice %571 {offsets = [0, 12], sizes = [16, 4], strides = [1, 1]} : vector<16x16xf32> to vector<16x4xf32>
    %573 = vector.extract_strided_slice %571 {offsets = [0, 0], sizes = [16, 12], strides = [1, 1]} : vector<16x16xf32> to vector<16x12xf32>
    %574 = tpu.concatenate %572, %573 in 1 : vector<16x4xf32>, vector<16x12xf32> -> vector<16x16xf32>
    %575 = arith.addf %570, %574 : vector<16x16xf32>
    %576 = vector.extract_strided_slice %564 {offsets = [48, 0], sizes = [16, 16], strides = [1, 1]} : vector<64x16xf32> to vector<16x16xf32>
    %577 = vector.extract_strided_slice %576 {offsets = [0, 11], sizes = [16, 5], strides = [1, 1]} : vector<16x16xf32> to vector<16x5xf32>
    %578 = vector.extract_strided_slice %576 {offsets = [0, 0], sizes = [16, 11], strides = [1, 1]} : vector<16x16xf32> to vector<16x11xf32>
    %579 = tpu.concatenate %577, %578 in 1 : vector<16x5xf32>, vector<16x11xf32> -> vector<16x16xf32>
    %580 = arith.addf %575, %579 : vector<16x16xf32>
    %c104 = arith.constant 104 : index
    %c0_202 = arith.constant 0 : index
    %581 = vector.load %arg13[%c104, %c0_202] : memref<184x1xf32, #tpu.memory_space<vmem>>, vector<16x1xf32>
    %582 = vector.broadcast %581 : vector<16x1xf32> to vector<16x16xf32>
    %583 = arith.addf %580, %582 : vector<16x16xf32>
    %cst_203 = arith.constant 0.000000e+00 : f32
    %584 = vector.broadcast %cst_203 : f32 to vector<16x16xf32>
    %585 = arith.maximumf %583, %584 : vector<16x16xf32>
    %586 = arith.addf %585, %407 : vector<16x16xf32>
    %587 = vector.extract_strided_slice %586 {offsets = [0, 11], sizes = [16, 5], strides = [1, 1]} : vector<16x16xf32> to vector<16x5xf32>
    %588 = vector.extract_strided_slice %586 {offsets = [0, 0], sizes = [16, 11], strides = [1, 1]} : vector<16x16xf32> to vector<16x11xf32>
    %589 = tpu.concatenate %587, %588 in 1 : vector<16x5xf32>, vector<16x11xf32> -> vector<16x16xf32>
    %c0_204 = arith.constant 0 : index
    %c0_205 = arith.constant 0 : index
    %590 = vector.load %arg4[%c0_204, %c0_205] : memref<16x16xf32, #tpu.memory_space<vmem>>, vector<1x16xf32>
    %591 = vector.broadcast %590 : vector<1x16xf32> to vector<16x16xf32>
    %592 = arith.mulf %589, %591 : vector<16x16xf32>
    %593 = vector.extract_strided_slice %586 {offsets = [0, 12], sizes = [16, 4], strides = [1, 1]} : vector<16x16xf32> to vector<16x4xf32>
    %594 = vector.extract_strided_slice %586 {offsets = [0, 0], sizes = [16, 12], strides = [1, 1]} : vector<16x16xf32> to vector<16x12xf32>
    %595 = tpu.concatenate %593, %594 in 1 : vector<16x4xf32>, vector<16x12xf32> -> vector<16x16xf32>
    %c1_206 = arith.constant 1 : index
    %c0_207 = arith.constant 0 : index
    %596 = vector.load %arg4[%c1_206, %c0_207] : memref<16x16xf32, #tpu.memory_space<vmem>>, vector<1x16xf32>
    %597 = vector.broadcast %596 : vector<1x16xf32> to vector<16x16xf32>
    %598 = arith.mulf %595, %597 : vector<16x16xf32>
    %599 = vector.extract_strided_slice %586 {offsets = [0, 13], sizes = [16, 3], strides = [1, 1]} : vector<16x16xf32> to vector<16x3xf32>
    %600 = vector.extract_strided_slice %586 {offsets = [0, 0], sizes = [16, 13], strides = [1, 1]} : vector<16x16xf32> to vector<16x13xf32>
    %601 = tpu.concatenate %599, %600 in 1 : vector<16x3xf32>, vector<16x13xf32> -> vector<16x16xf32>
    %c2_208 = arith.constant 2 : index
    %c0_209 = arith.constant 0 : index
    %602 = vector.load %arg4[%c2_208, %c0_209] : memref<16x16xf32, #tpu.memory_space<vmem>>, vector<1x16xf32>
    %603 = vector.broadcast %602 : vector<1x16xf32> to vector<16x16xf32>
    %604 = arith.mulf %601, %603 : vector<16x16xf32>
    %605 = vector.extract_strided_slice %586 {offsets = [0, 15], sizes = [16, 1], strides = [1, 1]} : vector<16x16xf32> to vector<16x1xf32>
    %606 = vector.extract_strided_slice %586 {offsets = [0, 0], sizes = [16, 15], strides = [1, 1]} : vector<16x16xf32> to vector<16x15xf32>
    %607 = tpu.concatenate %605, %606 in 1 : vector<16x1xf32>, vector<16x15xf32> -> vector<16x16xf32>
    %c4_210 = arith.constant 4 : index
    %c0_211 = arith.constant 0 : index
    %608 = vector.load %arg4[%c4_210, %c0_211] : memref<16x16xf32, #tpu.memory_space<vmem>>, vector<1x16xf32>
    %609 = vector.broadcast %608 : vector<1x16xf32> to vector<16x16xf32>
    %610 = arith.mulf %607, %609 : vector<16x16xf32>
    %611 = vector.extract_strided_slice %586 {offsets = [0, 1], sizes = [16, 15], strides = [1, 1]} : vector<16x16xf32> to vector<16x15xf32>
    %612 = vector.extract_strided_slice %586 {offsets = [0, 0], sizes = [16, 1], strides = [1, 1]} : vector<16x16xf32> to vector<16x1xf32>
    %613 = tpu.concatenate %611, %612 in 1 : vector<16x15xf32>, vector<16x1xf32> -> vector<16x16xf32>
    %c6_212 = arith.constant 6 : index
    %c0_213 = arith.constant 0 : index
    %614 = vector.load %arg4[%c6_212, %c0_213] : memref<16x16xf32, #tpu.memory_space<vmem>>, vector<1x16xf32>
    %615 = vector.broadcast %614 : vector<1x16xf32> to vector<16x16xf32>
    %616 = arith.mulf %613, %615 : vector<16x16xf32>
    %617 = vector.extract_strided_slice %586 {offsets = [0, 3], sizes = [16, 13], strides = [1, 1]} : vector<16x16xf32> to vector<16x13xf32>
    %618 = vector.extract_strided_slice %586 {offsets = [0, 0], sizes = [16, 3], strides = [1, 1]} : vector<16x16xf32> to vector<16x3xf32>
    %619 = tpu.concatenate %617, %618 in 1 : vector<16x13xf32>, vector<16x3xf32> -> vector<16x16xf32>
    %c8_214 = arith.constant 8 : index
    %c0_215 = arith.constant 0 : index
    %620 = vector.load %arg4[%c8_214, %c0_215] : memref<16x16xf32, #tpu.memory_space<vmem>>, vector<1x16xf32>
    %621 = vector.broadcast %620 : vector<1x16xf32> to vector<16x16xf32>
    %622 = arith.mulf %619, %621 : vector<16x16xf32>
    %623 = vector.extract_strided_slice %586 {offsets = [0, 4], sizes = [16, 12], strides = [1, 1]} : vector<16x16xf32> to vector<16x12xf32>
    %624 = vector.extract_strided_slice %586 {offsets = [0, 0], sizes = [16, 4], strides = [1, 1]} : vector<16x16xf32> to vector<16x4xf32>
    %625 = tpu.concatenate %623, %624 in 1 : vector<16x12xf32>, vector<16x4xf32> -> vector<16x16xf32>
    %c9_216 = arith.constant 9 : index
    %c0_217 = arith.constant 0 : index
    %626 = vector.load %arg4[%c9_216, %c0_217] : memref<16x16xf32, #tpu.memory_space<vmem>>, vector<1x16xf32>
    %627 = vector.broadcast %626 : vector<1x16xf32> to vector<16x16xf32>
    %628 = arith.mulf %625, %627 : vector<16x16xf32>
    %629 = vector.extract_strided_slice %586 {offsets = [0, 5], sizes = [16, 11], strides = [1, 1]} : vector<16x16xf32> to vector<16x11xf32>
    %630 = vector.extract_strided_slice %586 {offsets = [0, 0], sizes = [16, 5], strides = [1, 1]} : vector<16x16xf32> to vector<16x5xf32>
    %631 = tpu.concatenate %629, %630 in 1 : vector<16x11xf32>, vector<16x5xf32> -> vector<16x16xf32>
    %c10_218 = arith.constant 10 : index
    %c0_219 = arith.constant 0 : index
    %632 = vector.load %arg4[%c10_218, %c0_219] : memref<16x16xf32, #tpu.memory_space<vmem>>, vector<1x16xf32>
    %633 = vector.broadcast %632 : vector<1x16xf32> to vector<16x16xf32>
    %634 = arith.mulf %631, %633 : vector<16x16xf32>
    %635 = tpu.concatenate %592, %598, %604, %610, %586, %616, %622, %628, %634 in 0 : vector<16x16xf32>, vector<16x16xf32>, vector<16x16xf32>, vector<16x16xf32>, vector<16x16xf32>, vector<16x16xf32>, vector<16x16xf32>, vector<16x16xf32>, vector<16x16xf32> -> vector<144x16xf32>
    %c192 = arith.constant 192 : index
    %c0_220 = arith.constant 0 : index
    %636 = vector.load %arg12[%c192, %c0_220] : memref<320x288xbf16, #tpu.memory_space<vmem>>, vector<16x144xbf16>
    %637 = arith.truncf %635 : vector<144x16xf32> to vector<144x16xbf16>
    %cst_221 = arith.constant dense<0.000000e+00> : vector<16x16xf32>
    %638 = tpu.matmul %636, %637, %cst_221 {dimension_numbers = #tpu.dot_dimension_numbers<[1], [0], [0], [1], [0, 0, 1, 1], [], []>} : vector<16x144xbf16>, vector<144x16xbf16>, vector<16x16xf32> -> vector<16x16xf32>
    %c120 = arith.constant 120 : index
    %c0_222 = arith.constant 0 : index
    %639 = vector.load %arg13[%c120, %c0_222] : memref<184x1xf32, #tpu.memory_space<vmem>>, vector<16x1xf32>
    %640 = vector.broadcast %639 : vector<16x1xf32> to vector<16x16xf32>
    %641 = arith.addf %638, %640 : vector<16x16xf32>
    %cst_223 = arith.constant 0.000000e+00 : f32
    %642 = vector.broadcast %cst_223 : f32 to vector<16x16xf32>
    %643 = arith.maximumf %641, %642 : vector<16x16xf32>
    %644 = vector.extract_strided_slice %643 {offsets = [0, 11], sizes = [16, 5], strides = [1, 1]} : vector<16x16xf32> to vector<16x5xf32>
    %645 = vector.extract_strided_slice %643 {offsets = [0, 0], sizes = [16, 11], strides = [1, 1]} : vector<16x16xf32> to vector<16x11xf32>
    %646 = tpu.concatenate %644, %645 in 1 : vector<16x5xf32>, vector<16x11xf32> -> vector<16x16xf32>
    %c0_224 = arith.constant 0 : index
    %c0_225 = arith.constant 0 : index
    %647 = vector.load %arg4[%c0_224, %c0_225] : memref<16x16xf32, #tpu.memory_space<vmem>>, vector<1x16xf32>
    %648 = vector.broadcast %647 : vector<1x16xf32> to vector<16x16xf32>
    %649 = arith.mulf %646, %648 : vector<16x16xf32>
    %650 = vector.extract_strided_slice %643 {offsets = [0, 12], sizes = [16, 4], strides = [1, 1]} : vector<16x16xf32> to vector<16x4xf32>
    %651 = vector.extract_strided_slice %643 {offsets = [0, 0], sizes = [16, 12], strides = [1, 1]} : vector<16x16xf32> to vector<16x12xf32>
    %652 = tpu.concatenate %650, %651 in 1 : vector<16x4xf32>, vector<16x12xf32> -> vector<16x16xf32>
    %c1_226 = arith.constant 1 : index
    %c0_227 = arith.constant 0 : index
    %653 = vector.load %arg4[%c1_226, %c0_227] : memref<16x16xf32, #tpu.memory_space<vmem>>, vector<1x16xf32>
    %654 = vector.broadcast %653 : vector<1x16xf32> to vector<16x16xf32>
    %655 = arith.mulf %652, %654 : vector<16x16xf32>
    %656 = vector.extract_strided_slice %643 {offsets = [0, 13], sizes = [16, 3], strides = [1, 1]} : vector<16x16xf32> to vector<16x3xf32>
    %657 = vector.extract_strided_slice %643 {offsets = [0, 0], sizes = [16, 13], strides = [1, 1]} : vector<16x16xf32> to vector<16x13xf32>
    %658 = tpu.concatenate %656, %657 in 1 : vector<16x3xf32>, vector<16x13xf32> -> vector<16x16xf32>
    %c2_228 = arith.constant 2 : index
    %c0_229 = arith.constant 0 : index
    %659 = vector.load %arg4[%c2_228, %c0_229] : memref<16x16xf32, #tpu.memory_space<vmem>>, vector<1x16xf32>
    %660 = vector.broadcast %659 : vector<1x16xf32> to vector<16x16xf32>
    %661 = arith.mulf %658, %660 : vector<16x16xf32>
    %662 = vector.extract_strided_slice %643 {offsets = [0, 15], sizes = [16, 1], strides = [1, 1]} : vector<16x16xf32> to vector<16x1xf32>
    %663 = vector.extract_strided_slice %643 {offsets = [0, 0], sizes = [16, 15], strides = [1, 1]} : vector<16x16xf32> to vector<16x15xf32>
    %664 = tpu.concatenate %662, %663 in 1 : vector<16x1xf32>, vector<16x15xf32> -> vector<16x16xf32>
    %c4_230 = arith.constant 4 : index
    %c0_231 = arith.constant 0 : index
    %665 = vector.load %arg4[%c4_230, %c0_231] : memref<16x16xf32, #tpu.memory_space<vmem>>, vector<1x16xf32>
    %666 = vector.broadcast %665 : vector<1x16xf32> to vector<16x16xf32>
    %667 = arith.mulf %664, %666 : vector<16x16xf32>
    %668 = vector.extract_strided_slice %643 {offsets = [0, 1], sizes = [16, 15], strides = [1, 1]} : vector<16x16xf32> to vector<16x15xf32>
    %669 = vector.extract_strided_slice %643 {offsets = [0, 0], sizes = [16, 1], strides = [1, 1]} : vector<16x16xf32> to vector<16x1xf32>
    %670 = tpu.concatenate %668, %669 in 1 : vector<16x15xf32>, vector<16x1xf32> -> vector<16x16xf32>
    %c6_232 = arith.constant 6 : index
    %c0_233 = arith.constant 0 : index
    %671 = vector.load %arg4[%c6_232, %c0_233] : memref<16x16xf32, #tpu.memory_space<vmem>>, vector<1x16xf32>
    %672 = vector.broadcast %671 : vector<1x16xf32> to vector<16x16xf32>
    %673 = arith.mulf %670, %672 : vector<16x16xf32>
    %674 = vector.extract_strided_slice %643 {offsets = [0, 3], sizes = [16, 13], strides = [1, 1]} : vector<16x16xf32> to vector<16x13xf32>
    %675 = vector.extract_strided_slice %643 {offsets = [0, 0], sizes = [16, 3], strides = [1, 1]} : vector<16x16xf32> to vector<16x3xf32>
    %676 = tpu.concatenate %674, %675 in 1 : vector<16x13xf32>, vector<16x3xf32> -> vector<16x16xf32>
    %c8_234 = arith.constant 8 : index
    %c0_235 = arith.constant 0 : index
    %677 = vector.load %arg4[%c8_234, %c0_235] : memref<16x16xf32, #tpu.memory_space<vmem>>, vector<1x16xf32>
    %678 = vector.broadcast %677 : vector<1x16xf32> to vector<16x16xf32>
    %679 = arith.mulf %676, %678 : vector<16x16xf32>
    %680 = vector.extract_strided_slice %643 {offsets = [0, 4], sizes = [16, 12], strides = [1, 1]} : vector<16x16xf32> to vector<16x12xf32>
    %681 = vector.extract_strided_slice %643 {offsets = [0, 0], sizes = [16, 4], strides = [1, 1]} : vector<16x16xf32> to vector<16x4xf32>
    %682 = tpu.concatenate %680, %681 in 1 : vector<16x12xf32>, vector<16x4xf32> -> vector<16x16xf32>
    %c9_236 = arith.constant 9 : index
    %c0_237 = arith.constant 0 : index
    %683 = vector.load %arg4[%c9_236, %c0_237] : memref<16x16xf32, #tpu.memory_space<vmem>>, vector<1x16xf32>
    %684 = vector.broadcast %683 : vector<1x16xf32> to vector<16x16xf32>
    %685 = arith.mulf %682, %684 : vector<16x16xf32>
    %686 = vector.extract_strided_slice %643 {offsets = [0, 5], sizes = [16, 11], strides = [1, 1]} : vector<16x16xf32> to vector<16x11xf32>
    %687 = vector.extract_strided_slice %643 {offsets = [0, 0], sizes = [16, 5], strides = [1, 1]} : vector<16x16xf32> to vector<16x5xf32>
    %688 = tpu.concatenate %686, %687 in 1 : vector<16x11xf32>, vector<16x5xf32> -> vector<16x16xf32>
    %c10_238 = arith.constant 10 : index
    %c0_239 = arith.constant 0 : index
    %689 = vector.load %arg4[%c10_238, %c0_239] : memref<16x16xf32, #tpu.memory_space<vmem>>, vector<1x16xf32>
    %690 = vector.broadcast %689 : vector<1x16xf32> to vector<16x16xf32>
    %691 = arith.mulf %688, %690 : vector<16x16xf32>
    %692 = tpu.concatenate %649, %655, %661, %667, %643, %673, %679, %685, %691 in 0 : vector<16x16xf32>, vector<16x16xf32>, vector<16x16xf32>, vector<16x16xf32>, vector<16x16xf32>, vector<16x16xf32>, vector<16x16xf32>, vector<16x16xf32>, vector<16x16xf32> -> vector<144x16xf32>
    %c208 = arith.constant 208 : index
    %c0_240 = arith.constant 0 : index
    %693 = vector.load %arg12[%c208, %c0_240] : memref<320x288xbf16, #tpu.memory_space<vmem>>, vector<16x144xbf16>
    %694 = arith.truncf %692 : vector<144x16xf32> to vector<144x16xbf16>
    %cst_241 = arith.constant dense<0.000000e+00> : vector<16x16xf32>
    %695 = tpu.matmul %693, %694, %cst_241 {dimension_numbers = #tpu.dot_dimension_numbers<[1], [0], [0], [1], [0, 0, 1, 1], [], []>} : vector<16x144xbf16>, vector<144x16xbf16>, vector<16x16xf32> -> vector<16x16xf32>
    %c136 = arith.constant 136 : index
    %c0_242 = arith.constant 0 : index
    %696 = vector.load %arg13[%c136, %c0_242] : memref<184x1xf32, #tpu.memory_space<vmem>>, vector<16x1xf32>
    %697 = vector.broadcast %696 : vector<16x1xf32> to vector<16x16xf32>
    %698 = arith.addf %695, %697 : vector<16x16xf32>
    %699 = arith.addf %698, %586 : vector<16x16xf32>
    %cst_243 = arith.constant 0.000000e+00 : f32
    %700 = vector.broadcast %cst_243 : f32 to vector<16x16xf32>
    %701 = arith.maximumf %699, %700 : vector<16x16xf32>
    %702 = arith.addf %701, %292 : vector<16x16xf32>
    %703 = vector.extract_strided_slice %702 {offsets = [0, 11], sizes = [16, 5], strides = [1, 1]} : vector<16x16xf32> to vector<16x5xf32>
    %704 = vector.extract_strided_slice %702 {offsets = [0, 0], sizes = [16, 11], strides = [1, 1]} : vector<16x16xf32> to vector<16x11xf32>
    %705 = tpu.concatenate %703, %704 in 1 : vector<16x5xf32>, vector<16x11xf32> -> vector<16x16xf32>
    %c0_244 = arith.constant 0 : index
    %c0_245 = arith.constant 0 : index
    %706 = vector.load %arg4[%c0_244, %c0_245] : memref<16x16xf32, #tpu.memory_space<vmem>>, vector<1x16xf32>
    %707 = vector.broadcast %706 : vector<1x16xf32> to vector<16x16xf32>
    %708 = arith.mulf %705, %707 : vector<16x16xf32>
    %709 = vector.extract_strided_slice %702 {offsets = [0, 12], sizes = [16, 4], strides = [1, 1]} : vector<16x16xf32> to vector<16x4xf32>
    %710 = vector.extract_strided_slice %702 {offsets = [0, 0], sizes = [16, 12], strides = [1, 1]} : vector<16x16xf32> to vector<16x12xf32>
    %711 = tpu.concatenate %709, %710 in 1 : vector<16x4xf32>, vector<16x12xf32> -> vector<16x16xf32>
    %c1_246 = arith.constant 1 : index
    %c0_247 = arith.constant 0 : index
    %712 = vector.load %arg4[%c1_246, %c0_247] : memref<16x16xf32, #tpu.memory_space<vmem>>, vector<1x16xf32>
    %713 = vector.broadcast %712 : vector<1x16xf32> to vector<16x16xf32>
    %714 = arith.mulf %711, %713 : vector<16x16xf32>
    %715 = vector.extract_strided_slice %702 {offsets = [0, 13], sizes = [16, 3], strides = [1, 1]} : vector<16x16xf32> to vector<16x3xf32>
    %716 = vector.extract_strided_slice %702 {offsets = [0, 0], sizes = [16, 13], strides = [1, 1]} : vector<16x16xf32> to vector<16x13xf32>
    %717 = tpu.concatenate %715, %716 in 1 : vector<16x3xf32>, vector<16x13xf32> -> vector<16x16xf32>
    %c2_248 = arith.constant 2 : index
    %c0_249 = arith.constant 0 : index
    %718 = vector.load %arg4[%c2_248, %c0_249] : memref<16x16xf32, #tpu.memory_space<vmem>>, vector<1x16xf32>
    %719 = vector.broadcast %718 : vector<1x16xf32> to vector<16x16xf32>
    %720 = arith.mulf %717, %719 : vector<16x16xf32>
    %721 = vector.extract_strided_slice %702 {offsets = [0, 15], sizes = [16, 1], strides = [1, 1]} : vector<16x16xf32> to vector<16x1xf32>
    %722 = vector.extract_strided_slice %702 {offsets = [0, 0], sizes = [16, 15], strides = [1, 1]} : vector<16x16xf32> to vector<16x15xf32>
    %723 = tpu.concatenate %721, %722 in 1 : vector<16x1xf32>, vector<16x15xf32> -> vector<16x16xf32>
    %c4_250 = arith.constant 4 : index
    %c0_251 = arith.constant 0 : index
    %724 = vector.load %arg4[%c4_250, %c0_251] : memref<16x16xf32, #tpu.memory_space<vmem>>, vector<1x16xf32>
    %725 = vector.broadcast %724 : vector<1x16xf32> to vector<16x16xf32>
    %726 = arith.mulf %723, %725 : vector<16x16xf32>
    %727 = vector.extract_strided_slice %702 {offsets = [0, 1], sizes = [16, 15], strides = [1, 1]} : vector<16x16xf32> to vector<16x15xf32>
    %728 = vector.extract_strided_slice %702 {offsets = [0, 0], sizes = [16, 1], strides = [1, 1]} : vector<16x16xf32> to vector<16x1xf32>
    %729 = tpu.concatenate %727, %728 in 1 : vector<16x15xf32>, vector<16x1xf32> -> vector<16x16xf32>
    %c6_252 = arith.constant 6 : index
    %c0_253 = arith.constant 0 : index
    %730 = vector.load %arg4[%c6_252, %c0_253] : memref<16x16xf32, #tpu.memory_space<vmem>>, vector<1x16xf32>
    %731 = vector.broadcast %730 : vector<1x16xf32> to vector<16x16xf32>
    %732 = arith.mulf %729, %731 : vector<16x16xf32>
    %733 = vector.extract_strided_slice %702 {offsets = [0, 3], sizes = [16, 13], strides = [1, 1]} : vector<16x16xf32> to vector<16x13xf32>
    %734 = vector.extract_strided_slice %702 {offsets = [0, 0], sizes = [16, 3], strides = [1, 1]} : vector<16x16xf32> to vector<16x3xf32>
    %735 = tpu.concatenate %733, %734 in 1 : vector<16x13xf32>, vector<16x3xf32> -> vector<16x16xf32>
    %c8_254 = arith.constant 8 : index
    %c0_255 = arith.constant 0 : index
    %736 = vector.load %arg4[%c8_254, %c0_255] : memref<16x16xf32, #tpu.memory_space<vmem>>, vector<1x16xf32>
    %737 = vector.broadcast %736 : vector<1x16xf32> to vector<16x16xf32>
    %738 = arith.mulf %735, %737 : vector<16x16xf32>
    %739 = vector.extract_strided_slice %702 {offsets = [0, 4], sizes = [16, 12], strides = [1, 1]} : vector<16x16xf32> to vector<16x12xf32>
    %740 = vector.extract_strided_slice %702 {offsets = [0, 0], sizes = [16, 4], strides = [1, 1]} : vector<16x16xf32> to vector<16x4xf32>
    %741 = tpu.concatenate %739, %740 in 1 : vector<16x12xf32>, vector<16x4xf32> -> vector<16x16xf32>
    %c9_256 = arith.constant 9 : index
    %c0_257 = arith.constant 0 : index
    %742 = vector.load %arg4[%c9_256, %c0_257] : memref<16x16xf32, #tpu.memory_space<vmem>>, vector<1x16xf32>
    %743 = vector.broadcast %742 : vector<1x16xf32> to vector<16x16xf32>
    %744 = arith.mulf %741, %743 : vector<16x16xf32>
    %745 = vector.extract_strided_slice %702 {offsets = [0, 5], sizes = [16, 11], strides = [1, 1]} : vector<16x16xf32> to vector<16x11xf32>
    %746 = vector.extract_strided_slice %702 {offsets = [0, 0], sizes = [16, 5], strides = [1, 1]} : vector<16x16xf32> to vector<16x5xf32>
    %747 = tpu.concatenate %745, %746 in 1 : vector<16x11xf32>, vector<16x5xf32> -> vector<16x16xf32>
    %c10_258 = arith.constant 10 : index
    %c0_259 = arith.constant 0 : index
    %748 = vector.load %arg4[%c10_258, %c0_259] : memref<16x16xf32, #tpu.memory_space<vmem>>, vector<1x16xf32>
    %749 = vector.broadcast %748 : vector<1x16xf32> to vector<16x16xf32>
    %750 = arith.mulf %747, %749 : vector<16x16xf32>
    %751 = tpu.concatenate %708, %714, %720, %726, %702, %732, %738, %744, %750 in 0 : vector<16x16xf32>, vector<16x16xf32>, vector<16x16xf32>, vector<16x16xf32>, vector<16x16xf32>, vector<16x16xf32>, vector<16x16xf32>, vector<16x16xf32>, vector<16x16xf32> -> vector<144x16xf32>
    %c224 = arith.constant 224 : index
    %c0_260 = arith.constant 0 : index
    %752 = vector.load %arg12[%c224, %c0_260] : memref<320x288xbf16, #tpu.memory_space<vmem>>, vector<32x144xbf16>
    %753 = arith.truncf %751 : vector<144x16xf32> to vector<144x16xbf16>
    %cst_261 = arith.constant dense<0.000000e+00> : vector<32x16xf32>
    %754 = tpu.matmul %752, %753, %cst_261 {dimension_numbers = #tpu.dot_dimension_numbers<[1], [0], [0], [1], [0, 0, 1, 1], [], []>} : vector<32x144xbf16>, vector<144x16xbf16>, vector<32x16xf32> -> vector<32x16xf32>
    %755 = arith.truncf %754 : vector<32x16xf32> to vector<32x16xbf16>
    %c0_262 = arith.constant 0 : index
    %c0_263 = arith.constant 0 : index
    %756 = vector.load %arg10[%c0_262, %c0_263] : memref<16x64xbf16, #tpu.memory_space<vmem>>, vector<16x64xbf16>
    %cst_264 = arith.constant dense<0.000000e+00> : vector<32x64xf32>
    %757 = tpu.matmul %755, %756, %cst_264 {dimension_numbers = #tpu.dot_dimension_numbers<[1], [0], [0], [1], [0, 0, 1, 1], [], []>} : vector<32x16xbf16>, vector<16x64xbf16>, vector<32x64xf32> -> vector<32x64xf32>
    %758 = vector.extract_strided_slice %757 {offsets = [0, 0], sizes = [8, 64], strides = [1, 1]} : vector<32x64xf32> to vector<8x64xf32>
    %759 = vector.extract_strided_slice %757 {offsets = [8, 0], sizes = [8, 64], strides = [1, 1]} : vector<32x64xf32> to vector<8x64xf32>
    %760 = vector.extract_strided_slice %759 {offsets = [0, 63], sizes = [8, 1], strides = [1, 1]} : vector<8x64xf32> to vector<8x1xf32>
    %761 = vector.extract_strided_slice %759 {offsets = [0, 0], sizes = [8, 63], strides = [1, 1]} : vector<8x64xf32> to vector<8x63xf32>
    %762 = tpu.concatenate %760, %761 in 1 : vector<8x1xf32>, vector<8x63xf32> -> vector<8x64xf32>
    %763 = arith.addf %758, %762 : vector<8x64xf32>
    %764 = vector.extract_strided_slice %757 {offsets = [16, 0], sizes = [8, 64], strides = [1, 1]} : vector<32x64xf32> to vector<8x64xf32>
    %765 = vector.extract_strided_slice %764 {offsets = [0, 56], sizes = [8, 8], strides = [1, 1]} : vector<8x64xf32> to vector<8x8xf32>
    %766 = vector.extract_strided_slice %764 {offsets = [0, 0], sizes = [8, 56], strides = [1, 1]} : vector<8x64xf32> to vector<8x56xf32>
    %767 = tpu.concatenate %765, %766 in 1 : vector<8x8xf32>, vector<8x56xf32> -> vector<8x64xf32>
    %768 = arith.addf %763, %767 : vector<8x64xf32>
    %769 = vector.extract_strided_slice %757 {offsets = [24, 0], sizes = [8, 64], strides = [1, 1]} : vector<32x64xf32> to vector<8x64xf32>
    %770 = vector.extract_strided_slice %769 {offsets = [0, 55], sizes = [8, 9], strides = [1, 1]} : vector<8x64xf32> to vector<8x9xf32>
    %771 = vector.extract_strided_slice %769 {offsets = [0, 0], sizes = [8, 55], strides = [1, 1]} : vector<8x64xf32> to vector<8x55xf32>
    %772 = tpu.concatenate %770, %771 in 1 : vector<8x9xf32>, vector<8x55xf32> -> vector<8x64xf32>
    %773 = arith.addf %768, %772 : vector<8x64xf32>
    %c152 = arith.constant 152 : index
    %c0_265 = arith.constant 0 : index
    %774 = vector.load %arg13[%c152, %c0_265] : memref<184x1xf32, #tpu.memory_space<vmem>>, vector<8x1xf32>
    %775 = vector.broadcast %774 : vector<8x1xf32> to vector<8x64xf32>
    %776 = arith.addf %773, %775 : vector<8x64xf32>
    %cst_266 = arith.constant 0.000000e+00 : f32
    %777 = vector.broadcast %cst_266 : f32 to vector<8x64xf32>
    %778 = arith.maximumf %776, %777 : vector<8x64xf32>
    %779 = arith.addf %778, %190 : vector<8x64xf32>
    %780 = vector.extract_strided_slice %779 {offsets = [0, 55], sizes = [8, 9], strides = [1, 1]} : vector<8x64xf32> to vector<8x9xf32>
    %781 = vector.extract_strided_slice %779 {offsets = [0, 0], sizes = [8, 55], strides = [1, 1]} : vector<8x64xf32> to vector<8x55xf32>
    %782 = tpu.concatenate %780, %781 in 1 : vector<8x9xf32>, vector<8x55xf32> -> vector<8x64xf32>
    %c0_267 = arith.constant 0 : index
    %c0_268 = arith.constant 0 : index
    %783 = vector.load %arg3[%c0_267, %c0_268] : memref<16x64xf32, #tpu.memory_space<vmem>>, vector<1x64xf32>
    %784 = vector.broadcast %783 : vector<1x64xf32> to vector<8x64xf32>
    %785 = arith.mulf %782, %784 : vector<8x64xf32>
    %786 = vector.extract_strided_slice %779 {offsets = [0, 56], sizes = [8, 8], strides = [1, 1]} : vector<8x64xf32> to vector<8x8xf32>
    %787 = vector.extract_strided_slice %779 {offsets = [0, 0], sizes = [8, 56], strides = [1, 1]} : vector<8x64xf32> to vector<8x56xf32>
    %788 = tpu.concatenate %786, %787 in 1 : vector<8x8xf32>, vector<8x56xf32> -> vector<8x64xf32>
    %c1_269 = arith.constant 1 : index
    %c0_270 = arith.constant 0 : index
    %789 = vector.load %arg3[%c1_269, %c0_270] : memref<16x64xf32, #tpu.memory_space<vmem>>, vector<1x64xf32>
    %790 = vector.broadcast %789 : vector<1x64xf32> to vector<8x64xf32>
    %791 = arith.mulf %788, %790 : vector<8x64xf32>
    %792 = vector.extract_strided_slice %779 {offsets = [0, 57], sizes = [8, 7], strides = [1, 1]} : vector<8x64xf32> to vector<8x7xf32>
    %793 = vector.extract_strided_slice %779 {offsets = [0, 0], sizes = [8, 57], strides = [1, 1]} : vector<8x64xf32> to vector<8x57xf32>
    %794 = tpu.concatenate %792, %793 in 1 : vector<8x7xf32>, vector<8x57xf32> -> vector<8x64xf32>
    %c2_271 = arith.constant 2 : index
    %c0_272 = arith.constant 0 : index
    %795 = vector.load %arg3[%c2_271, %c0_272] : memref<16x64xf32, #tpu.memory_space<vmem>>, vector<1x64xf32>
    %796 = vector.broadcast %795 : vector<1x64xf32> to vector<8x64xf32>
    %797 = arith.mulf %794, %796 : vector<8x64xf32>
    %798 = vector.extract_strided_slice %779 {offsets = [0, 63], sizes = [8, 1], strides = [1, 1]} : vector<8x64xf32> to vector<8x1xf32>
    %799 = vector.extract_strided_slice %779 {offsets = [0, 0], sizes = [8, 63], strides = [1, 1]} : vector<8x64xf32> to vector<8x63xf32>
    %800 = tpu.concatenate %798, %799 in 1 : vector<8x1xf32>, vector<8x63xf32> -> vector<8x64xf32>
    %c4_273 = arith.constant 4 : index
    %c0_274 = arith.constant 0 : index
    %801 = vector.load %arg3[%c4_273, %c0_274] : memref<16x64xf32, #tpu.memory_space<vmem>>, vector<1x64xf32>
    %802 = vector.broadcast %801 : vector<1x64xf32> to vector<8x64xf32>
    %803 = arith.mulf %800, %802 : vector<8x64xf32>
    %804 = vector.extract_strided_slice %779 {offsets = [0, 1], sizes = [8, 63], strides = [1, 1]} : vector<8x64xf32> to vector<8x63xf32>
    %805 = vector.extract_strided_slice %779 {offsets = [0, 0], sizes = [8, 1], strides = [1, 1]} : vector<8x64xf32> to vector<8x1xf32>
    %806 = tpu.concatenate %804, %805 in 1 : vector<8x63xf32>, vector<8x1xf32> -> vector<8x64xf32>
    %c6_275 = arith.constant 6 : index
    %c0_276 = arith.constant 0 : index
    %807 = vector.load %arg3[%c6_275, %c0_276] : memref<16x64xf32, #tpu.memory_space<vmem>>, vector<1x64xf32>
    %808 = vector.broadcast %807 : vector<1x64xf32> to vector<8x64xf32>
    %809 = arith.mulf %806, %808 : vector<8x64xf32>
    %810 = vector.extract_strided_slice %779 {offsets = [0, 7], sizes = [8, 57], strides = [1, 1]} : vector<8x64xf32> to vector<8x57xf32>
    %811 = vector.extract_strided_slice %779 {offsets = [0, 0], sizes = [8, 7], strides = [1, 1]} : vector<8x64xf32> to vector<8x7xf32>
    %812 = tpu.concatenate %810, %811 in 1 : vector<8x57xf32>, vector<8x7xf32> -> vector<8x64xf32>
    %c8_277 = arith.constant 8 : index
    %c0_278 = arith.constant 0 : index
    %813 = vector.load %arg3[%c8_277, %c0_278] : memref<16x64xf32, #tpu.memory_space<vmem>>, vector<1x64xf32>
    %814 = vector.broadcast %813 : vector<1x64xf32> to vector<8x64xf32>
    %815 = arith.mulf %812, %814 : vector<8x64xf32>
    %816 = vector.extract_strided_slice %779 {offsets = [0, 8], sizes = [8, 56], strides = [1, 1]} : vector<8x64xf32> to vector<8x56xf32>
    %817 = vector.extract_strided_slice %779 {offsets = [0, 0], sizes = [8, 8], strides = [1, 1]} : vector<8x64xf32> to vector<8x8xf32>
    %818 = tpu.concatenate %816, %817 in 1 : vector<8x56xf32>, vector<8x8xf32> -> vector<8x64xf32>
    %c9_279 = arith.constant 9 : index
    %c0_280 = arith.constant 0 : index
    %819 = vector.load %arg3[%c9_279, %c0_280] : memref<16x64xf32, #tpu.memory_space<vmem>>, vector<1x64xf32>
    %820 = vector.broadcast %819 : vector<1x64xf32> to vector<8x64xf32>
    %821 = arith.mulf %818, %820 : vector<8x64xf32>
    %822 = vector.extract_strided_slice %779 {offsets = [0, 9], sizes = [8, 55], strides = [1, 1]} : vector<8x64xf32> to vector<8x55xf32>
    %823 = vector.extract_strided_slice %779 {offsets = [0, 0], sizes = [8, 9], strides = [1, 1]} : vector<8x64xf32> to vector<8x9xf32>
    %824 = tpu.concatenate %822, %823 in 1 : vector<8x55xf32>, vector<8x9xf32> -> vector<8x64xf32>
    %c10_281 = arith.constant 10 : index
    %c0_282 = arith.constant 0 : index
    %825 = vector.load %arg3[%c10_281, %c0_282] : memref<16x64xf32, #tpu.memory_space<vmem>>, vector<1x64xf32>
    %826 = vector.broadcast %825 : vector<1x64xf32> to vector<8x64xf32>
    %827 = arith.mulf %824, %826 : vector<8x64xf32>
    %828 = tpu.concatenate %785, %791, %797, %803, %779, %809, %815, %821, %827 in 0 : vector<8x64xf32>, vector<8x64xf32>, vector<8x64xf32>, vector<8x64xf32>, vector<8x64xf32>, vector<8x64xf32>, vector<8x64xf32>, vector<8x64xf32>, vector<8x64xf32> -> vector<72x64xf32>
    %c256 = arith.constant 256 : index
    %c0_283 = arith.constant 0 : index
    %829 = vector.load %arg12[%c256, %c0_283] : memref<320x288xbf16, #tpu.memory_space<vmem>>, vector<16x72xbf16>
    %830 = arith.truncf %828 : vector<72x64xf32> to vector<72x64xbf16>
    %cst_284 = arith.constant dense<0.000000e+00> : vector<16x64xf32>
    %831 = tpu.matmul %829, %830, %cst_284 {dimension_numbers = #tpu.dot_dimension_numbers<[1], [0], [0], [1], [0, 0, 1, 1], [], []>} : vector<16x72xbf16>, vector<72x64xbf16>, vector<16x64xf32> -> vector<16x64xf32>
    %832 = vector.extract_strided_slice %831 {offsets = [0, 0], sizes = [8, 64], strides = [1, 1]} : vector<16x64xf32> to vector<8x64xf32>
    %c160 = arith.constant 160 : index
    %c0_285 = arith.constant 0 : index
    %833 = vector.load %arg13[%c160, %c0_285] : memref<184x1xf32, #tpu.memory_space<vmem>>, vector<8x1xf32>
    %834 = vector.broadcast %833 : vector<8x1xf32> to vector<8x64xf32>
    %835 = arith.addf %832, %834 : vector<8x64xf32>
    %cst_286 = arith.constant 0.000000e+00 : f32
    %836 = vector.broadcast %cst_286 : f32 to vector<8x64xf32>
    %837 = arith.maximumf %835, %836 : vector<8x64xf32>
    %838 = vector.extract_strided_slice %837 {offsets = [0, 55], sizes = [8, 9], strides = [1, 1]} : vector<8x64xf32> to vector<8x9xf32>
    %839 = vector.extract_strided_slice %837 {offsets = [0, 0], sizes = [8, 55], strides = [1, 1]} : vector<8x64xf32> to vector<8x55xf32>
    %840 = tpu.concatenate %838, %839 in 1 : vector<8x9xf32>, vector<8x55xf32> -> vector<8x64xf32>
    %c0_287 = arith.constant 0 : index
    %c0_288 = arith.constant 0 : index
    %841 = vector.load %arg3[%c0_287, %c0_288] : memref<16x64xf32, #tpu.memory_space<vmem>>, vector<1x64xf32>
    %842 = vector.broadcast %841 : vector<1x64xf32> to vector<8x64xf32>
    %843 = arith.mulf %840, %842 : vector<8x64xf32>
    %844 = vector.extract_strided_slice %837 {offsets = [0, 56], sizes = [8, 8], strides = [1, 1]} : vector<8x64xf32> to vector<8x8xf32>
    %845 = vector.extract_strided_slice %837 {offsets = [0, 0], sizes = [8, 56], strides = [1, 1]} : vector<8x64xf32> to vector<8x56xf32>
    %846 = tpu.concatenate %844, %845 in 1 : vector<8x8xf32>, vector<8x56xf32> -> vector<8x64xf32>
    %c1_289 = arith.constant 1 : index
    %c0_290 = arith.constant 0 : index
    %847 = vector.load %arg3[%c1_289, %c0_290] : memref<16x64xf32, #tpu.memory_space<vmem>>, vector<1x64xf32>
    %848 = vector.broadcast %847 : vector<1x64xf32> to vector<8x64xf32>
    %849 = arith.mulf %846, %848 : vector<8x64xf32>
    %850 = vector.extract_strided_slice %837 {offsets = [0, 57], sizes = [8, 7], strides = [1, 1]} : vector<8x64xf32> to vector<8x7xf32>
    %851 = vector.extract_strided_slice %837 {offsets = [0, 0], sizes = [8, 57], strides = [1, 1]} : vector<8x64xf32> to vector<8x57xf32>
    %852 = tpu.concatenate %850, %851 in 1 : vector<8x7xf32>, vector<8x57xf32> -> vector<8x64xf32>
    %c2_291 = arith.constant 2 : index
    %c0_292 = arith.constant 0 : index
    %853 = vector.load %arg3[%c2_291, %c0_292] : memref<16x64xf32, #tpu.memory_space<vmem>>, vector<1x64xf32>
    %854 = vector.broadcast %853 : vector<1x64xf32> to vector<8x64xf32>
    %855 = arith.mulf %852, %854 : vector<8x64xf32>
    %856 = vector.extract_strided_slice %837 {offsets = [0, 63], sizes = [8, 1], strides = [1, 1]} : vector<8x64xf32> to vector<8x1xf32>
    %857 = vector.extract_strided_slice %837 {offsets = [0, 0], sizes = [8, 63], strides = [1, 1]} : vector<8x64xf32> to vector<8x63xf32>
    %858 = tpu.concatenate %856, %857 in 1 : vector<8x1xf32>, vector<8x63xf32> -> vector<8x64xf32>
    %c4_293 = arith.constant 4 : index
    %c0_294 = arith.constant 0 : index
    %859 = vector.load %arg3[%c4_293, %c0_294] : memref<16x64xf32, #tpu.memory_space<vmem>>, vector<1x64xf32>
    %860 = vector.broadcast %859 : vector<1x64xf32> to vector<8x64xf32>
    %861 = arith.mulf %858, %860 : vector<8x64xf32>
    %862 = vector.extract_strided_slice %837 {offsets = [0, 1], sizes = [8, 63], strides = [1, 1]} : vector<8x64xf32> to vector<8x63xf32>
    %863 = vector.extract_strided_slice %837 {offsets = [0, 0], sizes = [8, 1], strides = [1, 1]} : vector<8x64xf32> to vector<8x1xf32>
    %864 = tpu.concatenate %862, %863 in 1 : vector<8x63xf32>, vector<8x1xf32> -> vector<8x64xf32>
    %c6_295 = arith.constant 6 : index
    %c0_296 = arith.constant 0 : index
    %865 = vector.load %arg3[%c6_295, %c0_296] : memref<16x64xf32, #tpu.memory_space<vmem>>, vector<1x64xf32>
    %866 = vector.broadcast %865 : vector<1x64xf32> to vector<8x64xf32>
    %867 = arith.mulf %864, %866 : vector<8x64xf32>
    %868 = vector.extract_strided_slice %837 {offsets = [0, 7], sizes = [8, 57], strides = [1, 1]} : vector<8x64xf32> to vector<8x57xf32>
    %869 = vector.extract_strided_slice %837 {offsets = [0, 0], sizes = [8, 7], strides = [1, 1]} : vector<8x64xf32> to vector<8x7xf32>
    %870 = tpu.concatenate %868, %869 in 1 : vector<8x57xf32>, vector<8x7xf32> -> vector<8x64xf32>
    %c8_297 = arith.constant 8 : index
    %c0_298 = arith.constant 0 : index
    %871 = vector.load %arg3[%c8_297, %c0_298] : memref<16x64xf32, #tpu.memory_space<vmem>>, vector<1x64xf32>
    %872 = vector.broadcast %871 : vector<1x64xf32> to vector<8x64xf32>
    %873 = arith.mulf %870, %872 : vector<8x64xf32>
    %874 = vector.extract_strided_slice %837 {offsets = [0, 8], sizes = [8, 56], strides = [1, 1]} : vector<8x64xf32> to vector<8x56xf32>
    %875 = vector.extract_strided_slice %837 {offsets = [0, 0], sizes = [8, 8], strides = [1, 1]} : vector<8x64xf32> to vector<8x8xf32>
    %876 = tpu.concatenate %874, %875 in 1 : vector<8x56xf32>, vector<8x8xf32> -> vector<8x64xf32>
    %c9_299 = arith.constant 9 : index
    %c0_300 = arith.constant 0 : index
    %877 = vector.load %arg3[%c9_299, %c0_300] : memref<16x64xf32, #tpu.memory_space<vmem>>, vector<1x64xf32>
    %878 = vector.broadcast %877 : vector<1x64xf32> to vector<8x64xf32>
    %879 = arith.mulf %876, %878 : vector<8x64xf32>
    %880 = vector.extract_strided_slice %837 {offsets = [0, 9], sizes = [8, 55], strides = [1, 1]} : vector<8x64xf32> to vector<8x55xf32>
    %881 = vector.extract_strided_slice %837 {offsets = [0, 0], sizes = [8, 9], strides = [1, 1]} : vector<8x64xf32> to vector<8x9xf32>
    %882 = tpu.concatenate %880, %881 in 1 : vector<8x55xf32>, vector<8x9xf32> -> vector<8x64xf32>
    %c10_301 = arith.constant 10 : index
    %c0_302 = arith.constant 0 : index
    %883 = vector.load %arg3[%c10_301, %c0_302] : memref<16x64xf32, #tpu.memory_space<vmem>>, vector<1x64xf32>
    %884 = vector.broadcast %883 : vector<1x64xf32> to vector<8x64xf32>
    %885 = arith.mulf %882, %884 : vector<8x64xf32>
    %886 = tpu.concatenate %843, %849, %855, %861, %837, %867, %873, %879, %885 in 0 : vector<8x64xf32>, vector<8x64xf32>, vector<8x64xf32>, vector<8x64xf32>, vector<8x64xf32>, vector<8x64xf32>, vector<8x64xf32>, vector<8x64xf32>, vector<8x64xf32> -> vector<72x64xf32>
    %c272 = arith.constant 272 : index
    %c0_303 = arith.constant 0 : index
    %887 = vector.load %arg12[%c272, %c0_303] : memref<320x288xbf16, #tpu.memory_space<vmem>>, vector<16x72xbf16>
    %888 = arith.truncf %886 : vector<72x64xf32> to vector<72x64xbf16>
    %cst_304 = arith.constant dense<0.000000e+00> : vector<16x64xf32>
    %889 = tpu.matmul %887, %888, %cst_304 {dimension_numbers = #tpu.dot_dimension_numbers<[1], [0], [0], [1], [0, 0, 1, 1], [], []>} : vector<16x72xbf16>, vector<72x64xbf16>, vector<16x64xf32> -> vector<16x64xf32>
    %890 = vector.extract_strided_slice %889 {offsets = [0, 0], sizes = [8, 64], strides = [1, 1]} : vector<16x64xf32> to vector<8x64xf32>
    %c168 = arith.constant 168 : index
    %c0_305 = arith.constant 0 : index
    %891 = vector.load %arg13[%c168, %c0_305] : memref<184x1xf32, #tpu.memory_space<vmem>>, vector<8x1xf32>
    %892 = vector.broadcast %891 : vector<8x1xf32> to vector<8x64xf32>
    %893 = arith.addf %890, %892 : vector<8x64xf32>
    %894 = arith.addf %893, %779 : vector<8x64xf32>
    %cst_306 = arith.constant 0.000000e+00 : f32
    %895 = vector.broadcast %cst_306 : f32 to vector<8x64xf32>
    %896 = arith.maximumf %894, %895 : vector<8x64xf32>
    %897 = arith.addf %896, %73 : vector<8x64xf32>
    %898 = vector.extract_strided_slice %897 {offsets = [0, 55], sizes = [8, 9], strides = [1, 1]} : vector<8x64xf32> to vector<8x9xf32>
    %899 = vector.extract_strided_slice %897 {offsets = [0, 0], sizes = [8, 55], strides = [1, 1]} : vector<8x64xf32> to vector<8x55xf32>
    %900 = tpu.concatenate %898, %899 in 1 : vector<8x9xf32>, vector<8x55xf32> -> vector<8x64xf32>
    %c0_307 = arith.constant 0 : index
    %c0_308 = arith.constant 0 : index
    %901 = vector.load %arg3[%c0_307, %c0_308] : memref<16x64xf32, #tpu.memory_space<vmem>>, vector<1x64xf32>
    %902 = vector.broadcast %901 : vector<1x64xf32> to vector<8x64xf32>
    %903 = arith.mulf %900, %902 : vector<8x64xf32>
    %904 = vector.extract_strided_slice %897 {offsets = [0, 56], sizes = [8, 8], strides = [1, 1]} : vector<8x64xf32> to vector<8x8xf32>
    %905 = vector.extract_strided_slice %897 {offsets = [0, 0], sizes = [8, 56], strides = [1, 1]} : vector<8x64xf32> to vector<8x56xf32>
    %906 = tpu.concatenate %904, %905 in 1 : vector<8x8xf32>, vector<8x56xf32> -> vector<8x64xf32>
    %c1_309 = arith.constant 1 : index
    %c0_310 = arith.constant 0 : index
    %907 = vector.load %arg3[%c1_309, %c0_310] : memref<16x64xf32, #tpu.memory_space<vmem>>, vector<1x64xf32>
    %908 = vector.broadcast %907 : vector<1x64xf32> to vector<8x64xf32>
    %909 = arith.mulf %906, %908 : vector<8x64xf32>
    %910 = vector.extract_strided_slice %897 {offsets = [0, 57], sizes = [8, 7], strides = [1, 1]} : vector<8x64xf32> to vector<8x7xf32>
    %911 = vector.extract_strided_slice %897 {offsets = [0, 0], sizes = [8, 57], strides = [1, 1]} : vector<8x64xf32> to vector<8x57xf32>
    %912 = tpu.concatenate %910, %911 in 1 : vector<8x7xf32>, vector<8x57xf32> -> vector<8x64xf32>
    %c2_311 = arith.constant 2 : index
    %c0_312 = arith.constant 0 : index
    %913 = vector.load %arg3[%c2_311, %c0_312] : memref<16x64xf32, #tpu.memory_space<vmem>>, vector<1x64xf32>
    %914 = vector.broadcast %913 : vector<1x64xf32> to vector<8x64xf32>
    %915 = arith.mulf %912, %914 : vector<8x64xf32>
    %916 = vector.extract_strided_slice %897 {offsets = [0, 63], sizes = [8, 1], strides = [1, 1]} : vector<8x64xf32> to vector<8x1xf32>
    %917 = vector.extract_strided_slice %897 {offsets = [0, 0], sizes = [8, 63], strides = [1, 1]} : vector<8x64xf32> to vector<8x63xf32>
    %918 = tpu.concatenate %916, %917 in 1 : vector<8x1xf32>, vector<8x63xf32> -> vector<8x64xf32>
    %c4_313 = arith.constant 4 : index
    %c0_314 = arith.constant 0 : index
    %919 = vector.load %arg3[%c4_313, %c0_314] : memref<16x64xf32, #tpu.memory_space<vmem>>, vector<1x64xf32>
    %920 = vector.broadcast %919 : vector<1x64xf32> to vector<8x64xf32>
    %921 = arith.mulf %918, %920 : vector<8x64xf32>
    %922 = vector.extract_strided_slice %897 {offsets = [0, 1], sizes = [8, 63], strides = [1, 1]} : vector<8x64xf32> to vector<8x63xf32>
    %923 = vector.extract_strided_slice %897 {offsets = [0, 0], sizes = [8, 1], strides = [1, 1]} : vector<8x64xf32> to vector<8x1xf32>
    %924 = tpu.concatenate %922, %923 in 1 : vector<8x63xf32>, vector<8x1xf32> -> vector<8x64xf32>
    %c6_315 = arith.constant 6 : index
    %c0_316 = arith.constant 0 : index
    %925 = vector.load %arg3[%c6_315, %c0_316] : memref<16x64xf32, #tpu.memory_space<vmem>>, vector<1x64xf32>
    %926 = vector.broadcast %925 : vector<1x64xf32> to vector<8x64xf32>
    %927 = arith.mulf %924, %926 : vector<8x64xf32>
    %928 = vector.extract_strided_slice %897 {offsets = [0, 7], sizes = [8, 57], strides = [1, 1]} : vector<8x64xf32> to vector<8x57xf32>
    %929 = vector.extract_strided_slice %897 {offsets = [0, 0], sizes = [8, 7], strides = [1, 1]} : vector<8x64xf32> to vector<8x7xf32>
    %930 = tpu.concatenate %928, %929 in 1 : vector<8x57xf32>, vector<8x7xf32> -> vector<8x64xf32>
    %c8_317 = arith.constant 8 : index
    %c0_318 = arith.constant 0 : index
    %931 = vector.load %arg3[%c8_317, %c0_318] : memref<16x64xf32, #tpu.memory_space<vmem>>, vector<1x64xf32>
    %932 = vector.broadcast %931 : vector<1x64xf32> to vector<8x64xf32>
    %933 = arith.mulf %930, %932 : vector<8x64xf32>
    %934 = vector.extract_strided_slice %897 {offsets = [0, 8], sizes = [8, 56], strides = [1, 1]} : vector<8x64xf32> to vector<8x56xf32>
    %935 = vector.extract_strided_slice %897 {offsets = [0, 0], sizes = [8, 8], strides = [1, 1]} : vector<8x64xf32> to vector<8x8xf32>
    %936 = tpu.concatenate %934, %935 in 1 : vector<8x56xf32>, vector<8x8xf32> -> vector<8x64xf32>
    %c9_319 = arith.constant 9 : index
    %c0_320 = arith.constant 0 : index
    %937 = vector.load %arg3[%c9_319, %c0_320] : memref<16x64xf32, #tpu.memory_space<vmem>>, vector<1x64xf32>
    %938 = vector.broadcast %937 : vector<1x64xf32> to vector<8x64xf32>
    %939 = arith.mulf %936, %938 : vector<8x64xf32>
    %940 = vector.extract_strided_slice %897 {offsets = [0, 9], sizes = [8, 55], strides = [1, 1]} : vector<8x64xf32> to vector<8x55xf32>
    %941 = vector.extract_strided_slice %897 {offsets = [0, 0], sizes = [8, 9], strides = [1, 1]} : vector<8x64xf32> to vector<8x9xf32>
    %942 = tpu.concatenate %940, %941 in 1 : vector<8x55xf32>, vector<8x9xf32> -> vector<8x64xf32>
    %c10_321 = arith.constant 10 : index
    %c0_322 = arith.constant 0 : index
    %943 = vector.load %arg3[%c10_321, %c0_322] : memref<16x64xf32, #tpu.memory_space<vmem>>, vector<1x64xf32>
    %944 = vector.broadcast %943 : vector<1x64xf32> to vector<8x64xf32>
    %945 = arith.mulf %942, %944 : vector<8x64xf32>
    %946 = tpu.concatenate %903, %909, %915, %921, %897, %927, %933, %939, %945 in 0 : vector<8x64xf32>, vector<8x64xf32>, vector<8x64xf32>, vector<8x64xf32>, vector<8x64xf32>, vector<8x64xf32>, vector<8x64xf32>, vector<8x64xf32>, vector<8x64xf32> -> vector<72x64xf32>
    %c288 = arith.constant 288 : index
    %c0_323 = arith.constant 0 : index
    %947 = vector.load %arg12[%c288, %c0_323] : memref<320x288xbf16, #tpu.memory_space<vmem>>, vector<32x72xbf16>
    %948 = arith.truncf %946 : vector<72x64xf32> to vector<72x64xbf16>
    %cst_324 = arith.constant dense<0.000000e+00> : vector<32x64xf32>
    %949 = tpu.matmul %947, %948, %cst_324 {dimension_numbers = #tpu.dot_dimension_numbers<[1], [0], [0], [1], [0, 0, 1, 1], [], []>} : vector<32x72xbf16>, vector<72x64xbf16>, vector<32x64xf32> -> vector<32x64xf32>
    %950 = arith.truncf %949 : vector<32x64xf32> to vector<32x64xbf16>
    %c0_325 = arith.constant 0 : index
    %c0_326 = arith.constant 0 : index
    %951 = vector.load %arg11[%c0_325, %c0_326] : memref<64x256xbf16, #tpu.memory_space<vmem>>, vector<64x256xbf16>
    %cst_327 = arith.constant dense<0.000000e+00> : vector<32x256xf32>
    %952 = tpu.matmul %950, %951, %cst_327 {dimension_numbers = #tpu.dot_dimension_numbers<[1], [0], [0], [1], [0, 0, 1, 1], [], []>} : vector<32x64xbf16>, vector<64x256xbf16>, vector<32x256xf32> -> vector<32x256xf32>
    %953 = vector.extract_strided_slice %952 {offsets = [0, 0], sizes = [8, 256], strides = [1, 1]} : vector<32x256xf32> to vector<8x256xf32>
    %954 = vector.extract_strided_slice %952 {offsets = [8, 0], sizes = [8, 256], strides = [1, 1]} : vector<32x256xf32> to vector<8x256xf32>
    %c1_i32_328 = arith.constant 1 : i32
    %955 = tpu.dynamic_rotate %954 by %c1_i32_328 dim 1 : vector<8x256xf32>, i32 -> vector<8x256xf32>
    %956 = arith.addf %953, %955 : vector<8x256xf32>
    %957 = vector.extract_strided_slice %952 {offsets = [16, 0], sizes = [8, 256], strides = [1, 1]} : vector<32x256xf32> to vector<8x256xf32>
    %c16_i32_329 = arith.constant 16 : i32
    %958 = tpu.dynamic_rotate %957 by %c16_i32_329 dim 1 : vector<8x256xf32>, i32 -> vector<8x256xf32>
    %959 = arith.addf %956, %958 : vector<8x256xf32>
    %960 = vector.extract_strided_slice %952 {offsets = [24, 0], sizes = [8, 256], strides = [1, 1]} : vector<32x256xf32> to vector<8x256xf32>
    %c17_i32_330 = arith.constant 17 : i32
    %961 = tpu.dynamic_rotate %960 by %c17_i32_330 dim 1 : vector<8x256xf32>, i32 -> vector<8x256xf32>
    %962 = arith.addf %959, %961 : vector<8x256xf32>
    %c176 = arith.constant 176 : index
    %c0_331 = arith.constant 0 : index
    %963 = vector.load %arg13[%c176, %c0_331] : memref<184x1xf32, #tpu.memory_space<vmem>>, vector<8x1xf32>
    %964 = vector.broadcast %963 : vector<8x1xf32> to vector<8x256xf32>
    %965 = arith.addf %962, %964 : vector<8x256xf32>
    %cst_332 = arith.constant 0.000000e+00 : f32
    %966 = vector.broadcast %cst_332 : f32 to vector<8x256xf32>
    %967 = arith.maximumf %965, %966 : vector<8x256xf32>
    %c0_333 = arith.constant 0 : index
    %c0_334 = arith.constant 0 : index
    %968 = vector.load %arg14[%c0_333, %c0_334] : memref<8x256xf32, #tpu.memory_space<vmem>>, vector<8x256xf32>
    tpu.vector_store %arg14[%c0_333, %c0_334], %967 {strides = array<i32>} : memref<8x256xf32, #tpu.memory_space<vmem>>, vector<8x256xf32>,
    return
  }
  func.func @transform_0(%arg0: i32) -> (i32, i32) {
    %c0_i32 = arith.constant 0 : i32
    %c0_i32_0 = arith.constant 0 : i32
    return %c0_i32, %arg0 : i32, i32
  }
  func.func @transform_1(%arg0: i32) -> (i32, i32) {
    %c0_i32 = arith.constant 0 : i32
    %c0_i32_0 = arith.constant 0 : i32
    %c0_i32_1 = arith.constant 0 : i32
    return %c0_i32, %c0_i32_0 : i32, i32
  }
  func.func @transform_2(%arg0: i32) -> (i32, i32) {
    %c0_i32 = arith.constant 0 : i32
    %c0_i32_0 = arith.constant 0 : i32
    %c0_i32_1 = arith.constant 0 : i32
    return %c0_i32, %c0_i32_0 : i32, i32
  }
  func.func @transform_3(%arg0: i32) -> (i32, i32) {
    %c0_i32 = arith.constant 0 : i32
    %c0_i32_0 = arith.constant 0 : i32
    %c0_i32_1 = arith.constant 0 : i32
    return %c0_i32, %c0_i32_0 : i32, i32
  }
  func.func @transform_4(%arg0: i32) -> (i32, i32) {
    %c0_i32 = arith.constant 0 : i32
    %c0_i32_0 = arith.constant 0 : i32
    %c0_i32_1 = arith.constant 0 : i32
    return %c0_i32, %c0_i32_0 : i32, i32
  }
  func.func @transform_5(%arg0: i32) -> (i32, i32) {
    %c0_i32 = arith.constant 0 : i32
    %c0_i32_0 = arith.constant 0 : i32
    %c0_i32_1 = arith.constant 0 : i32
    return %c0_i32, %c0_i32_0 : i32, i32
  }
  func.func @transform_6(%arg0: i32) -> (i32, i32) {
    %c0_i32 = arith.constant 0 : i32
    %c0_i32_0 = arith.constant 0 : i32
    %c0_i32_1 = arith.constant 0 : i32
    return %c0_i32, %c0_i32_0 : i32, i32
  }
  func.func @transform_7(%arg0: i32) -> (i32, i32) {
    %c0_i32 = arith.constant 0 : i32
    %c0_i32_0 = arith.constant 0 : i32
    %c0_i32_1 = arith.constant 0 : i32
    return %c0_i32, %c0_i32_0 : i32, i32
  }
  func.func @transform_8(%arg0: i32) -> (i32, i32) {
    %c0_i32 = arith.constant 0 : i32
    %c0_i32_0 = arith.constant 0 : i32
    %c0_i32_1 = arith.constant 0 : i32
    return %c0_i32, %c0_i32_0 : i32, i32
  }
  func.func @transform_9(%arg0: i32) -> (i32, i32) {
    %c0_i32 = arith.constant 0 : i32
    %c0_i32_0 = arith.constant 0 : i32
    %c0_i32_1 = arith.constant 0 : i32
    return %c0_i32, %c0_i32_0 : i32, i32
  }
  func.func @transform_10(%arg0: i32) -> (i32, i32) {
    %c0_i32 = arith.constant 0 : i32
    %c0_i32_0 = arith.constant 0 : i32
    %c0_i32_1 = arith.constant 0 : i32
    return %c0_i32, %c0_i32_0 : i32, i32
  }
  func.func @transform_11(%arg0: i32) -> (i32, i32) {
    %c0_i32 = arith.constant 0 : i32
    %c0_i32_0 = arith.constant 0 : i32
    %c0_i32_1 = arith.constant 0 : i32
    return %c0_i32, %c0_i32_0 : i32, i32
  }
  func.func @transform_12(%arg0: i32) -> (i32, i32) {
    %c0_i32 = arith.constant 0 : i32
    %c0_i32_0 = arith.constant 0 : i32
    %c0_i32_1 = arith.constant 0 : i32
    return %c0_i32, %c0_i32_0 : i32, i32
  }
  func.func @transform_13(%arg0: i32) -> (i32, i32) {
    %c0_i32 = arith.constant 0 : i32
    %c0_i32_0 = arith.constant 0 : i32
    return %c0_i32, %arg0 : i32, i32
  }
}

</mosaic_0001>

<llo_original>
// kernel: _lambda_.1
$region0: #{_lambda_.1}
  #allocation0 [shape = 'u32[]', space=smem, size = 0x4, offset = 0x4, fixed_abs, tag = 'smem constant byte address 0x4 - core index']
  #allocation1 [shape = 'u32[72,128]{1,0:T(1,128)}', space=vmem, size = 0x9000, scoped, tag = 'internal scratch']
  %s0 = inlined_call_operand.vmem [shape: f32[8,512], index: 0, kind: input, shape index: {}]
  %s1 = inlined_call_operand.vmem [shape: f32[16,256], index: 1, kind: input, shape index: {}]
  %s2 = inlined_call_operand.vmem [shape: f32[16,64], index: 2, kind: input, shape index: {}]
  %s3 = inlined_call_operand.vmem [shape: f32[16,16], index: 3, kind: input, shape index: {}]
  %s4 = inlined_call_operand.vmem [shape: f32[16,4], index: 4, kind: input, shape index: {}]
  %s5 = inlined_call_operand.vmem [shape: bf16[256,64], index: 5, kind: input, shape index: {}]
  %s6 = inlined_call_operand.vmem [shape: bf16[64,16], index: 6, kind: input, shape index: {}]
  %s7 = inlined_call_operand.vmem [shape: bf16[16,4], index: 7, kind: input, shape index: {}]
  %s8 = inlined_call_operand.vmem [shape: bf16[4,16], index: 8, kind: input, shape index: {}]
  %s9 = inlined_call_operand.vmem [shape: bf16[16,64], index: 9, kind: input, shape index: {}]
  %s10 = inlined_call_operand.vmem [shape: bf16[64,256], index: 10, kind: input, shape index: {}]
  %s11 = inlined_call_operand.vmem [shape: bf16[320,288], index: 11, kind: input, shape index: {}]
  %s12 = inlined_call_operand.vmem [shape: f32[184,1], index: 12, kind: input, shape index: {}]
  %s13 = inlined_call_operand.vmem [shape: f32[8,512], index: 13, kind: output, shape index: {}]
  %s14 = sld [smem:[#allocation0]]
  $region85: #{_lambda_.1} parent=0
    _
  %s16 = ssub.s32 1, %s14
  %s17 = scalar_select 0, %s16, %s14
  loop: start=0, step=1, limit=4
  $region2: #{_lambda_.1} parent=0 // loop_pre_header
    _
  $region3: #{_lambda_.1} parent=0 // loop_header
    %s19 = sphi 0, %s23
    %p20 = scmp.ge.s32.totalorder %s19, 4
    %s29 = sphi 0, %s31
    %s32 = sphi 0, %s29
    %s33 = sphi 0, %s32
    %s49 = sphi 0, %s33
    %s53 = sphi 0, %s53
    %s55 = sphi 0, %s53
    %s56 = sphi 0, %s55
    %s70 = sphi 0, %s56
    %s74 = sphi 0, %s74
    %s76 = sphi 0, %s74
    %s77 = sphi 0, %s76
    %s91 = sphi 0, %s77
    %s95 = sphi 0, %s95
    %s97 = sphi 0, %s95
    %s98 = sphi 0, %s97
    %s112 = sphi 0, %s98
    %s116 = sphi 0, %s116
    %s118 = sphi 0, %s116
    %s119 = sphi 0, %s118
    %s133 = sphi 0, %s119
    %s137 = sphi 0, %s137
    %s139 = sphi 0, %s137
    %s140 = sphi 0, %s139
    %s154 = sphi 0, %s140
    %s158 = sphi 0, %s158
    %s160 = sphi 0, %s158
    %s161 = sphi 0, %s160
    %s175 = sphi 0, %s161
    %s179 = sphi 0, %s179
    %s181 = sphi 0, %s179
    %s182 = sphi 0, %s181
    %s196 = sphi 0, %s182
    %s200 = sphi 0, %s200
    %s202 = sphi 0, %s200
    %s203 = sphi 0, %s202
    %s217 = sphi 0, %s203
    %s221 = sphi 0, %s221
    %s223 = sphi 0, %s221
    %s224 = sphi 0, %s223
    %s238 = sphi 0, %s224
    %s242 = sphi 0, %s242
    %s244 = sphi 0, %s242
    %s245 = sphi 0, %s244
    %s259 = sphi 0, %s245
    %s263 = sphi 0, %s263
    %s265 = sphi 0, %s263
    %s266 = sphi 0, %s265
    %s280 = sphi 0, %s266
    %s284 = sphi 0, %s284
    %s286 = sphi 0, %s284
    %s287 = sphi 0, %s286
    %s301 = sphi 0, %s287
    %s307 = sphi 0, %s309
    %s310 = sphi 0, %s307
    %s311 = sphi 0, %s310
    %s327 = sphi 0, %s311
  $region4: #{_lambda_.1} parent=0 // loop_header_branch
    %22 = sbr.rel (%p20) target = $region8
  $region5: #{_lambda_.1} parent=0 // loop_body
    %s24 = ssub.s32 %s19, 1
    %s25 = ssub.s32 %s19, 2
    %s26 = sadd.s32 %s19, 1
    %s27 = ssub.s32 %s19, %s26
    %p28 = scmp.eq.s32.totalorder %s27, 0
    %s30 = sadd.s32 %s29, 1
    %s31 = scalar_select %p28, %s29, %s30
    %p34 = pneg %p28
    %p35 = scmp.eq.s32.totalorder %s19, 1
    %p36 = por %p34, %p35
    %p37 = scmp.ne.s32.totalorder %s29, %s32
    %p38 = scmp.eq.s32.totalorder %s19, 0
    %p39 = por %p37, %p38
    %p40 = scmp.ne.s32.totalorder %s29, %s32
    %p41 = scmp.eq.s32.totalorder %s24, 1
    %p42 = por %p40, %p41
    %p43 = scmp.ne.s32.totalorder %s32, %s33
    %p44 = scmp.eq.s32.totalorder %s24, 0
    %p45 = por %p43, %p44
    %p46 = scmp.ne.s32.totalorder %s32, %s33
    %p47 = scmp.eq.s32.totalorder %s25, 1
    %p48 = por %p46, %p47
    %p50 = scmp.ne.s32.totalorder %s33, %s49
    %p51 = scmp.eq.s32.totalorder %s25, 0
    %p52 = por %p50, %p51
    %s54 = sadd.s32 %s53, 1
    %p57 = scmp.eq.s32.totalorder %s19, 1
    %p58 = scmp.ne.s32.totalorder %s53, %s55
    %p59 = scmp.eq.s32.totalorder %s19, 0
    %p60 = por %p58, %p59
    %p61 = scmp.ne.s32.totalorder %s53, %s55
    %p62 = scmp.eq.s32.totalorder %s24, 1
    %p63 = por %p61, %p62
    %p64 = scmp.ne.s32.totalorder %s55, %s56
    %p65 = scmp.eq.s32.totalorder %s24, 0
    %p66 = por %p64, %p65
    %p67 = scmp.ne.s32.totalorder %s55, %s56
    %p68 = scmp.eq.s32.totalorder %s25, 1
    %p69 = por %p67, %p68
    %p71 = scmp.ne.s32.totalorder %s56, %s70
    %p72 = scmp.eq.s32.totalorder %s25, 0
    %p73 = por %p71, %p72
    %s75 = sadd.s32 %s74, 1
    %p78 = scmp.eq.s32.totalorder %s19, 1
    %p79 = scmp.ne.s32.totalorder %s74, %s76
    %p80 = scmp.eq.s32.totalorder %s19, 0
    %p81 = por %p79, %p80
    %p82 = scmp.ne.s32.totalorder %s74, %s76
    %p83 = scmp.eq.s32.totalorder %s24, 1
    %p84 = por %p82, %p83
    %p85 = scmp.ne.s32.totalorder %s76, %s77
    %p86 = scmp.eq.s32.totalorder %s24, 0
    %p87 = por %p85, %p86
    %p88 = scmp.ne.s32.totalorder %s76, %s77
    %p89 = scmp.eq.s32.totalorder %s25, 1
    %p90 = por %p88, %p89
    %p92 = scmp.ne.s32.totalorder %s77, %s91
    %p93 = scmp.eq.s32.totalorder %s25, 0
    %p94 = por %p92, %p93
    %s96 = sadd.s32 %s95, 1
    %p99 = scmp.eq.s32.totalorder %s19, 1
    %p100 = scmp.ne.s32.totalorder %s95, %s97
    %p101 = scmp.eq.s32.totalorder %s19, 0
    %p102 = por %p100, %p101
    %p103 = scmp.ne.s32.totalorder %s95, %s97
    %p104 = scmp.eq.s32.totalorder %s24, 1
    %p105 = por %p103, %p104
    %p106 = scmp.ne.s32.totalorder %s97, %s98
    %p107 = scmp.eq.s32.totalorder %s24, 0
    %p108 = por %p106, %p107
    %p109 = scmp.ne.s32.totalorder %s97, %s98
    %p110 = scmp.eq.s32.totalorder %s25, 1
    %p111 = por %p109, %p110
    %p113 = scmp.ne.s32.totalorder %s98, %s112
    %p114 = scmp.eq.s32.totalorder %s25, 0
    %p115 = por %p113, %p114
    %s117 = sadd.s32 %s116, 1
    %p120 = scmp.eq.s32.totalorder %s19, 1
    %p121 = scmp.ne.s32.totalorder %s116, %s118
    %p122 = scmp.eq.s32.totalorder %s19, 0
    %p123 = por %p121, %p122
    %p124 = scmp.ne.s32.totalorder %s116, %s118
    %p125 = scmp.eq.s32.totalorder %s24, 1
    %p126 = por %p124, %p125
    %p127 = scmp.ne.s32.totalorder %s118, %s119
    %p128 = scmp.eq.s32.totalorder %s24, 0
    %p129 = por %p127, %p128
    %p130 = scmp.ne.s32.totalorder %s118, %s119
    %p131 = scmp.eq.s32.totalorder %s25, 1
    %p132 = por %p130, %p131
    %p134 = scmp.ne.s32.totalorder %s119, %s133
    %p135 = scmp.eq.s32.totalorder %s25, 0
    %p136 = por %p134, %p135
    %s138 = sadd.s32 %s137, 1
    %p141 = scmp.eq.s32.totalorder %s19, 1
    %p142 = scmp.ne.s32.totalorder %s137, %s139
    %p143 = scmp.eq.s32.totalorder %s19, 0
    %p144 = por %p142, %p143
    %p145 = scmp.ne.s32.totalorder %s137, %s139
    %p146 = scmp.eq.s32.totalorder %s24, 1
    %p147 = por %p145, %p146
    %p148 = scmp.ne.s32.totalorder %s139, %s140
    %p149 = scmp.eq.s32.totalorder %s24, 0
    %p150 = por %p148, %p149
    %p151 = scmp.ne.s32.totalorder %s139, %s140
    %p152 = scmp.eq.s32.totalorder %s25, 1
    %p153 = por %p151, %p152
    %p155 = scmp.ne.s32.totalorder %s140, %s154
    %p156 = scmp.eq.s32.totalorder %s25, 0
    %p157 = por %p155, %p156
    %s159 = sadd.s32 %s158, 1
    %p162 = scmp.eq.s32.totalorder %s19, 1
    %p163 = scmp.ne.s32.totalorder %s158, %s160
    %p164 = scmp.eq.s32.totalorder %s19, 0
    %p165 = por %p163, %p164
    %p166 = scmp.ne.s32.totalorder %s158, %s160
    %p167 = scmp.eq.s32.totalorder %s24, 1
    %p168 = por %p166, %p167
    %p169 = scmp.ne.s32.totalorder %s160, %s161
    %p170 = scmp.eq.s32.totalorder %s24, 0
    %p171 = por %p169, %p170
    %p172 = scmp.ne.s32.totalorder %s160, %s161
    %p173 = scmp.eq.s32.totalorder %s25, 1
    %p174 = por %p172, %p173
    %p176 = scmp.ne.s32.totalorder %s161, %s175
    %p177 = scmp.eq.s32.totalorder %s25, 0
    %p178 = por %p176, %p177
    %s180 = sadd.s32 %s179, 1
    %p183 = scmp.eq.s32.totalorder %s19, 1
    %p184 = scmp.ne.s32.totalorder %s179, %s181
    %p185 = scmp.eq.s32.totalorder %s19, 0
    %p186 = por %p184, %p185
    %p187 = scmp.ne.s32.totalorder %s179, %s181
    %p188 = scmp.eq.s32.totalorder %s24, 1
    %p189 = por %p187, %p188
    %p190 = scmp.ne.s32.totalorder %s181, %s182
    %p191 = scmp.eq.s32.totalorder %s24, 0
    %p192 = por %p190, %p191
    %p193 = scmp.ne.s32.totalorder %s181, %s182
    %p194 = scmp.eq.s32.totalorder %s25, 1
    %p195 = por %p193, %p194
    %p197 = scmp.ne.s32.totalorder %s182, %s196
    %p198 = scmp.eq.s32.totalorder %s25, 0
    %p199 = por %p197, %p198
    %s201 = sadd.s32 %s200, 1
    %p204 = scmp.eq.s32.totalorder %s19, 1
    %p205 = scmp.ne.s32.totalorder %s200, %s202
    %p206 = scmp.eq.s32.totalorder %s19, 0
    %p207 = por %p205, %p206
    %p208 = scmp.ne.s32.totalorder %s200, %s202
    %p209 = scmp.eq.s32.totalorder %s24, 1
    %p210 = por %p208, %p209
    %p211 = scmp.ne.s32.totalorder %s202, %s203
    %p212 = scmp.eq.s32.totalorder %s24, 0
    %p213 = por %p211, %p212
    %p214 = scmp.ne.s32.totalorder %s202, %s203
    %p215 = scmp.eq.s32.totalorder %s25, 1
    %p216 = por %p214, %p215
    %p218 = scmp.ne.s32.totalorder %s203, %s217
    %p219 = scmp.eq.s32.totalorder %s25, 0
    %p220 = por %p218, %p219
    %s222 = sadd.s32 %s221, 1
    %p225 = scmp.eq.s32.totalorder %s19, 1
    %p226 = scmp.ne.s32.totalorder %s221, %s223
    %p227 = scmp.eq.s32.totalorder %s19, 0
    %p228 = por %p226, %p227
    %p229 = scmp.ne.s32.totalorder %s221, %s223
    %p230 = scmp.eq.s32.totalorder %s24, 1
    %p231 = por %p229, %p230
    %p232 = scmp.ne.s32.totalorder %s223, %s224
    %p233 = scmp.eq.s32.totalorder %s24, 0
    %p234 = por %p232, %p233
    %p235 = scmp.ne.s32.totalorder %s223, %s224
    %p236 = scmp.eq.s32.totalorder %s25, 1
    %p237 = por %p235, %p236
    %p239 = scmp.ne.s32.totalorder %s224, %s238
    %p240 = scmp.eq.s32.totalorder %s25, 0
    %p241 = por %p239, %p240
    %s243 = sadd.s32 %s242, 1
    %p246 = scmp.eq.s32.totalorder %s19, 1
    %p247 = scmp.ne.s32.totalorder %s242, %s244
    %p248 = scmp.eq.s32.totalorder %s19, 0
    %p249 = por %p247, %p248
    %p250 = scmp.ne.s32.totalorder %s242, %s244
    %p251 = scmp.eq.s32.totalorder %s24, 1
    %p252 = por %p250, %p251
    %p253 = scmp.ne.s32.totalorder %s244, %s245
    %p254 = scmp.eq.s32.totalorder %s24, 0
    %p255 = por %p253, %p254
    %p256 = scmp.ne.s32.totalorder %s244, %s245
    %p257 = scmp.eq.s32.totalorder %s25, 1
    %p258 = por %p256, %p257
    %p260 = scmp.ne.s32.totalorder %s245, %s259
    %p261 = scmp.eq.s32.totalorder %s25, 0
    %p262 = por %p260, %p261
    %s264 = sadd.s32 %s263, 1
    %p267 = scmp.eq.s32.totalorder %s19, 1
    %p268 = scmp.ne.s32.totalorder %s263, %s265
    %p269 = scmp.eq.s32.totalorder %s19, 0
    %p270 = por %p268, %p269
    %p271 = scmp.ne.s32.totalorder %s263, %s265
    %p272 = scmp.eq.s32.totalorder %s24, 1
    %p273 = por %p271, %p272
    %p274 = scmp.ne.s32.totalorder %s265, %s266
    %p275 = scmp.eq.s32.totalorder %s24, 0
    %p276 = por %p274, %p275
    %p277 = scmp.ne.s32.totalorder %s265, %s266
    %p278 = scmp.eq.s32.totalorder %s25, 1
    %p279 = por %p277, %p278
    %p281 = scmp.ne.s32.totalorder %s266, %s280
    %p282 = scmp.eq.s32.totalorder %s25, 0
    %p283 = por %p281, %p282
    %s285 = sadd.s32 %s284, 1
    %p288 = scmp.eq.s32.totalorder %s19, 1
    %p289 = scmp.ne.s32.totalorder %s284, %s286
    %p290 = scmp.eq.s32.totalorder %s19, 0
    %p291 = por %p289, %p290
    %p292 = scmp.ne.s32.totalorder %s284, %s286
    %p293 = scmp.eq.s32.totalorder %s24, 1
    %p294 = por %p292, %p293
    %p295 = scmp.ne.s32.totalorder %s286, %s287
    %p296 = scmp.eq.s32.totalorder %s24, 0
    %p297 = por %p295, %p296
    %p298 = scmp.ne.s32.totalorder %s286, %s287
    %p299 = scmp.eq.s32.totalorder %s25, 1
    %p300 = por %p298, %p299
    %p302 = scmp.ne.s32.totalorder %s287, %s301
    %p303 = scmp.eq.s32.totalorder %s25, 0
    %p304 = por %p302, %p303
    %s305 = ssub.s32 %s19, %s26
    %p306 = scmp.eq.s32.totalorder %s305, 0
    %s308 = sadd.s32 %s307, 1
    %s309 = scalar_select %p306, %s307, %s308
    %p312 = pneg %p306
    %p313 = scmp.eq.s32.totalorder %s19, 1
    %p314 = por %p312, %p313
    %p315 = scmp.ne.s32.totalorder %s307, %s310
    %p316 = scmp.eq.s32.totalorder %s19, 0
    %p317 = por %p315, %p316
    %p318 = scmp.ne.s32.totalorder %s307, %s310
    %p319 = scmp.eq.s32.totalorder %s24, 1
    %p320 = por %p318, %p319
    %p321 = scmp.ne.s32.totalorder %s310, %s311
    %p322 = scmp.eq.s32.totalorder %s24, 0
    %p323 = por %p321, %p322
    %p324 = scmp.ne.s32.totalorder %s310, %s311
    %p325 = scmp.eq.s32.totalorder %s25, 1
    %p326 = por %p324, %p325
    %p328 = scmp.ne.s32.totalorder %s311, %s327
    %p329 = scmp.eq.s32.totalorder %s25, 0
    %p330 = por %p328, %p329
    %p331 = scmp.le.s32.totalorder 1, %s19
    %p332 = scmp.lt.s32.totalorder %s19, 3
    %p333 = pnand %p331, %p332
    %p334 = pneg %p333
    // Predicated region
    $region9: #{_lambda_.1} parent=5 // pred_check
      _
    $region10: #{_lambda_.1} parent=5 // pred_check_branch
      %336 = sbr.rel (%p333) target = $region12
    $region11: #{_lambda_.1} parent=5 // pred_region
      %s337 = ssub.s32 %s19, 1
      // Predicated region
      $region13: #{_lambda_.1} parent=11 // pred_check
        %p338 = pneg %p66
      $region14: #{_lambda_.1} parent=11 // pred_check_branch
        %340 = sbr.rel (%p338) target = $region16
      $region15: #{_lambda_.1} parent=11 // pred_region
        _
      $region16: #{_lambda_.1} parent=11 // pred_fallthru
        _
      // Predicated region
      $region17: #{_lambda_.1} parent=11 // pred_check
        %p341 = pneg %p87
      $region18: #{_lambda_.1} parent=11 // pred_check_branch
        %343 = sbr.rel (%p341) target = $region20
      $region19: #{_lambda_.1} parent=11 // pred_region
        _
      $region20: #{_lambda_.1} parent=11 // pred_fallthru
        _
      // Predicated region
      $region21: #{_lambda_.1} parent=11 // pred_check
        %p344 = pneg %p108
      $region22: #{_lambda_.1} parent=11 // pred_check_branch
        %346 = sbr.rel (%p344) target = $region24
      $region23: #{_lambda_.1} parent=11 // pred_region
        _
      $region24: #{_lambda_.1} parent=11 // pred_fallthru
        _
      // Predicated region
      $region25: #{_lambda_.1} parent=11 // pred_check
        %p347 = pneg %p129
      $region26: #{_lambda_.1} parent=11 // pred_check_branch
        %349 = sbr.rel (%p347) target = $region28
      $region27: #{_lambda_.1} parent=11 // pred_region
        _
      $region28: #{_lambda_.1} parent=11 // pred_fallthru
        _
      // Predicated region
      $region29: #{_lambda_.1} parent=11 // pred_check
        %p350 = pneg %p150
      $region30: #{_lambda_.1} parent=11 // pred_check_branch
        %352 = sbr.rel (%p350) target = $region32
      $region31: #{_lambda_.1} parent=11 // pred_region
        _
      $region32: #{_lambda_.1} parent=11 // pred_fallthru
        _
      // Predicated region
      $region33: #{_lambda_.1} parent=11 // pred_check
        %p353 = pneg %p171
      $region34: #{_lambda_.1} parent=11 // pred_check_branch
        %355 = sbr.rel (%p353) target = $region36
      $region35: #{_lambda_.1} parent=11 // pred_region
        _
      $region36: #{_lambda_.1} parent=11 // pred_fallthru
        _
      // Predicated region
      $region37: #{_lambda_.1} parent=11 // pred_check
        %p356 = pneg %p192
      $region38: #{_lambda_.1} parent=11 // pred_check_branch
        %358 = sbr.rel (%p356) target = $region40
      $region39: #{_lambda_.1} parent=11 // pred_region
        _
      $region40: #{_lambda_.1} parent=11 // pred_fallthru
        _
      // Predicated region
      $region41: #{_lambda_.1} parent=11 // pred_check
        %p359 = pneg %p213
      $region42: #{_lambda_.1} parent=11 // pred_check_branch
        %361 = sbr.rel (%p359) target = $region44
      $region43: #{_lambda_.1} parent=11 // pred_region
        _
      $region44: #{_lambda_.1} parent=11 // pred_fallthru
        _
      // Predicated region
      $region45: #{_lambda_.1} parent=11 // pred_check
        %p362 = pneg %p234
      $region46: #{_lambda_.1} parent=11 // pred_check_branch
        %364 = sbr.rel (%p362) target = $region48
      $region47: #{_lambda_.1} parent=11 // pred_region
        _
      $region48: #{_lambda_.1} parent=11 // pred_fallthru
        _
      // Predicated region
      $region49: #{_lambda_.1} parent=11 // pred_check
        %p365 = pneg %p255
      $region50: #{_lambda_.1} parent=11 // pred_check_branch
        %367 = sbr.rel (%p365) target = $region52
      $region51: #{_lambda_.1} parent=11 // pred_region
        _
      $region52: #{_lambda_.1} parent=11 // pred_fallthru
        _
      // Predicated region
      $region53: #{_lambda_.1} parent=11 // pred_check
        %p368 = pneg %p276
      $region54: #{_lambda_.1} parent=11 // pred_check_branch
        %370 = sbr.rel (%p368) target = $region56
      $region55: #{_lambda_.1} parent=11 // pred_region
        _
      $region56: #{_lambda_.1} parent=11 // pred_fallthru
        _
      // Predicated region
      $region57: #{_lambda_.1} parent=11 // pred_check
        %p371 = pneg %p297
      $region58: #{_lambda_.1} parent=11 // pred_check_branch
        %373 = sbr.rel (%p371) target = $region60
      $region59: #{_lambda_.1} parent=11 // pred_region
        _
      $region60: #{_lambda_.1} parent=11 // pred_fallthru
        _
    $region12: #{_lambda_.1} parent=5 // pred_fallthru
      _
    %p374 = scmp.lt.s32.totalorder %s19, 2
    // Predicated region
    $region61: #{_lambda_.1} parent=5 // pred_check
      %p375 = pneg %p374
    $region62: #{_lambda_.1} parent=5 // pred_check_branch
      %377 = sbr.rel (%p375) target = $region64
    $region63: #{_lambda_.1} parent=5 // pred_region
      // Predicated region
      $region65: #{_lambda_.1} parent=63 // pred_check
        %p378 = pneg %p39
      $region66: #{_lambda_.1} parent=63 // pred_check_branch
        %380 = sbr.rel (%p378) target = $region68
      $region67: #{_lambda_.1} parent=63 // pred_region
        %s381 = smul.u32 2, %s19
        %p382 = scmp.lt.s32.totalorder %s381, 3
        %s383 = scalar_select %p382, %s381, 3
        %s384 = smul.addr %s383, 8
        %s385 = scalar_lea.vmem %s0, %s384
        %s386 = smul.u32 2, %s19
      $region68: #{_lambda_.1} parent=63 // pred_fallthru
        _
    $region64: #{_lambda_.1} parent=5 // pred_fallthru
      _
    %p387 = scmp.le.s32.totalorder 1, %s19
    %p388 = scmp.lt.s32.totalorder %s19, 3
    %p389 = pnand %p387, %p388
    %p390 = pneg %p389
    // Predicated region
    $region69: #{_lambda_.1} parent=5 // pred_check
      _
    $region70: #{_lambda_.1} parent=5 // pred_check_branch
      %392 = sbr.rel (%p389) target = $region72
    $region71: #{_lambda_.1} parent=5 // pred_region
      %s393 = ssub.s32 %s19, 1
      %s394 = smul.u32 2, %s24
      %p395 = scmp.lt.s32.totalorder %s394, 3
      %s396 = scalar_select %p395, %s394, 3
      %s397 = smul.addr %s396, 8
      %s398 = scalar_lea.vmem %s0, %s397
      %p399 = pneg %p45
      %p400 = pneg %p42
      %p401 = pneg %p66
      %p402 = pneg %p63
      %p403 = pneg %p87
      %p404 = pneg %p84
      %p405 = pneg %p108
      %p406 = pneg %p105
      %p407 = pneg %p129
      %p408 = pneg %p126
      %p409 = pneg %p150
      %p410 = pneg %p147
      %p411 = pneg %p171
      %p412 = pneg %p168
      %p413 = pneg %p192
      %p414 = pneg %p189
      %p415 = pneg %p213
      %p416 = pneg %p210
      %p417 = pneg %p234
      %p418 = pneg %p231
      %p419 = pneg %p255
      %p420 = pneg %p252
      %p421 = pneg %p276
      %p422 = pneg %p273
      %p423 = pneg %p297
      %p424 = pneg %p294
      %p425 = pneg %p323
      %p426 = pneg %p320
      %s427 = smul.u32 2, %s24
      %p428 = scmp.lt.s32.totalorder %s427, 3
      %s429 = scalar_select %p428, %s427, 3
      %s430 = smul.addr %s429, 8
      %s431 = scalar_lea.vmem %s13, %s430
      %s432 = smul.u32 2, %s24
      %p433 = scmp.lt.s32.totalorder %s432, 3
      %s434 = scalar_select %p433, %s432, 3
      %s435 = smul.addr %s434, 8
      %s436 = scalar_lea.vmem %s0, %s435
      %s437 = smul.u32 2, %s24
      %s438 = smul.u32 2, %s24
      %p439 = scmp.lt.s32.totalorder %s438, 3
      %s440 = scalar_select %p439, %s438, 3
      %s441 = smul.addr %s440, 8
      %s442 = scalar_lea.vmem %s13, %s441
      %s443 = smul.u32 2, %s24
      %v445 = vld [vmem:[%s436] sm:$0xff]
      %v446 = vld [vmem:[%s436 + $0x8] sm:$0xff]
      %447 = vrot.lane.b32.xlu0 %v445, 17
      %v448 = vpop.permute.xlu0 %447
      %449 = vrot.lane.b32.xlu0 %v446, 17
      %v450 = vpop.permute.xlu0 %449
      %v451 = vlaneseq
      %v452 = vand.u32 %v451, 127
      %vm453 = vcmp.lt.s32.totalorder %v452, 17
      %v454 = vsel %vm453, %v448, %v450
      %v455 = vsel %vm453, %v450, %v448
      %v456 = vld [vmem:[%s1] ss:$8 sm:$0x3]
      %v458 = vperm.slane %v456, 0
      %v459 = vperm.slane %v456, 1
      %v462 = vmul.f32 %v455, %v458
      %v463 = vmul.f32 %v454, %v459
      %464 = vrot.lane.b32.xlu0 %v445, 16
      %v465 = vpop.permute.xlu0 %464
      %466 = vrot.lane.b32.xlu0 %v446, 16
      %v467 = vpop.permute.xlu0 %466
      %vm468 = vcmp.lt.s32.totalorder %v452, 16
      %v469 = vsel %vm468, %v465, %v467
      %v470 = vsel %vm468, %v467, %v465
      %s471 = scalar_lea.vmem %s1, 1
      %v472 = vld [vmem:[%s471] ss:$8 sm:$0x3]
      %v474 = vperm.slane %v472, 0
      %v475 = vperm.slane %v472, 1
      %v478 = vmul.f32 %v470, %v474
      %v479 = vmul.f32 %v469, %v475
      %480 = vrot.lane.b32.xlu0 %v445, 15
      %v481 = vpop.permute.xlu0 %480
      %482 = vrot.lane.b32.xlu0 %v446, 15
      %v483 = vpop.permute.xlu0 %482
      %vm484 = vcmp.lt.s32.totalorder %v452, 15
      %v485 = vsel %vm484, %v481, %v483
      %v486 = vsel %vm484, %v483, %v481
      %s487 = scalar_lea.vmem %s1, 2
      %v488 = vld [vmem:[%s487] ss:$8 sm:$0x3]
      %v490 = vperm.slane %v488, 0
      %v491 = vperm.slane %v488, 1
      %v494 = vmul.f32 %v486, %v490
      %v495 = vmul.f32 %v485, %v491
      %496 = vrot.lane.b32.xlu0 %v445, 14
      %v497 = vpop.permute.xlu0 %496
      %498 = vrot.lane.b32.xlu0 %v446, 14
      %v499 = vpop.permute.xlu0 %498
      %vm500 = vcmp.lt.s32.totalorder %v452, 14
      %v501 = vsel %vm500, %v497, %v499
      %v502 = vsel %vm500, %v499, %v497
      %s503 = scalar_lea.vmem %s1, 3
      %v504 = vld [vmem:[%s503] ss:$8 sm:$0x3]
      %v506 = vperm.slane %v504, 0
      %v507 = vperm.slane %v504, 1
      %v510 = vmul.f32 %v502, %v506
      %v511 = vmul.f32 %v501, %v507
      %512 = vrot.lane.b32.xlu0 %v445, 1
      %v513 = vpop.permute.xlu0 %512
      %514 = vrot.lane.b32.xlu0 %v446, 1
      %v515 = vpop.permute.xlu0 %514
      %vm516 = vcmp.lt.s32.totalorder %v452, 1
      %v517 = vsel %vm516, %v513, %v515
      %v518 = vsel %vm516, %v515, %v513
      %s519 = scalar_lea.vmem %s1, 4
      %v520 = vld [vmem:[%s519] ss:$8 sm:$0x3]
      %v522 = vperm.slane %v520, 0
      %v523 = vperm.slane %v520, 1
      %v526 = vmul.f32 %v518, %v522
      %v527 = vmul.f32 %v517, %v523
      %528 = vrot.lane.b32.xlu0 %v445, 127
      %v529 = vpop.permute.xlu0 %528
      %530 = vrot.lane.b32.xlu0 %v446, 127
      %v531 = vpop.permute.xlu0 %530
      %vm532 = vcmp.lt.s32.totalorder %v452, 127
      %v533 = vsel %vm532, %v529, %v531
      %v534 = vsel %vm532, %v531, %v529
      %s535 = scalar_lea.vmem %s1, 6
      %v536 = vld [vmem:[%s535] ss:$8 sm:$0x3]
      %v538 = vperm.slane %v536, 0
      %v539 = vperm.slane %v536, 1
      %v542 = vmul.f32 %v533, %v538
      %v543 = vmul.f32 %v534, %v539
      %544 = vrot.lane.b32.xlu0 %v445, 126
      %v545 = vpop.permute.xlu0 %544
      %546 = vrot.lane.b32.xlu0 %v446, 126
      %v547 = vpop.permute.xlu0 %546
      %vm548 = vcmp.lt.s32.totalorder %v452, 126
      %v549 = vsel %vm548, %v545, %v547
      %v550 = vsel %vm548, %v547, %v545
      %s551 = scalar_lea.vmem %s1, 7
      %v552 = vld [vmem:[%s551] ss:$8 sm:$0x3]
      %v554 = vperm.slane %v552, 0
      %v555 = vperm.slane %v552, 1
      %v558 = vmul.f32 %v549, %v554
      %v559 = vmul.f32 %v550, %v555
      %560 = vrot.lane.b32.xlu0 %v445, 113
      %v561 = vpop.permute.xlu0 %560
      %562 = vrot.lane.b32.xlu0 %v446, 113
      %v563 = vpop.permute.xlu0 %562
      %vm564 = vcmp.lt.s32.totalorder %v452, 113
      %v565 = vsel %vm564, %v561, %v563
      %v566 = vsel %vm564, %v563, %v561
      %s567 = scalar_lea.vmem %s1, 16
      %v568 = vld [vmem:[%s567] ss:$8 sm:$0x3]
      %v570 = vperm.slane %v568, 0
      %v571 = vperm.slane %v568, 1
      %v574 = vmul.f32 %v565, %v570
      %v575 = vmul.f32 %v566, %v571
      %576 = vrot.lane.b32.xlu0 %v445, 112
      %v577 = vpop.permute.xlu0 %576
      %578 = vrot.lane.b32.xlu0 %v446, 112
      %v579 = vpop.permute.xlu0 %578
      %vm580 = vcmp.lt.s32.totalorder %v452, 112
      %v581 = vsel %vm580, %v577, %v579
      %v582 = vsel %vm580, %v579, %v577
      %s583 = scalar_lea.vmem %s1, 17
      %v584 = vld [vmem:[%s583] ss:$8 sm:$0x3]
      %v586 = vperm.slane %v584, 0
      %v587 = vperm.slane %v584, 1
      %v590 = vmul.f32 %v581, %v586
      %v591 = vmul.f32 %v582, %v587
      %592 = vrot.lane.b32.xlu0 %v445, 111
      %v593 = vpop.permute.xlu0 %592
      %594 = vrot.lane.b32.xlu0 %v446, 111
      %v595 = vpop.permute.xlu0 %594
      %vm596 = vcmp.lt.s32.totalorder %v452, 111
      %v597 = vsel %vm596, %v593, %v595
      %v598 = vsel %vm596, %v595, %v593
      %s599 = scalar_lea.vmem %s1, 18
      %v600 = vld [vmem:[%s599] ss:$8 sm:$0x3]
      %v602 = vperm.slane %v600, 0
      %v603 = vperm.slane %v600, 1
      %v606 = vmul.f32 %v597, %v602
      %v607 = vmul.f32 %v598, %v603
      %608 = vrot.lane.b32.xlu0 %v445, 110
      %v609 = vpop.permute.xlu0 %608
      %610 = vrot.lane.b32.xlu0 %v446, 110
      %v611 = vpop.permute.xlu0 %610
      %vm612 = vcmp.lt.s32.totalorder %v452, 110
      %v613 = vsel %vm612, %v609, %v611
      %v614 = vsel %vm612, %v611, %v609
      %s615 = scalar_lea.vmem %s1, 19
      %v616 = vld [vmem:[%s615] ss:$8 sm:$0x3]
      %v618 = vperm.slane %v616, 0
      %v619 = vperm.slane %v616, 1
      %v622 = vmul.f32 %v613, %v618
      %v623 = vmul.f32 %v614, %v619
      %624 = vrot.lane.b32.xlu0 %v445, 97
      %v625 = vpop.permute.xlu0 %624
      %626 = vrot.lane.b32.xlu0 %v446, 97
      %v627 = vpop.permute.xlu0 %626
      %vm628 = vcmp.lt.s32.totalorder %v452, 97
      %v629 = vsel %vm628, %v625, %v627
      %v630 = vsel %vm628, %v627, %v625
      %s631 = scalar_lea.vmem %s1, 20
      %v632 = vld [vmem:[%s631] ss:$8 sm:$0x3]
      %v634 = vperm.slane %v632, 0
      %v635 = vperm.slane %v632, 1
      %v638 = vmul.f32 %v629, %v634
      %v639 = vmul.f32 %v630, %v635
      %640 = vrot.lane.b32.xlu0 %v445, 96
      %v641 = vpop.permute.xlu0 %640
      %642 = vrot.lane.b32.xlu0 %v446, 96
      %v643 = vpop.permute.xlu0 %642
      %vm644 = vcmp.lt.s32.totalorder %v452, 96
      %v645 = vsel %vm644, %v641, %v643
      %v646 = vsel %vm644, %v643, %v641
      %s647 = scalar_lea.vmem %s1, 21
      %v648 = vld [vmem:[%s647] ss:$8 sm:$0x3]
      %v650 = vperm.slane %v648, 0
      %v651 = vperm.slane %v648, 1
      %v654 = vmul.f32 %v645, %v650
      %v655 = vmul.f32 %v646, %v651
      %656 = vrot.lane.b32.xlu0 %v445, 95
      %v657 = vpop.permute.xlu0 %656
      %658 = vrot.lane.b32.xlu0 %v446, 95
      %v659 = vpop.permute.xlu0 %658
      %vm660 = vcmp.lt.s32.totalorder %v452, 95
      %v661 = vsel %vm660, %v657, %v659
      %v662 = vsel %vm660, %v659, %v657
      %s663 = scalar_lea.vmem %s1, 22
      %v664 = vld [vmem:[%s663] ss:$8 sm:$0x3]
      %v666 = vperm.slane %v664, 0
      %v667 = vperm.slane %v664, 1
      %v670 = vmul.f32 %v661, %v666
      %v671 = vmul.f32 %v662, %v667
      %672 = vrot.lane.b32.xlu0 %v445, 94
      %v673 = vpop.permute.xlu0 %672
      %674 = vrot.lane.b32.xlu0 %v446, 94
      %v675 = vpop.permute.xlu0 %674
      %vm676 = vcmp.lt.s32.totalorder %v452, 94
      %v677 = vsel %vm676, %v673, %v675
      %v678 = vsel %vm676, %v675, %v673
      %s679 = scalar_lea.vmem %s1, 23
      %v680 = vld [vmem:[%s679] ss:$8 sm:$0x3]
      %v682 = vperm.slane %v680, 0
      %v683 = vperm.slane %v680, 1
      %v686 = vmul.f32 %v677, %v682
      %v687 = vmul.f32 %v678, %v683
      %v688 = vld [vmem:[%s11] sm:$0xf]
      %v689 = vld [vmem:[%s11 + $0xc] sm:$0xf]
      %v690 = vpack.c.bf16 %v478, %v462
      %v691 = vpack.c.bf16 %v479, %v463
      %v692 = vpack.c.bf16 %v510, %v494
      %v693 = vpack.c.bf16 %v511, %v495
      %v694 = vpack.c.bf16 %v445, %v526
      %v695 = vpack.c.bf16 %v446, %v527
      %v696 = vpack.c.bf16 %v558, %v542
      %v697 = vpack.c.bf16 %v559, %v543
      %v698 = vpack.c.bf16 %v590, %v574
      %v699 = vpack.c.bf16 %v591, %v575
      %v700 = vpack.c.bf16 %v622, %v606
      %v701 = vpack.c.bf16 %v623, %v607
      %v702 = vpack.c.bf16 %v654, %v638
      %v703 = vpack.c.bf16 %v655, %v639
      %v704 = vpack.c.bf16 %v686, %v670
      %v705 = vpack.c.bf16 %v687, %v671
      %v708 = vunpack.c.l.b16 %v688
      %v709 = vunpack.c.l.b16 %v689
      %v710 = vpack.c.b16 %v709, %v708
      %712 = vmatpush.bf16.msra.mxu0 %v704
      %713 = vmatpush.bf16.msra.mxu0 %v702
      %714 = vmatpush.bf16.msra.mxu0 %v700
      %715 = vmatpush.bf16.msra.mxu0 %v698
      %716 = vmatpush.bf16.msra.mxu0 %v696
      %717 = vmatpush.bf16.msra.mxu0 %v694
      %718 = vmatpush.bf16.msra.mxu0 %v692
      %719 = vmatpush.bf16.msra.mxu0 %v690
      %720 = vmatmul.bf16.gmra.mxu0 %v710
      %v721 = vpop.f32.mrf.mxu0
      %v722 = vadd.f32 0.0, %v721
      %v723 = vpop.f32.mrf.mxu0
      %724 = vdwg.mxu0
      %725 = vmatpush.bf16.msra.mxu0 %v705
      %726 = vmatpush.bf16.msra.mxu0 %v703
      %727 = vmatpush.bf16.msra.mxu0 %v701
      %728 = vmatpush.bf16.msra.mxu0 %v699
      %729 = vmatpush.bf16.msra.mxu0 %v697
      %730 = vmatpush.bf16.msra.mxu0 %v695
      %731 = vmatpush.bf16.msra.mxu0 %v693
      %732 = vmatpush.bf16.msra.mxu0 %v691
      %733 = vmatmul.bf16.gmra.mxu0 %v710
      %v734 = vpop.f32.mrf.mxu0
      %v735 = vadd.f32 0.0, %v734
      %v736 = vpop.f32.mrf.mxu0
      %737 = vdwg.mxu0
      %v738 = vpack.c.bf16 %v722, %v722
      %v739 = vpack.c.bf16 %v735, %v735
      %v740 = vld [vmem:[%s5] sm:$0xf]
      %v741 = vld [vmem:[%s5 + $0x4] sm:$0xf]
      %v742 = vld [vmem:[%s5 + $0x8] sm:$0xf]
      %v743 = vld [vmem:[%s5 + $0xc] sm:$0xf]
      %v744 = vld [vmem:[%s5 + $0x10] sm:$0xf]
      %v745 = vld [vmem:[%s5 + $0x14] sm:$0xf]
      %v746 = vld [vmem:[%s5 + $0x18] sm:$0xf]
      %v747 = vld [vmem:[%s5 + $0x1c] sm:$0xf]
      %v748 = vld [vmem:[%s5 + $0x20] sm:$0xf]
      %v749 = vld [vmem:[%s5 + $0x24] sm:$0xf]
      %v750 = vld [vmem:[%s5 + $0x28] sm:$0xf]
      %v751 = vld [vmem:[%s5 + $0x2c] sm:$0xf]
      %v752 = vld [vmem:[%s5 + $0x30] sm:$0xf]
      %v753 = vld [vmem:[%s5 + $0x34] sm:$0xf]
      %v754 = vld [vmem:[%s5 + $0x38] sm:$0xf]
      %v755 = vld [vmem:[%s5 + $0x3c] sm:$0xf]
      %v756 = vld [vmem:[%s5 + $0x40] sm:$0xf]
      %v757 = vld [vmem:[%s5 + $0x44] sm:$0xf]
      %v758 = vld [vmem:[%s5 + $0x48] sm:$0xf]
      %v759 = vld [vmem:[%s5 + $0x4c] sm:$0xf]
      %v760 = vld [vmem:[%s5 + $0x50] sm:$0xf]
      %v761 = vld [vmem:[%s5 + $0x54] sm:$0xf]
      %v762 = vld [vmem:[%s5 + $0x58] sm:$0xf]
      %v763 = vld [vmem:[%s5 + $0x5c] sm:$0xf]
      %v764 = vld [vmem:[%s5 + $0x60] sm:$0xf]
      %v765 = vld [vmem:[%s5 + $0x64] sm:$0xf]
      %v766 = vld [vmem:[%s5 + $0x68] sm:$0xf]
      %v767 = vld [vmem:[%s5 + $0x6c] sm:$0xf]
      %v768 = vld [vmem:[%s5 + $0x70] sm:$0xf]
      %v769 = vld [vmem:[%s5 + $0x74] sm:$0xf]
      %v770 = vld [vmem:[%s5 + $0x78] sm:$0xf]
      %v771 = vld [vmem:[%s5 + $0x7c] sm:$0xf]
      %v772 = vld [vmem:[%s12] sm:$0xff]
      %774 = vset.pattern.permute.xlu0 0
      %775 = vperm.xlu0 %774, %v772
      %v776 = vpop.permute.xlu0 %775
      %v810 = vunpack.c.l.b16 %v740
      %v811 = vunpack.c.l.b16 %v741
      %v812 = vunpack.c.l.b16 %v742
      %v813 = vunpack.c.l.b16 %v743
      %v814 = vunpack.c.l.b16 %v744
      %v815 = vunpack.c.l.b16 %v745
      %v816 = vunpack.c.l.b16 %v746
      %v817 = vunpack.c.l.b16 %v747
      %v818 = vunpack.c.l.b16 %v748
      %v819 = vunpack.c.l.b16 %v749
      %v820 = vunpack.c.l.b16 %v750
      %v821 = vunpack.c.l.b16 %v751
      %v822 = vunpack.c.l.b16 %v752
      %v823 = vunpack.c.l.b16 %v753
      %v824 = vunpack.c.l.b16 %v754
      %v825 = vunpack.c.l.b16 %v755
      %v826 = vunpack.c.l.b16 %v756
      %v827 = vunpack.c.l.b16 %v757
      %v828 = vunpack.c.l.b16 %v758
      %v829 = vunpack.c.l.b16 %v759
      %v830 = vunpack.c.l.b16 %v760
      %v831 = vunpack.c.l.b16 %v761
      %v832 = vunpack.c.l.b16 %v762
      %v833 = vunpack.c.l.b16 %v763
      %v834 = vunpack.c.l.b16 %v764
      %v835 = vunpack.c.l.b16 %v765
      %v836 = vunpack.c.l.b16 %v766
      %v837 = vunpack.c.l.b16 %v767
      %v838 = vunpack.c.l.b16 %v768
      %v839 = vunpack.c.l.b16 %v769
      %v840 = vunpack.c.l.b16 %v770
      %v841 = vunpack.c.l.b16 %v771
      %v842 = vpack.c.b16 %v811, %v810
      %v843 = vpack.c.b16 %v813, %v812
      %v844 = vpack.c.b16 %v815, %v814
      %v845 = vpack.c.b16 %v817, %v816
      %v846 = vpack.c.b16 %v819, %v818
      %v847 = vpack.c.b16 %v821, %v820
      %v848 = vpack.c.b16 %v823, %v822
      %v849 = vpack.c.b16 %v825, %v824
      %v850 = vpack.c.b16 %v827, %v826
      %v851 = vpack.c.b16 %v829, %v828
      %v852 = vpack.c.b16 %v831, %v830
      %v853 = vpack.c.b16 %v833, %v832
      %v854 = vpack.c.b16 %v835, %v834
      %v855 = vpack.c.b16 %v837, %v836
      %v856 = vpack.c.b16 %v839, %v838
      %v857 = vpack.c.b16 %v841, %v840
      %874 = vmatpush.bf16.msra.mxu0 %v849
      %875 = vmatpush.bf16.msra.mxu0 %v848
      %876 = vmatpush.bf16.msra.mxu0 %v847
      %877 = vmatpush.bf16.msra.mxu0 %v846
      %878 = vmatpush.bf16.msra.mxu0 %v845
      %879 = vmatpush.bf16.msra.mxu0 %v844
      %880 = vmatpush.bf16.msra.mxu0 %v843
      %881 = vmatpush.bf16.msra.mxu0 %v842
      %882 = vmatmul.bf16.gmra.mxu0 %v738
      %v883 = vpop.f32.mrf.mxu0
      %v884 = vadd.f32 %v776, %v883
      %v885 = vpop.f32.mrf.mxu0
      %886 = vdwg.mxu0
      %887 = vmatpush.bf16.msra.mxu0 %v857
      %888 = vmatpush.bf16.msra.mxu0 %v856
      %889 = vmatpush.bf16.msra.mxu0 %v855
      %890 = vmatpush.bf16.msra.mxu0 %v854
      %891 = vmatpush.bf16.msra.mxu0 %v853
      %892 = vmatpush.bf16.msra.mxu0 %v852
      %893 = vmatpush.bf16.msra.mxu0 %v851
      %894 = vmatpush.bf16.msra.mxu0 %v850
      %895 = vmatmul.bf16.gmra.mxu0 %v739
      %v896 = vpop.f32.mrf.mxu0
      %v897 = vadd.f32 %v884, %v896
      %v898 = vpop.f32.mrf.mxu0
      %899 = vdwg.mxu0
      %v900 = vmax.f32 %v897, 0.0
      %902 = vrot.lane.b32.xlu0 %v900, 73
      %v903 = vpop.permute.xlu0 %902
      %905 = vrot.lane.b32.xlu0 %v900, 9
      %v906 = vpop.permute.xlu0 %905
      %vm908 = vcmask 72704
      %v909 = vsel %vm908, %v903, %v906
      %v910 = vld [vmem:[%s2] sm:$0x1]
      %v911 = vperm.slane %v910, 0
      %v912 = vmul.f32 %v909, %v911
      %913 = vrot.lane.b32.xlu0 %v900, 72
      %v914 = vpop.permute.xlu0 %913
      %916 = vrot.lane.b32.xlu0 %v900, 8
      %v917 = vpop.permute.xlu0 %916
      %vm919 = vcmask 64512
      %v920 = vsel %vm919, %v914, %v917
      %v921 = vld [vmem:[%s2 + $0x1] sm:$0x1]
      %v922 = vperm.slane %v921, 0
      %v923 = vmul.f32 %v920, %v922
      %924 = vrot.lane.b32.xlu0 %v900, 71
      %v925 = vpop.permute.xlu0 %924
      %927 = vrot.lane.b32.xlu0 %v900, 7
      %v928 = vpop.permute.xlu0 %927
      %vm930 = vcmask 56320
      %v931 = vsel %vm930, %v925, %v928
      %v932 = vld [vmem:[%s2 + $0x2] sm:$0x1]
      %v933 = vperm.slane %v932, 0
      %v934 = vmul.f32 %v931, %v933
      %935 = vrot.lane.b32.xlu0 %v900, 65
      %v936 = vpop.permute.xlu0 %935
      %938 = vrot.lane.b32.xlu0 %v900, 1
      %v939 = vpop.permute.xlu0 %938
      %vm941 = vcmask 7168
      %v942 = vsel %vm941, %v936, %v939
      %v943 = vld [vmem:[%s2 + $0x4] sm:$0x1]
      %v944 = vperm.slane %v943, 0
      %v945 = vmul.f32 %v942, %v944
      %946 = vrot.lane.b32.xlu0 %v900, 127
      %v947 = vpop.permute.xlu0 %946
      %949 = vrot.lane.b32.xlu0 %v900, 63
      %v950 = vpop.permute.xlu0 %949
      %vm952 = vcmask 515072
      %v953 = vsel %vm952, %v947, %v950
      %v954 = vld [vmem:[%s2 + $0x6] sm:$0x1]
      %v955 = vperm.slane %v954, 0
      %v956 = vmul.f32 %v953, %v955
      %957 = vrot.lane.b32.xlu0 %v900, 121
      %v958 = vpop.permute.xlu0 %957
      %960 = vrot.lane.b32.xlu0 %v900, 57
      %v961 = vpop.permute.xlu0 %960
      %vm963 = vcmask 465920
      %v964 = vsel %vm963, %v958, %v961
      %v965 = vld [vmem:[%s2 + $0x8] sm:$0x1]
      %v966 = vperm.slane %v965, 0
      %v967 = vmul.f32 %v964, %v966
      %968 = vrot.lane.b32.xlu0 %v900, 120
      %v969 = vpop.permute.xlu0 %968
      %971 = vrot.lane.b32.xlu0 %v900, 56
      %v972 = vpop.permute.xlu0 %971
      %vm974 = vcmask 457728
      %v975 = vsel %vm974, %v969, %v972
      %v976 = vld [vmem:[%s2 + $0x9] sm:$0x1]
      %v977 = vperm.slane %v976, 0
      %v978 = vmul.f32 %v975, %v977
      %979 = vrot.lane.b32.xlu0 %v900, 119
      %v980 = vpop.permute.xlu0 %979
      %982 = vrot.lane.b32.xlu0 %v900, 55
      %v983 = vpop.permute.xlu0 %982
      %vm985 = vcmask 449536
      %v986 = vsel %vm985, %v980, %v983
      %v987 = vld [vmem:[%s2 + $0xa] sm:$0x1]
      %v988 = vperm.slane %v987, 0
      %v989 = vmul.f32 %v986, %v988
      %v990 = vld [vmem:[%s11 + $0x18] sm:$0xf]
      %v991 = vld [vmem:[%s11 + $0x24] sm:$0xf]
      %v992 = vpack.c.bf16 %v923, %v912
      %v993 = vpack.c.bf16 %v945, %v934
      %v994 = vpack.c.bf16 %v956, %v900
      %v995 = vpack.c.bf16 %v978, %v967
      %v996 = vpack.c.bf16 %v989, %v989
      %v999 = vunpack.c.l.b16 %v990
      %v1000 = vunpack.c.l.b16 %v991
      %v1001 = vpack.c.b16 %v1000, %v999
      %vm1002 = vcmask 588800
      %v1004 = vsel %vm1002, %v1001, 0
      %vm1006 = vcmask 1043456
      %v1008 = vsel %vm1006, %v996, 0
      %1010 = vmatpush.bf16.msra.mxu0 0
      %1011 = vmatpush.bf16.msra.mxu0 0
      %1012 = vmatpush.bf16.msra.mxu0 0
      %1013 = vmatpush.bf16.msra.mxu0 %v1008
      %1014 = vmatpush.bf16.msra.mxu0 %v995
      %1015 = vmatpush.bf16.msra.mxu0 %v994
      %1016 = vmatpush.bf16.msra.mxu0 %v993
      %1017 = vmatpush.bf16.msra.mxu0 %v992
      %1018 = vmatmul.bf16.gmra.mxu0 %v1004
      %v1019 = vpop.f32.mrf.mxu0
      %v1020 = vadd.f32 0.0, %v1019
      %v1021 = vpop.f32.mrf.mxu0
      %1022 = vdwg.mxu0
      %v1023 = vld [vmem:[%s12 + $0x8] sm:$0xff]
      %1025 = vset.pattern.permute.xlu0 0
      %1026 = vperm.xlu0 %1025, %v1023
      %v1027 = vpop.permute.xlu0 %1026
      %v1029 = vadd.f32 %v1020, %v1027
      %v1030 = vmax.f32 %v1029, 0.0
      %1032 = vrot.lane.b32.xlu0 %v1030, 73
      %v1033 = vpop.permute.xlu0 %1032
      %1035 = vrot.lane.b32.xlu0 %v1030, 9
      %v1036 = vpop.permute.xlu0 %1035
      %v1038 = vsel %vm908, %v1033, %v1036
      %v1039 = vmul.f32 %v1038, %v911
      %1040 = vrot.lane.b32.xlu0 %v1030, 72
      %v1041 = vpop.permute.xlu0 %1040
      %1043 = vrot.lane.b32.xlu0 %v1030, 8
      %v1044 = vpop.permute.xlu0 %1043
      %v1046 = vsel %vm919, %v1041, %v1044
      %v1047 = vmul.f32 %v1046, %v922
      %1048 = vrot.lane.b32.xlu0 %v1030, 71
      %v1049 = vpop.permute.xlu0 %1048
      %1051 = vrot.lane.b32.xlu0 %v1030, 7
      %v1052 = vpop.permute.xlu0 %1051
      %v1054 = vsel %vm930, %v1049, %v1052
      %v1055 = vmul.f32 %v1054, %v933
      %1056 = vrot.lane.b32.xlu0 %v1030, 65
      %v1057 = vpop.permute.xlu0 %1056
      %1059 = vrot.lane.b32.xlu0 %v1030, 1
      %v1060 = vpop.permute.xlu0 %1059
      %v1062 = vsel %vm941, %v1057, %v1060
      %v1063 = vmul.f32 %v1062, %v944
      %1064 = vrot.lane.b32.xlu0 %v1030, 127
      %v1065 = vpop.permute.xlu0 %1064
      %1067 = vrot.lane.b32.xlu0 %v1030, 63
      %v1068 = vpop.permute.xlu0 %1067
      %v1070 = vsel %vm952, %v1065, %v1068
      %v1071 = vmul.f32 %v1070, %v955
      %1072 = vrot.lane.b32.xlu0 %v1030, 121
      %v1073 = vpop.permute.xlu0 %1072
      %1075 = vrot.lane.b32.xlu0 %v1030, 57
      %v1076 = vpop.permute.xlu0 %1075
      %v1078 = vsel %vm963, %v1073, %v1076
      %v1079 = vmul.f32 %v1078, %v966
      %1080 = vrot.lane.b32.xlu0 %v1030, 120
      %v1081 = vpop.permute.xlu0 %1080
      %1083 = vrot.lane.b32.xlu0 %v1030, 56
      %v1084 = vpop.permute.xlu0 %1083
      %v1086 = vsel %vm974, %v1081, %v1084
      %v1087 = vmul.f32 %v1086, %v977
      %1088 = vrot.lane.b32.xlu0 %v1030, 119
      %v1089 = vpop.permute.xlu0 %1088
      %1091 = vrot.lane.b32.xlu0 %v1030, 55
      %v1092 = vpop.permute.xlu0 %1091
      %v1094 = vsel %vm985, %v1089, %v1092
      %v1095 = vmul.f32 %v1094, %v988
      %v1096 = vld [vmem:[%s11 + $0x30] sm:$0xf]
      %v1097 = vld [vmem:[%s11 + $0x3c] sm:$0xf]
      %v1098 = vpack.c.bf16 %v1047, %v1039
      %v1099 = vpack.c.bf16 %v1063, %v1055
      %v1100 = vpack.c.bf16 %v1071, %v1030
      %v1101 = vpack.c.bf16 %v1087, %v1079
      %v1102 = vpack.c.bf16 %v1095, %v1095
      %v1105 = vunpack.c.l.b16 %v1096
      %v1106 = vunpack.c.l.b16 %v1097
      %v1107 = vpack.c.b16 %v1106, %v1105
      %v1109 = vsel %vm1002, %v1107, 0
      %v1112 = vsel %vm1006, %v1102, 0
      %1114 = vmatpush.bf16.msra.mxu0 0
      %1115 = vmatpush.bf16.msra.mxu0 0
      %1116 = vmatpush.bf16.msra.mxu0 0
      %1117 = vmatpush.bf16.msra.mxu0 %v1112
      %1118 = vmatpush.bf16.msra.mxu0 %v1101
      %1119 = vmatpush.bf16.msra.mxu0 %v1100
      %1120 = vmatpush.bf16.msra.mxu0 %v1099
      %1121 = vmatpush.bf16.msra.mxu0 %v1098
      %1122 = vmatmul.bf16.gmra.mxu0 %v1109
      %v1123 = vpop.f32.mrf.mxu0
      %v1124 = vadd.f32 0.0, %v1123
      %v1125 = vpop.f32.mrf.mxu0
      %1126 = vdwg.mxu0
      %v1127 = vld [vmem:[%s12 + $0x10] sm:$0xff]
      %1129 = vset.pattern.permute.xlu0 0
      %1130 = vperm.xlu0 %1129, %v1127
      %v1131 = vpop.permute.xlu0 %1130
      %v1133 = vadd.f32 %v1124, %v1131
      %v1134 = vadd.f32 %v1133, %v900
      %v1135 = vmax.f32 %v1134, 0.0
      %1137 = vrot.lane.b32.xlu0 %v1135, 73
      %v1138 = vpop.permute.xlu0 %1137
      %1140 = vrot.lane.b32.xlu0 %v1135, 9
      %v1141 = vpop.permute.xlu0 %1140
      %v1143 = vsel %vm908, %v1138, %v1141
      %v1144 = vmul.f32 %v1143, %v911
      %1145 = vrot.lane.b32.xlu0 %v1135, 72
      %v1146 = vpop.permute.xlu0 %1145
      %1148 = vrot.lane.b32.xlu0 %v1135, 8
      %v1149 = vpop.permute.xlu0 %1148
      %v1151 = vsel %vm919, %v1146, %v1149
      %v1152 = vmul.f32 %v1151, %v922
      %1153 = vrot.lane.b32.xlu0 %v1135, 71
      %v1154 = vpop.permute.xlu0 %1153
      %1156 = vrot.lane.b32.xlu0 %v1135, 7
      %v1157 = vpop.permute.xlu0 %1156
      %v1159 = vsel %vm930, %v1154, %v1157
      %v1160 = vmul.f32 %v1159, %v933
      %1161 = vrot.lane.b32.xlu0 %v1135, 70
      %v1162 = vpop.permute.xlu0 %1161
      %1164 = vrot.lane.b32.xlu0 %v1135, 6
      %v1165 = vpop.permute.xlu0 %1164
      %vm1167 = vcmask 48128
      %v1168 = vsel %vm1167, %v1162, %v1165
      %v1169 = vld [vmem:[%s2 + $0x3] sm:$0x1]
      %v1170 = vperm.slane %v1169, 0
      %v1171 = vmul.f32 %v1168, %v1170
      %1172 = vrot.lane.b32.xlu0 %v1135, 65
      %v1173 = vpop.permute.xlu0 %1172
      %1175 = vrot.lane.b32.xlu0 %v1135, 1
      %v1176 = vpop.permute.xlu0 %1175
      %v1178 = vsel %vm941, %v1173, %v1176
      %v1179 = vmul.f32 %v1178, %v944
      %1180 = vrot.lane.b32.xlu0 %v1135, 127
      %v1181 = vpop.permute.xlu0 %1180
      %1183 = vrot.lane.b32.xlu0 %v1135, 63
      %v1184 = vpop.permute.xlu0 %1183
      %v1186 = vsel %vm952, %v1181, %v1184
      %v1187 = vmul.f32 %v1186, %v955
      %1188 = vrot.lane.b32.xlu0 %v1135, 126
      %v1189 = vpop.permute.xlu0 %1188
      %1191 = vrot.lane.b32.xlu0 %v1135, 62
      %v1192 = vpop.permute.xlu0 %1191
      %vm1194 = vcmask 506880
      %v1195 = vsel %vm1194, %v1189, %v1192
      %v1196 = vld [vmem:[%s2 + $0x7] sm:$0x1]
      %v1197 = vperm.slane %v1196, 0
      %v1198 = vmul.f32 %v1195, %v1197
      %1199 = vrot.lane.b32.xlu0 %v1135, 121
      %v1200 = vpop.permute.xlu0 %1199
      %1202 = vrot.lane.b32.xlu0 %v1135, 57
      %v1203 = vpop.permute.xlu0 %1202
      %v1205 = vsel %vm963, %v1200, %v1203
      %v1206 = vmul.f32 %v1205, %v966
      %1207 = vrot.lane.b32.xlu0 %v1135, 120
      %v1208 = vpop.permute.xlu0 %1207
      %1210 = vrot.lane.b32.xlu0 %v1135, 56
      %v1211 = vpop.permute.xlu0 %1210
      %v1213 = vsel %vm974, %v1208, %v1211
      %v1214 = vmul.f32 %v1213, %v977
      %1215 = vrot.lane.b32.xlu0 %v1135, 119
      %v1216 = vpop.permute.xlu0 %1215
      %1218 = vrot.lane.b32.xlu0 %v1135, 55
      %v1219 = vpop.permute.xlu0 %1218
      %v1221 = vsel %vm985, %v1216, %v1219
      %v1222 = vmul.f32 %v1221, %v988
      %1223 = vrot.lane.b32.xlu0 %v1135, 118
      %v1224 = vpop.permute.xlu0 %1223
      %1226 = vrot.lane.b32.xlu0 %v1135, 54
      %v1227 = vpop.permute.xlu0 %1226
      %vm1229 = vcmask 441344
      %v1230 = vsel %vm1229, %v1224, %v1227
      %v1231 = vld [vmem:[%s2 + $0xb] sm:$0x1]
      %v1232 = vperm.slane %v1231, 0
      %v1233 = vmul.f32 %v1230, %v1232
      %1234 = vrot.lane.b32.xlu0 %v1135, 113
      %v1235 = vpop.permute.xlu0 %1234
      %1237 = vrot.lane.b32.xlu0 %v1135, 49
      %v1238 = vpop.permute.xlu0 %1237
      %vm1240 = vcmask 400384
      %v1241 = vsel %vm1240, %v1235, %v1238
      %v1242 = vld [vmem:[%s2 + $0xc] sm:$0x1]
      %v1243 = vperm.slane %v1242, 0
      %v1244 = vmul.f32 %v1241, %v1243
      %1245 = vrot.lane.b32.xlu0 %v1135, 112
      %v1246 = vpop.permute.xlu0 %1245
      %1248 = vrot.lane.b32.xlu0 %v1135, 48
      %v1249 = vpop.permute.xlu0 %1248
      %vm1251 = vcmask 392192
      %v1252 = vsel %vm1251, %v1246, %v1249
      %v1253 = vld [vmem:[%s2 + $0xd] sm:$0x1]
      %v1254 = vperm.slane %v1253, 0
      %v1255 = vmul.f32 %v1252, %v1254
      %1256 = vrot.lane.b32.xlu0 %v1135, 111
      %v1257 = vpop.permute.xlu0 %1256
      %1259 = vrot.lane.b32.xlu0 %v1135, 47
      %v1260 = vpop.permute.xlu0 %1259
      %vm1262 = vcmask 384000
      %v1263 = vsel %vm1262, %v1257, %v1260
      %v1264 = vld [vmem:[%s2 + $0xe] sm:$0x1]
      %v1265 = vperm.slane %v1264, 0
      %v1266 = vmul.f32 %v1263, %v1265
      %1267 = vrot.lane.b32.xlu0 %v1135, 110
      %v1268 = vpop.permute.xlu0 %1267
      %1270 = vrot.lane.b32.xlu0 %v1135, 46
      %v1271 = vpop.permute.xlu0 %1270
      %vm1273 = vcmask 375808
      %v1274 = vsel %vm1273, %v1268, %v1271
      %v1275 = vld [vmem:[%s2 + $0xf] sm:$0x1]
      %v1276 = vperm.slane %v1275, 0
      %v1277 = vmul.f32 %v1274, %v1276
      %v1278 = vld [vmem:[%s11 + $0x48] sm:$0xf]
      %v1279 = vld [vmem:[%s11 + $0x54] sm:$0xf]
      %v1280 = vpack.c.bf16 %v1152, %v1144
      %v1281 = vpack.c.bf16 %v1171, %v1160
      %v1282 = vpack.c.bf16 %v1135, %v1179
      %v1283 = vpack.c.bf16 %v1198, %v1187
      %v1284 = vpack.c.bf16 %v1214, %v1206
      %v1285 = vpack.c.bf16 %v1233, %v1222
      %v1286 = vpack.c.bf16 %v1255, %v1244
      %v1287 = vpack.c.bf16 %v1277, %v1266
      %v1290 = vunpack.c.l.b16 %v1278
      %v1291 = vunpack.c.l.b16 %v1279
      %v1292 = vpack.c.b16 %v1291, %v1290
      %1294 = vmatpush.bf16.msra.mxu0 %v1287
      %1295 = vmatpush.bf16.msra.mxu0 %v1286
      %1296 = vmatpush.bf16.msra.mxu0 %v1285
      %1297 = vmatpush.bf16.msra.mxu0 %v1284
      %1298 = vmatpush.bf16.msra.mxu0 %v1283
      %1299 = vmatpush.bf16.msra.mxu0 %v1282
      %1300 = vmatpush.bf16.msra.mxu0 %v1281
      %1301 = vmatpush.bf16.msra.mxu0 %v1280
      %1302 = vmatmul.bf16.gmra.mxu0 %v1292
      %v1303 = vpop.f32.mrf.mxu0
      %v1304 = vadd.f32 0.0, %v1303
      %v1305 = vpop.f32.mrf.mxu0
      %v1306 = vadd.f32 0.0, %v1305
      %1307 = vdwg.mxu0
      %v1308 = vpack.c.bf16 %v1306, %v1304
      %v1309 = vld [vmem:[%s6] sm:$0xf]
      %v1310 = vld [vmem:[%s6 + $0x4] sm:$0xf]
      %v1311 = vld [vmem:[%s6 + $0x8] sm:$0xf]
      %v1312 = vld [vmem:[%s6 + $0xc] sm:$0xf]
      %v1313 = vld [vmem:[%s6 + $0x10] sm:$0xf]
      %v1314 = vld [vmem:[%s6 + $0x14] sm:$0xf]
      %v1315 = vld [vmem:[%s6 + $0x18] sm:$0xf]
      %v1316 = vld [vmem:[%s6 + $0x1c] sm:$0xf]
      %v1317 = vld [vmem:[%s12 + $0x18] sm:$0xff]
      %v1318 = vld [vmem:[%s12 + $0x20] sm:$0xff]
      %1320 = vset.pattern.permute.xlu0 0
      %1321 = vperm.xlu0 %1320, %v1317
      %v1322 = vpop.permute.xlu0 %1321
      %1325 = vset.pattern.permute.xlu0 0
      %1326 = vperm.xlu0 %1325, %v1318
      %v1327 = vpop.permute.xlu0 %1326
      %v1337 = vunpack.c.l.b16 %v1309
      %v1338 = vunpack.c.l.b16 %v1310
      %v1339 = vunpack.c.l.b16 %v1311
      %v1340 = vunpack.c.l.b16 %v1312
      %v1341 = vunpack.c.l.b16 %v1313
      %v1342 = vunpack.c.l.b16 %v1314
      %v1343 = vunpack.c.l.b16 %v1315
      %v1344 = vunpack.c.l.b16 %v1316
      %v1345 = vpack.c.b16 %v1338, %v1337
      %v1346 = vpack.c.b16 %v1340, %v1339
      %v1347 = vpack.c.b16 %v1342, %v1341
      %v1348 = vpack.c.b16 %v1344, %v1343
      %vm1353 = vcmask 523264
      %v1355 = vsel %vm1353, %v1308, 0
      %1357 = vmatpush.bf16.msra.mxu0 0
      %1358 = vmatpush.bf16.msra.mxu0 0
      %1359 = vmatpush.bf16.msra.mxu0 0
      %1360 = vmatpush.bf16.msra.mxu0 0
      %1361 = vmatpush.bf16.msra.mxu0 %v1348
      %1362 = vmatpush.bf16.msra.mxu0 %v1347
      %1363 = vmatpush.bf16.msra.mxu0 %v1346
      %1364 = vmatpush.bf16.msra.mxu0 %v1345
      %1365 = vmatmul.bf16.gmra.mxu0 %v1355
      %v1366 = vpop.f32.mrf.mxu0
      %v1367 = vadd.f32 %v1322, %v1366
      %v1368 = vpop.f32.mrf.mxu0
      %v1369 = vadd.f32 %v1327, %v1368
      %1370 = vdwg.mxu0
      %v1371 = vmax.f32 %v1367, 0.0
      %v1372 = vmax.f32 %v1369, 0.0
      %1375 = vrot.lane.b32.xlu0 %v1371, 117
      %v1376 = vpop.permute.xlu0 %1375
      %1377 = vrot.lane.b32.xlu0 %v1372, 117
      %v1378 = vpop.permute.xlu0 %1377
      %1381 = vrot.lane.b32.xlu0 %v1371, 5
      %v1382 = vpop.permute.xlu0 %1381
      %1383 = vrot.lane.b32.xlu0 %v1372, 5
      %v1384 = vpop.permute.xlu0 %1383
      %vm1387 = vcmask 39936
      %v1388 = vsel %vm1387, %v1376, %v1382
      %v1389 = vsel %vm1387, %v1378, %v1384
      %v1390 = vld [vmem:[%s3] sm:$0x1]
      %v1391 = vperm.slane %v1390, 0
      %v1392 = vmul.f32 %v1388, %v1391
      %v1393 = vmul.f32 %v1389, %v1391
      %1394 = vrot.lane.b32.xlu0 %v1371, 116
      %v1395 = vpop.permute.xlu0 %1394
      %1396 = vrot.lane.b32.xlu0 %v1372, 116
      %v1397 = vpop.permute.xlu0 %1396
      %1400 = vrot.lane.b32.xlu0 %v1371, 4
      %v1401 = vpop.permute.xlu0 %1400
      %1402 = vrot.lane.b32.xlu0 %v1372, 4
      %v1403 = vpop.permute.xlu0 %1402
      %vm1406 = vcmask 31744
      %v1407 = vsel %vm1406, %v1395, %v1401
      %v1408 = vsel %vm1406, %v1397, %v1403
      %v1409 = vld [vmem:[%s3 + $0x1] sm:$0x1]
      %v1410 = vperm.slane %v1409, 0
      %v1411 = vmul.f32 %v1407, %v1410
      %v1412 = vmul.f32 %v1408, %v1410
      %1413 = vrot.lane.b32.xlu0 %v1371, 115
      %v1414 = vpop.permute.xlu0 %1413
      %1415 = vrot.lane.b32.xlu0 %v1372, 115
      %v1416 = vpop.permute.xlu0 %1415
      %1419 = vrot.lane.b32.xlu0 %v1371, 3
      %v1420 = vpop.permute.xlu0 %1419
      %1421 = vrot.lane.b32.xlu0 %v1372, 3
      %v1422 = vpop.permute.xlu0 %1421
      %vm1425 = vcmask 23552
      %v1426 = vsel %vm1425, %v1414, %v1420
      %v1427 = vsel %vm1425, %v1416, %v1422
      %v1428 = vld [vmem:[%s3 + $0x2] sm:$0x1]
      %v1429 = vperm.slane %v1428, 0
      %v1430 = vmul.f32 %v1426, %v1429
      %v1431 = vmul.f32 %v1427, %v1429
      %1432 = vrot.lane.b32.xlu0 %v1371, 113
      %v1433 = vpop.permute.xlu0 %1432
      %1434 = vrot.lane.b32.xlu0 %v1372, 113
      %v1435 = vpop.permute.xlu0 %1434
      %1438 = vrot.lane.b32.xlu0 %v1371, 1
      %v1439 = vpop.permute.xlu0 %1438
      %1440 = vrot.lane.b32.xlu0 %v1372, 1
      %v1441 = vpop.permute.xlu0 %1440
      %v1444 = vsel %vm941, %v1433, %v1439
      %v1445 = vsel %vm941, %v1435, %v1441
      %v1446 = vld [vmem:[%s3 + $0x4] sm:$0x1]
      %v1447 = vperm.slane %v1446, 0
      %v1448 = vmul.f32 %v1444, %v1447
      %v1449 = vmul.f32 %v1445, %v1447
      %1450 = vrot.lane.b32.xlu0 %v1371, 127
      %v1451 = vpop.permute.xlu0 %1450
      %1452 = vrot.lane.b32.xlu0 %v1372, 127
      %v1453 = vpop.permute.xlu0 %1452
      %1456 = vrot.lane.b32.xlu0 %v1371, 15
      %v1457 = vpop.permute.xlu0 %1456
      %1458 = vrot.lane.b32.xlu0 %v1372, 15
      %v1459 = vpop.permute.xlu0 %1458
      %vm1462 = vcmask 121856
      %v1463 = vsel %vm1462, %v1451, %v1457
      %v1464 = vsel %vm1462, %v1453, %v1459
      %v1465 = vld [vmem:[%s3 + $0x6] sm:$0x1]
      %v1466 = vperm.slane %v1465, 0
      %v1467 = vmul.f32 %v1463, %v1466
      %v1468 = vmul.f32 %v1464, %v1466
      %1469 = vrot.lane.b32.xlu0 %v1371, 125
      %v1470 = vpop.permute.xlu0 %1469
      %1471 = vrot.lane.b32.xlu0 %v1372, 125
      %v1472 = vpop.permute.xlu0 %1471
      %1475 = vrot.lane.b32.xlu0 %v1371, 13
      %v1476 = vpop.permute.xlu0 %1475
      %1477 = vrot.lane.b32.xlu0 %v1372, 13
      %v1478 = vpop.permute.xlu0 %1477
      %vm1481 = vcmask 105472
      %v1482 = vsel %vm1481, %v1470, %v1476
      %v1483 = vsel %vm1481, %v1472, %v1478
      %v1484 = vld [vmem:[%s3 + $0x8] sm:$0x1]
      %v1485 = vperm.slane %v1484, 0
      %v1486 = vmul.f32 %v1482, %v1485
      %v1487 = vmul.f32 %v1483, %v1485
      %1488 = vrot.lane.b32.xlu0 %v1371, 124
      %v1489 = vpop.permute.xlu0 %1488
      %1490 = vrot.lane.b32.xlu0 %v1372, 124
      %v1491 = vpop.permute.xlu0 %1490
      %1494 = vrot.lane.b32.xlu0 %v1371, 12
      %v1495 = vpop.permute.xlu0 %1494
      %1496 = vrot.lane.b32.xlu0 %v1372, 12
      %v1497 = vpop.permute.xlu0 %1496
      %vm1500 = vcmask 97280
      %v1501 = vsel %vm1500, %v1489, %v1495
      %v1502 = vsel %vm1500, %v1491, %v1497
      %v1503 = vld [vmem:[%s3 + $0x9] sm:$0x1]
      %v1504 = vperm.slane %v1503, 0
      %v1505 = vmul.f32 %v1501, %v1504
      %v1506 = vmul.f32 %v1502, %v1504
      %1507 = vrot.lane.b32.xlu0 %v1371, 123
      %v1508 = vpop.permute.xlu0 %1507
      %1509 = vrot.lane.b32.xlu0 %v1372, 123
      %v1510 = vpop.permute.xlu0 %1509
      %1513 = vrot.lane.b32.xlu0 %v1371, 11
      %v1514 = vpop.permute.xlu0 %1513
      %1515 = vrot.lane.b32.xlu0 %v1372, 11
      %v1516 = vpop.permute.xlu0 %1515
      %vm1519 = vcmask 89088
      %v1520 = vsel %vm1519, %v1508, %v1514
      %v1521 = vsel %vm1519, %v1510, %v1516
      %v1522 = vld [vmem:[%s3 + $0xa] sm:$0x1]
      %v1523 = vperm.slane %v1522, 0
      %v1524 = vmul.f32 %v1520, %v1523
      %v1525 = vmul.f32 %v1521, %v1523
      %v1526 = vld [vmem:[%s11 + $0x60] sm:$0xff]
      %v1527 = vld [vmem:[%s11 + $0x6c] sm:$0xff]
      %v1528 = vpack.c.bf16 %v1393, %v1392
      %v1529 = vpack.c.bf16 %v1412, %v1411
      %v1530 = vpack.c.bf16 %v1431, %v1430
      %v1531 = vpack.c.bf16 %v1449, %v1448
      %v1532 = vpack.c.bf16 %v1372, %v1371
      %v1533 = vpack.c.bf16 %v1468, %v1467
      %v1534 = vpack.c.bf16 %v1487, %v1486
      %v1535 = vpack.c.bf16 %v1506, %v1505
      %v1536 = vpack.c.bf16 %v1525, %v1524
      %v1537 = vld [vmem:[%s12 + $0x28] sm:$0xff]
      %v1538 = vld [vmem:[%s12 + $0x30] sm:$0xff]
      %1540 = vset.pattern.permute.xlu0 0
      %1541 = vperm.xlu0 %1540, %v1537
      %v1542 = vpop.permute.xlu0 %1541
      %1545 = vset.pattern.permute.xlu0 0
      %1546 = vperm.xlu0 %1545, %v1538
      %v1547 = vpop.permute.xlu0 %1546
      %v1551 = vunpack.c.l.b16 %v1526
      %v1552 = vunpack.c.h.b16 %v1526
      %v1553 = vunpack.c.l.b16 %v1527
      %v1554 = vunpack.c.h.b16 %v1527
      %v1555 = vpack.c.b16 %v1553, %v1551
      %v1556 = vpack.c.b16 %v1554, %v1552
      %vm1558 = vcmask 130048
      %v1560 = vsel %vm1558, %v1556, 0
      %1562 = vmatpush.bf16.msra.mxu0 %v1535
      %1563 = vmatpush.bf16.msra.mxu0 %v1534
      %1564 = vmatpush.bf16.msra.mxu0 %v1533
      %1565 = vmatpush.bf16.msra.mxu0 %v1532
      %1566 = vmatpush.bf16.msra.mxu0 %v1531
      %1567 = vmatpush.bf16.msra.mxu0 %v1530
      %1568 = vmatpush.bf16.msra.mxu0 %v1529
      %1569 = vmatpush.bf16.msra.mxu0 %v1528
      %1570 = vmatmul.bf16.gmra.mxu0 %v1555
      %v1571 = vpop.f32.mrf.mxu0
      %v1572 = vadd.f32 %v1542, %v1571
      %v1573 = vpop.f32.mrf.mxu0
      %v1574 = vadd.f32 %v1547, %v1573
      %1575 = vdwg.mxu0
      %1576 = vmatpush.bf16.msra.mxu0 0
      %1577 = vmatpush.bf16.msra.mxu0 0
      %1578 = vmatpush.bf16.msra.mxu0 0
      %1579 = vmatpush.bf16.msra.mxu0 0
      %1580 = vmatpush.bf16.msra.mxu0 0
      %1581 = vmatpush.bf16.msra.mxu0 0
      %1582 = vmatpush.bf16.msra.mxu0 0
      %1583 = vmatpush.bf16.msra.mxu0 %v1536
      %1584 = vmatmul.bf16.gmra.mxu0 %v1560
      %v1585 = vpop.f32.mrf.mxu0
      %v1586 = vadd.f32 %v1572, %v1585
      %v1587 = vpop.f32.mrf.mxu0
      %v1588 = vadd.f32 %v1574, %v1587
      %1589 = vdwg.mxu0
      %v1590 = vmax.f32 %v1586, 0.0
      %v1591 = vmax.f32 %v1588, 0.0
      %1594 = vrot.lane.b32.xlu0 %v1590, 117
      %v1595 = vpop.permute.xlu0 %1594
      %1596 = vrot.lane.b32.xlu0 %v1591, 117
      %v1597 = vpop.permute.xlu0 %1596
      %1600 = vrot.lane.b32.xlu0 %v1590, 5
      %v1601 = vpop.permute.xlu0 %1600
      %1602 = vrot.lane.b32.xlu0 %v1591, 5
      %v1603 = vpop.permute.xlu0 %1602
      %v1606 = vsel %vm1387, %v1595, %v1601
      %v1607 = vsel %vm1387, %v1597, %v1603
      %v1608 = vmul.f32 %v1606, %v1391
      %v1609 = vmul.f32 %v1607, %v1391
      %1610 = vrot.lane.b32.xlu0 %v1590, 116
      %v1611 = vpop.permute.xlu0 %1610
      %1612 = vrot.lane.b32.xlu0 %v1591, 116
      %v1613 = vpop.permute.xlu0 %1612
      %1616 = vrot.lane.b32.xlu0 %v1590, 4
      %v1617 = vpop.permute.xlu0 %1616
      %1618 = vrot.lane.b32.xlu0 %v1591, 4
      %v1619 = vpop.permute.xlu0 %1618
      %v1622 = vsel %vm1406, %v1611, %v1617
      %v1623 = vsel %vm1406, %v1613, %v1619
      %v1624 = vmul.f32 %v1622, %v1410
      %v1625 = vmul.f32 %v1623, %v1410
      %1626 = vrot.lane.b32.xlu0 %v1590, 115
      %v1627 = vpop.permute.xlu0 %1626
      %1628 = vrot.lane.b32.xlu0 %v1591, 115
      %v1629 = vpop.permute.xlu0 %1628
      %1632 = vrot.lane.b32.xlu0 %v1590, 3
      %v1633 = vpop.permute.xlu0 %1632
      %1634 = vrot.lane.b32.xlu0 %v1591, 3
      %v1635 = vpop.permute.xlu0 %1634
      %v1638 = vsel %vm1425, %v1627, %v1633
      %v1639 = vsel %vm1425, %v1629, %v1635
      %v1640 = vmul.f32 %v1638, %v1429
      %v1641 = vmul.f32 %v1639, %v1429
      %1642 = vrot.lane.b32.xlu0 %v1590, 113
      %v1643 = vpop.permute.xlu0 %1642
      %1644 = vrot.lane.b32.xlu0 %v1591, 113
      %v1645 = vpop.permute.xlu0 %1644
      %1648 = vrot.lane.b32.xlu0 %v1590, 1
      %v1649 = vpop.permute.xlu0 %1648
      %1650 = vrot.lane.b32.xlu0 %v1591, 1
      %v1651 = vpop.permute.xlu0 %1650
      %v1654 = vsel %vm941, %v1643, %v1649
      %v1655 = vsel %vm941, %v1645, %v1651
      %v1656 = vmul.f32 %v1654, %v1447
      %v1657 = vmul.f32 %v1655, %v1447
      %1658 = vrot.lane.b32.xlu0 %v1590, 127
      %v1659 = vpop.permute.xlu0 %1658
      %1660 = vrot.lane.b32.xlu0 %v1591, 127
      %v1661 = vpop.permute.xlu0 %1660
      %1664 = vrot.lane.b32.xlu0 %v1590, 15
      %v1665 = vpop.permute.xlu0 %1664
      %1666 = vrot.lane.b32.xlu0 %v1591, 15
      %v1667 = vpop.permute.xlu0 %1666
      %v1670 = vsel %vm1462, %v1659, %v1665
      %v1671 = vsel %vm1462, %v1661, %v1667
      %v1672 = vmul.f32 %v1670, %v1466
      %v1673 = vmul.f32 %v1671, %v1466
      %1674 = vrot.lane.b32.xlu0 %v1590, 125
      %v1675 = vpop.permute.xlu0 %1674
      %1676 = vrot.lane.b32.xlu0 %v1591, 125
      %v1677 = vpop.permute.xlu0 %1676
      %1680 = vrot.lane.b32.xlu0 %v1590, 13
      %v1681 = vpop.permute.xlu0 %1680
      %1682 = vrot.lane.b32.xlu0 %v1591, 13
      %v1683 = vpop.permute.xlu0 %1682
      %v1686 = vsel %vm1481, %v1675, %v1681
      %v1687 = vsel %vm1481, %v1677, %v1683
      %v1688 = vmul.f32 %v1686, %v1485
      %v1689 = vmul.f32 %v1687, %v1485
      %1690 = vrot.lane.b32.xlu0 %v1590, 124
      %v1691 = vpop.permute.xlu0 %1690
      %1692 = vrot.lane.b32.xlu0 %v1591, 124
      %v1693 = vpop.permute.xlu0 %1692
      %1696 = vrot.lane.b32.xlu0 %v1590, 12
      %v1697 = vpop.permute.xlu0 %1696
      %1698 = vrot.lane.b32.xlu0 %v1591, 12
      %v1699 = vpop.permute.xlu0 %1698
      %v1702 = vsel %vm1500, %v1691, %v1697
      %v1703 = vsel %vm1500, %v1693, %v1699
      %v1704 = vmul.f32 %v1702, %v1504
      %v1705 = vmul.f32 %v1703, %v1504
      %1706 = vrot.lane.b32.xlu0 %v1590, 123
      %v1707 = vpop.permute.xlu0 %1706
      %1708 = vrot.lane.b32.xlu0 %v1591, 123
      %v1709 = vpop.permute.xlu0 %1708
      %1712 = vrot.lane.b32.xlu0 %v1590, 11
      %v1713 = vpop.permute.xlu0 %1712
      %1714 = vrot.lane.b32.xlu0 %v1591, 11
      %v1715 = vpop.permute.xlu0 %1714
      %v1718 = vsel %vm1519, %v1707, %v1713
      %v1719 = vsel %vm1519, %v1709, %v1715
      %v1720 = vmul.f32 %v1718, %v1523
      %v1721 = vmul.f32 %v1719, %v1523
      %v1722 = vld [vmem:[%s11 + $0x78] sm:$0xff]
      %v1723 = vld [vmem:[%s11 + $0x84] sm:$0xff]
      %v1724 = vpack.c.bf16 %v1609, %v1608
      %v1725 = vpack.c.bf16 %v1625, %v1624
      %v1726 = vpack.c.bf16 %v1641, %v1640
      %v1727 = vpack.c.bf16 %v1657, %v1656
      %v1728 = vpack.c.bf16 %v1591, %v1590
      %v1729 = vpack.c.bf16 %v1673, %v1672
      %v1730 = vpack.c.bf16 %v1689, %v1688
      %v1731 = vpack.c.bf16 %v1705, %v1704
      %v1732 = vpack.c.bf16 %v1721, %v1720
      %v1733 = vld [vmem:[%s12 + $0x38] sm:$0xff]
      %v1734 = vld [vmem:[%s12 + $0x40] sm:$0xff]
      %1736 = vset.pattern.permute.xlu0 0
      %1737 = vperm.xlu0 %1736, %v1733
      %v1738 = vpop.permute.xlu0 %1737
      %1741 = vset.pattern.permute.xlu0 0
      %1742 = vperm.xlu0 %1741, %v1734
      %v1743 = vpop.permute.xlu0 %1742
      %v1747 = vunpack.c.l.b16 %v1722
      %v1748 = vunpack.c.h.b16 %v1722
      %v1749 = vunpack.c.l.b16 %v1723
      %v1750 = vunpack.c.h.b16 %v1723
      %v1751 = vpack.c.b16 %v1749, %v1747
      %v1752 = vpack.c.b16 %v1750, %v1748
      %v1755 = vsel %vm1558, %v1752, 0
      %1757 = vmatpush.bf16.msra.mxu0 %v1731
      %1758 = vmatpush.bf16.msra.mxu0 %v1730
      %1759 = vmatpush.bf16.msra.mxu0 %v1729
      %1760 = vmatpush.bf16.msra.mxu0 %v1728
      %1761 = vmatpush.bf16.msra.mxu0 %v1727
      %1762 = vmatpush.bf16.msra.mxu0 %v1726
      %1763 = vmatpush.bf16.msra.mxu0 %v1725
      %1764 = vmatpush.bf16.msra.mxu0 %v1724
      %1765 = vmatmul.bf16.gmra.mxu0 %v1751
      %v1766 = vpop.f32.mrf.mxu0
      %v1767 = vadd.f32 %v1738, %v1766
      %v1768 = vpop.f32.mrf.mxu0
      %v1769 = vadd.f32 %v1743, %v1768
      %1770 = vdwg.mxu0
      %1771 = vmatpush.bf16.msra.mxu0 0
      %1772 = vmatpush.bf16.msra.mxu0 0
      %1773 = vmatpush.bf16.msra.mxu0 0
      %1774 = vmatpush.bf16.msra.mxu0 0
      %1775 = vmatpush.bf16.msra.mxu0 0
      %1776 = vmatpush.bf16.msra.mxu0 0
      %1777 = vmatpush.bf16.msra.mxu0 0
      %1778 = vmatpush.bf16.msra.mxu0 %v1732
      %1779 = vmatmul.bf16.gmra.mxu0 %v1755
      %v1780 = vpop.f32.mrf.mxu0
      %v1781 = vadd.f32 %v1767, %v1780
      %v1782 = vpop.f32.mrf.mxu0
      %v1783 = vadd.f32 %v1769, %v1782
      %1784 = vdwg.mxu0
      %v1785 = vadd.f32 %v1781, %v1371
      %v1786 = vadd.f32 %v1783, %v1372
      %v1787 = vmax.f32 %v1785, 0.0
      %v1788 = vmax.f32 %v1786, 0.0
      %1791 = vrot.lane.b32.xlu0 %v1787, 117
      %v1792 = vpop.permute.xlu0 %1791
      %1793 = vrot.lane.b32.xlu0 %v1788, 117
      %v1794 = vpop.permute.xlu0 %1793
      %1797 = vrot.lane.b32.xlu0 %v1787, 5
      %v1798 = vpop.permute.xlu0 %1797
      %1799 = vrot.lane.b32.xlu0 %v1788, 5
      %v1800 = vpop.permute.xlu0 %1799
      %v1803 = vsel %vm1387, %v1792, %v1798
      %v1804 = vsel %vm1387, %v1794, %v1800
      %v1805 = vmul.f32 %v1803, %v1391
      %v1806 = vmul.f32 %v1804, %v1391
      %1807 = vrot.lane.b32.xlu0 %v1787, 116
      %v1808 = vpop.permute.xlu0 %1807
      %1809 = vrot.lane.b32.xlu0 %v1788, 116
      %v1810 = vpop.permute.xlu0 %1809
      %1813 = vrot.lane.b32.xlu0 %v1787, 4
      %v1814 = vpop.permute.xlu0 %1813
      %1815 = vrot.lane.b32.xlu0 %v1788, 4
      %v1816 = vpop.permute.xlu0 %1815
      %v1819 = vsel %vm1406, %v1808, %v1814
      %v1820 = vsel %vm1406, %v1810, %v1816
      %v1821 = vmul.f32 %v1819, %v1410
      %v1822 = vmul.f32 %v1820, %v1410
      %1823 = vrot.lane.b32.xlu0 %v1787, 115
      %v1824 = vpop.permute.xlu0 %1823
      %1825 = vrot.lane.b32.xlu0 %v1788, 115
      %v1826 = vpop.permute.xlu0 %1825
      %1829 = vrot.lane.b32.xlu0 %v1787, 3
      %v1830 = vpop.permute.xlu0 %1829
      %1831 = vrot.lane.b32.xlu0 %v1788, 3
      %v1832 = vpop.permute.xlu0 %1831
      %v1835 = vsel %vm1425, %v1824, %v1830
      %v1836 = vsel %vm1425, %v1826, %v1832
      %v1837 = vmul.f32 %v1835, %v1429
      %v1838 = vmul.f32 %v1836, %v1429
      %1839 = vrot.lane.b32.xlu0 %v1787, 114
      %v1840 = vpop.permute.xlu0 %1839
      %1841 = vrot.lane.b32.xlu0 %v1788, 114
      %v1842 = vpop.permute.xlu0 %1841
      %1845 = vrot.lane.b32.xlu0 %v1787, 2
      %v1846 = vpop.permute.xlu0 %1845
      %1847 = vrot.lane.b32.xlu0 %v1788, 2
      %v1848 = vpop.permute.xlu0 %1847
      %vm1851 = vcmask 15360
      %v1852 = vsel %vm1851, %v1840, %v1846
      %v1853 = vsel %vm1851, %v1842, %v1848
      %v1854 = vld [vmem:[%s3 + $0x3] sm:$0x1]
      %v1855 = vperm.slane %v1854, 0
      %v1856 = vmul.f32 %v1852, %v1855
      %v1857 = vmul.f32 %v1853, %v1855
      %1858 = vrot.lane.b32.xlu0 %v1787, 113
      %v1859 = vpop.permute.xlu0 %1858
      %1860 = vrot.lane.b32.xlu0 %v1788, 113
      %v1861 = vpop.permute.xlu0 %1860
      %1864 = vrot.lane.b32.xlu0 %v1787, 1
      %v1865 = vpop.permute.xlu0 %1864
      %1866 = vrot.lane.b32.xlu0 %v1788, 1
      %v1867 = vpop.permute.xlu0 %1866
      %v1870 = vsel %vm941, %v1859, %v1865
      %v1871 = vsel %vm941, %v1861, %v1867
      %v1872 = vmul.f32 %v1870, %v1447
      %v1873 = vmul.f32 %v1871, %v1447
      %1874 = vrot.lane.b32.xlu0 %v1787, 127
      %v1875 = vpop.permute.xlu0 %1874
      %1876 = vrot.lane.b32.xlu0 %v1788, 127
      %v1877 = vpop.permute.xlu0 %1876
      %1880 = vrot.lane.b32.xlu0 %v1787, 15
      %v1881 = vpop.permute.xlu0 %1880
      %1882 = vrot.lane.b32.xlu0 %v1788, 15
      %v1883 = vpop.permute.xlu0 %1882
      %v1886 = vsel %vm1462, %v1875, %v1881
      %v1887 = vsel %vm1462, %v1877, %v1883
      %v1888 = vmul.f32 %v1886, %v1466
      %v1889 = vmul.f32 %v1887, %v1466
      %1890 = vrot.lane.b32.xlu0 %v1787, 126
      %v1891 = vpop.permute.xlu0 %1890
      %1892 = vrot.lane.b32.xlu0 %v1788, 126
      %v1893 = vpop.permute.xlu0 %1892
      %1896 = vrot.lane.b32.xlu0 %v1787, 14
      %v1897 = vpop.permute.xlu0 %1896
      %1898 = vrot.lane.b32.xlu0 %v1788, 14
      %v1899 = vpop.permute.xlu0 %1898
      %vm1902 = vcmask 113664
      %v1903 = vsel %vm1902, %v1891, %v1897
      %v1904 = vsel %vm1902, %v1893, %v1899
      %v1905 = vld [vmem:[%s3 + $0x7] sm:$0x1]
      %v1906 = vperm.slane %v1905, 0
      %v1907 = vmul.f32 %v1903, %v1906
      %v1908 = vmul.f32 %v1904, %v1906
      %1909 = vrot.lane.b32.xlu0 %v1787, 125
      %v1910 = vpop.permute.xlu0 %1909
      %1911 = vrot.lane.b32.xlu0 %v1788, 125
      %v1912 = vpop.permute.xlu0 %1911
      %1915 = vrot.lane.b32.xlu0 %v1787, 13
      %v1916 = vpop.permute.xlu0 %1915
      %1917 = vrot.lane.b32.xlu0 %v1788, 13
      %v1918 = vpop.permute.xlu0 %1917
      %v1921 = vsel %vm1481, %v1910, %v1916
      %v1922 = vsel %vm1481, %v1912, %v1918
      %v1923 = vmul.f32 %v1921, %v1485
      %v1924 = vmul.f32 %v1922, %v1485
      %1925 = vrot.lane.b32.xlu0 %v1787, 124
      %v1926 = vpop.permute.xlu0 %1925
      %1927 = vrot.lane.b32.xlu0 %v1788, 124
      %v1928 = vpop.permute.xlu0 %1927
      %1931 = vrot.lane.b32.xlu0 %v1787, 12
      %v1932 = vpop.permute.xlu0 %1931
      %1933 = vrot.lane.b32.xlu0 %v1788, 12
      %v1934 = vpop.permute.xlu0 %1933
      %v1937 = vsel %vm1500, %v1926, %v1932
      %v1938 = vsel %vm1500, %v1928, %v1934
      %v1939 = vmul.f32 %v1937, %v1504
      %v1940 = vmul.f32 %v1938, %v1504
      %1941 = vrot.lane.b32.xlu0 %v1787, 123
      %v1942 = vpop.permute.xlu0 %1941
      %1943 = vrot.lane.b32.xlu0 %v1788, 123
      %v1944 = vpop.permute.xlu0 %1943
      %1947 = vrot.lane.b32.xlu0 %v1787, 11
      %v1948 = vpop.permute.xlu0 %1947
      %1949 = vrot.lane.b32.xlu0 %v1788, 11
      %v1950 = vpop.permute.xlu0 %1949
      %v1953 = vsel %vm1519, %v1942, %v1948
      %v1954 = vsel %vm1519, %v1944, %v1950
      %v1955 = vmul.f32 %v1953, %v1523
      %v1956 = vmul.f32 %v1954, %v1523
      %1957 = vrot.lane.b32.xlu0 %v1787, 122
      %v1958 = vpop.permute.xlu0 %1957
      %1959 = vrot.lane.b32.xlu0 %v1788, 122
      %v1960 = vpop.permute.xlu0 %1959
      %1963 = vrot.lane.b32.xlu0 %v1787, 10
      %v1964 = vpop.permute.xlu0 %1963
      %1965 = vrot.lane.b32.xlu0 %v1788, 10
      %v1966 = vpop.permute.xlu0 %1965
      %vm1969 = vcmask 80896
      %v1970 = vsel %vm1969, %v1958, %v1964
      %v1971 = vsel %vm1969, %v1960, %v1966
      %v1972 = vld [vmem:[%s3 + $0xb] sm:$0x1]
      %v1973 = vperm.slane %v1972, 0
      %v1974 = vmul.f32 %v1970, %v1973
      %v1975 = vmul.f32 %v1971, %v1973
      %1976 = vrot.lane.b32.xlu0 %v1787, 121
      %v1977 = vpop.permute.xlu0 %1976
      %1978 = vrot.lane.b32.xlu0 %v1788, 121
      %v1979 = vpop.permute.xlu0 %1978
      %1982 = vrot.lane.b32.xlu0 %v1787, 9
      %v1983 = vpop.permute.xlu0 %1982
      %1984 = vrot.lane.b32.xlu0 %v1788, 9
      %v1985 = vpop.permute.xlu0 %1984
      %v1988 = vsel %vm908, %v1977, %v1983
      %v1989 = vsel %vm908, %v1979, %v1985
      %v1990 = vld [vmem:[%s3 + $0xc] sm:$0x1]
      %v1991 = vperm.slane %v1990, 0
      %v1992 = vmul.f32 %v1988, %v1991
      %v1993 = vmul.f32 %v1989, %v1991
      %1994 = vrot.lane.b32.xlu0 %v1787, 120
      %v1995 = vpop.permute.xlu0 %1994
      %1996 = vrot.lane.b32.xlu0 %v1788, 120
      %v1997 = vpop.permute.xlu0 %1996
      %2000 = vrot.lane.b32.xlu0 %v1787, 8
      %v2001 = vpop.permute.xlu0 %2000
      %2002 = vrot.lane.b32.xlu0 %v1788, 8
      %v2003 = vpop.permute.xlu0 %2002
      %v2006 = vsel %vm919, %v1995, %v2001
      %v2007 = vsel %vm919, %v1997, %v2003
      %v2008 = vld [vmem:[%s3 + $0xd] sm:$0x1]
      %v2009 = vperm.slane %v2008, 0
      %v2010 = vmul.f32 %v2006, %v2009
      %v2011 = vmul.f32 %v2007, %v2009
      %2012 = vrot.lane.b32.xlu0 %v1787, 119
      %v2013 = vpop.permute.xlu0 %2012
      %2014 = vrot.lane.b32.xlu0 %v1788, 119
      %v2015 = vpop.permute.xlu0 %2014
      %2018 = vrot.lane.b32.xlu0 %v1787, 7
      %v2019 = vpop.permute.xlu0 %2018
      %2020 = vrot.lane.b32.xlu0 %v1788, 7
      %v2021 = vpop.permute.xlu0 %2020
      %v2024 = vsel %vm930, %v2013, %v2019
      %v2025 = vsel %vm930, %v2015, %v2021
      %v2026 = vld [vmem:[%s3 + $0xe] sm:$0x1]
      %v2027 = vperm.slane %v2026, 0
      %v2028 = vmul.f32 %v2024, %v2027
      %v2029 = vmul.f32 %v2025, %v2027
      %2030 = vrot.lane.b32.xlu0 %v1787, 118
      %v2031 = vpop.permute.xlu0 %2030
      %2032 = vrot.lane.b32.xlu0 %v1788, 118
      %v2033 = vpop.permute.xlu0 %2032
      %2036 = vrot.lane.b32.xlu0 %v1787, 6
      %v2037 = vpop.permute.xlu0 %2036
      %2038 = vrot.lane.b32.xlu0 %v1788, 6
      %v2039 = vpop.permute.xlu0 %2038
      %v2042 = vsel %vm1167, %v2031, %v2037
      %v2043 = vsel %vm1167, %v2033, %v2039
      %v2044 = vld [vmem:[%s3 + $0xf] sm:$0x1]
      %v2045 = vperm.slane %v2044, 0
      %v2046 = vmul.f32 %v2042, %v2045
      %v2047 = vmul.f32 %v2043, %v2045
      %v2048 = vld [vmem:[%s11 + $0x90] sm:$0xff]
      %v2049 = vld [vmem:[%s11 + $0x9c] sm:$0xff]
      %v2050 = vld [vmem:[%s11 + $0xa8] sm:$0xff]
      %v2051 = vld [vmem:[%s11 + $0xb4] sm:$0xff]
      %v2052 = vpack.c.bf16 %v1806, %v1805
      %v2053 = vpack.c.bf16 %v1822, %v1821
      %v2054 = vpack.c.bf16 %v1838, %v1837
      %v2055 = vpack.c.bf16 %v1857, %v1856
      %v2056 = vpack.c.bf16 %v1873, %v1872
      %v2057 = vpack.c.bf16 %v1788, %v1787
      %v2058 = vpack.c.bf16 %v1889, %v1888
      %v2059 = vpack.c.bf16 %v1908, %v1907
      %v2060 = vpack.c.bf16 %v1924, %v1923
      %v2061 = vpack.c.bf16 %v1940, %v1939
      %v2062 = vpack.c.bf16 %v1956, %v1955
      %v2063 = vpack.c.bf16 %v1975, %v1974
      %v2064 = vpack.c.bf16 %v1993, %v1992
      %v2065 = vpack.c.bf16 %v2011, %v2010
      %v2066 = vpack.c.bf16 %v2029, %v2028
      %v2067 = vpack.c.bf16 %v2047, %v2046
      %v2072 = vunpack.c.l.b16 %v2048
      %v2073 = vunpack.c.h.b16 %v2048
      %v2074 = vunpack.c.l.b16 %v2049
      %v2075 = vunpack.c.h.b16 %v2049
      %v2076 = vunpack.c.l.b16 %v2050
      %v2077 = vunpack.c.h.b16 %v2050
      %v2078 = vunpack.c.l.b16 %v2051
      %v2079 = vunpack.c.h.b16 %v2051
      %v2080 = vpack.c.b16 %v2074, %v2072
      %v2081 = vpack.c.b16 %v2075, %v2073
      %v2082 = vpack.c.b16 %v2078, %v2076
      %v2083 = vpack.c.b16 %v2079, %v2077
      %2088 = vmatpush.bf16.msra.mxu0 %v2059
      %2089 = vmatpush.bf16.msra.mxu0 %v2058
      %2090 = vmatpush.bf16.msra.mxu0 %v2057
      %2091 = vmatpush.bf16.msra.mxu0 %v2056
      %2092 = vmatpush.bf16.msra.mxu0 %v2055
      %2093 = vmatpush.bf16.msra.mxu0 %v2054
      %2094 = vmatpush.bf16.msra.mxu0 %v2053
      %2095 = vmatpush.bf16.msra.mxu0 %v2052
      %2096 = vmatmul.bf16.gmra.mxu0 %v2080
      %v2097 = vpop.f32.mrf.mxu0
      %v2098 = vadd.f32 0.0, %v2097
      %v2099 = vpop.f32.mrf.mxu0
      %v2100 = vadd.f32 0.0, %v2099
      %2101 = vmatmul.bf16.gmra.mxu0 %v2082
      %v2102 = vpop.f32.mrf.mxu0
      %v2103 = vadd.f32 0.0, %v2102
      %v2104 = vpop.f32.mrf.mxu0
      %v2105 = vadd.f32 0.0, %v2104
      %2106 = vdwg.mxu0
      %2107 = vmatpush.bf16.msra.mxu0 %v2067
      %2108 = vmatpush.bf16.msra.mxu0 %v2066
      %2109 = vmatpush.bf16.msra.mxu0 %v2065
      %2110 = vmatpush.bf16.msra.mxu0 %v2064
      %2111 = vmatpush.bf16.msra.mxu0 %v2063
      %2112 = vmatpush.bf16.msra.mxu0 %v2062
      %2113 = vmatpush.bf16.msra.mxu0 %v2061
      %2114 = vmatpush.bf16.msra.mxu0 %v2060
      %2115 = vmatmul.bf16.gmra.mxu0 %v2081
      %v2116 = vpop.f32.mrf.mxu0
      %v2117 = vadd.f32 %v2098, %v2116
      %v2118 = vpop.f32.mrf.mxu0
      %v2119 = vadd.f32 %v2100, %v2118
      %2120 = vmatmul.bf16.gmra.mxu0 %v2083
      %v2121 = vpop.f32.mrf.mxu0
      %v2122 = vadd.f32 %v2103, %v2121
      %v2123 = vpop.f32.mrf.mxu0
      %v2124 = vadd.f32 %v2105, %v2123
      %2125 = vdwg.mxu0
      %v2126 = vpack.c.bf16 %v2119, %v2117
      %v2127 = vpack.c.bf16 %v2124, %v2122
      %v2128 = vld [vmem:[%s7] sm:$0xf]
      %v2129 = vld [vmem:[%s7 + $0x4] sm:$0xf]
      %v2130 = vld [vmem:[%s12 + $0x48] sm:$0xff]
      %v2131 = vld [vmem:[%s12 + $0x50] sm:$0xff]
      %v2132 = vld [vmem:[%s12 + $0x58] sm:$0xff]
      %v2133 = vld [vmem:[%s12 + $0x60] sm:$0xff]
      %2135 = vset.pattern.permute.xlu0 0
      %2136 = vperm.xlu0 %2135, %v2130
      %v2137 = vpop.permute.xlu0 %2136
      %2140 = vset.pattern.permute.xlu0 0
      %2141 = vperm.xlu0 %2140, %v2131
      %v2142 = vpop.permute.xlu0 %2141
      %2145 = vset.pattern.permute.xlu0 0
      %2146 = vperm.xlu0 %2145, %v2132
      %v2147 = vpop.permute.xlu0 %2146
      %2150 = vset.pattern.permute.xlu0 0
      %2151 = vperm.xlu0 %2150, %v2133
      %v2152 = vpop.permute.xlu0 %2151
      %v2156 = vunpack.c.l.b16 %v2128
      %v2157 = vunpack.c.l.b16 %v2129
      %v2158 = vpack.c.b16 %v2157, %v2156
      %v2161 = vsel %vm1558, %v2126, 0
      %v2164 = vsel %vm1558, %v2127, 0
      %2166 = vmatpush.bf16.msra.mxu0 0
      %2167 = vmatpush.bf16.msra.mxu0 0
      %2168 = vmatpush.bf16.msra.mxu0 0
      %2169 = vmatpush.bf16.msra.mxu0 0
      %2170 = vmatpush.bf16.msra.mxu0 0
      %2171 = vmatpush.bf16.msra.mxu0 0
      %2172 = vmatpush.bf16.msra.mxu0 0
      %2173 = vmatpush.bf16.msra.mxu0 %v2158
      %2174 = vmatmul.bf16.gmra.mxu0 %v2161
      %v2175 = vpop.f32.mrf.mxu0
      %v2176 = vadd.f32 %v2137, %v2175
      %v2177 = vpop.f32.mrf.mxu0
      %v2178 = vadd.f32 %v2142, %v2177
      %2179 = vmatmul.bf16.gmra.mxu0 %v2164
      %v2180 = vpop.f32.mrf.mxu0
      %v2181 = vadd.f32 %v2147, %v2180
      %v2182 = vpop.f32.mrf.mxu0
      %v2183 = vadd.f32 %v2152, %v2182
      %2184 = vdwg.mxu0
      %v2185 = vmax.f32 %v2176, 0.0
      %v2186 = vmax.f32 %v2178, 0.0
      %v2187 = vmax.f32 %v2181, 0.0
      %v2188 = vmax.f32 %v2183, 0.0
      %2193 = vrot.lane.b32.xlu0 %v2185, 127
      %v2194 = vpop.permute.xlu0 %2193
      %2195 = vrot.lane.b32.xlu0 %v2186, 127
      %v2196 = vpop.permute.xlu0 %2195
      %2197 = vrot.lane.b32.xlu0 %v2187, 127
      %v2198 = vpop.permute.xlu0 %2197
      %2199 = vrot.lane.b32.xlu0 %v2188, 127
      %v2200 = vpop.permute.xlu0 %2199
      %2205 = vrot.lane.b32.xlu0 %v2185, 3
      %v2206 = vpop.permute.xlu0 %2205
      %2207 = vrot.lane.b32.xlu0 %v2186, 3
      %v2208 = vpop.permute.xlu0 %2207
      %2209 = vrot.lane.b32.xlu0 %v2187, 3
      %v2210 = vpop.permute.xlu0 %2209
      %2211 = vrot.lane.b32.xlu0 %v2188, 3
      %v2212 = vpop.permute.xlu0 %2211
      %v2217 = vsel %vm1425, %v2194, %v2206
      %v2218 = vsel %vm1425, %v2196, %v2208
      %v2219 = vsel %vm1425, %v2198, %v2210
      %v2220 = vsel %vm1425, %v2200, %v2212
      %v2221 = vld [vmem:[%s4] sm:$0x1]
      %v2222 = vperm.slane %v2221, 0
      %v2223 = vmul.f32 %v2217, %v2222
      %v2224 = vmul.f32 %v2218, %v2222
      %v2225 = vmul.f32 %v2219, %v2222
      %v2226 = vmul.f32 %v2220, %v2222
      %2227 = vrot.lane.b32.xlu0 %v2185, 126
      %v2228 = vpop.permute.xlu0 %2227
      %2229 = vrot.lane.b32.xlu0 %v2186, 126
      %v2230 = vpop.permute.xlu0 %2229
      %2231 = vrot.lane.b32.xlu0 %v2187, 126
      %v2232 = vpop.permute.xlu0 %2231
      %2233 = vrot.lane.b32.xlu0 %v2188, 126
      %v2234 = vpop.permute.xlu0 %2233
      %2239 = vrot.lane.b32.xlu0 %v2185, 2
      %v2240 = vpop.permute.xlu0 %2239
      %2241 = vrot.lane.b32.xlu0 %v2186, 2
      %v2242 = vpop.permute.xlu0 %2241
      %2243 = vrot.lane.b32.xlu0 %v2187, 2
      %v2244 = vpop.permute.xlu0 %2243
      %2245 = vrot.lane.b32.xlu0 %v2188, 2
      %v2246 = vpop.permute.xlu0 %2245
      %v2251 = vsel %vm1851, %v2228, %v2240
      %v2252 = vsel %vm1851, %v2230, %v2242
      %v2253 = vsel %vm1851, %v2232, %v2244
      %v2254 = vsel %vm1851, %v2234, %v2246
      %v2255 = vld [vmem:[%s4 + $0x1] sm:$0x1]
      %v2256 = vperm.slane %v2255, 0
      %v2257 = vmul.f32 %v2251, %v2256
      %v2258 = vmul.f32 %v2252, %v2256
      %v2259 = vmul.f32 %v2253, %v2256
      %v2260 = vmul.f32 %v2254, %v2256
      %2261 = vrot.lane.b32.xlu0 %v2185, 125
      %v2262 = vpop.permute.xlu0 %2261
      %2263 = vrot.lane.b32.xlu0 %v2186, 125
      %v2264 = vpop.permute.xlu0 %2263
      %2265 = vrot.lane.b32.xlu0 %v2187, 125
      %v2266 = vpop.permute.xlu0 %2265
      %2267 = vrot.lane.b32.xlu0 %v2188, 125
      %v2268 = vpop.permute.xlu0 %2267
      %2273 = vrot.lane.b32.xlu0 %v2185, 1
      %v2274 = vpop.permute.xlu0 %2273
      %2275 = vrot.lane.b32.xlu0 %v2186, 1
      %v2276 = vpop.permute.xlu0 %2275
      %2277 = vrot.lane.b32.xlu0 %v2187, 1
      %v2278 = vpop.permute.xlu0 %2277
      %2279 = vrot.lane.b32.xlu0 %v2188, 1
      %v2280 = vpop.permute.xlu0 %2279
      %v2285 = vsel %vm941, %v2262, %v2274
      %v2286 = vsel %vm941, %v2264, %v2276
      %v2287 = vsel %vm941, %v2266, %v2278
      %v2288 = vsel %vm941, %v2268, %v2280
      %v2289 = vld [vmem:[%s4 + $0x2] sm:$0x1]
      %v2290 = vperm.slane %v2289, 0
      %v2291 = vmul.f32 %v2285, %v2290
      %v2292 = vmul.f32 %v2286, %v2290
      %v2293 = vmul.f32 %v2287, %v2290
      %v2294 = vmul.f32 %v2288, %v2290
      %v2295 = vld [vmem:[%s4 + $0x4] sm:$0x1]
      %v2296 = vperm.slane %v2295, 0
      %v2297 = vmul.f32 %v2285, %v2296
      %v2298 = vmul.f32 %v2286, %v2296
      %v2299 = vmul.f32 %v2287, %v2296
      %v2300 = vmul.f32 %v2288, %v2296
      %v2301 = vld [vmem:[%s4 + $0x6] sm:$0x1]
      %v2302 = vperm.slane %v2301, 0
      %v2303 = vmul.f32 %v2217, %v2302
      %v2304 = vmul.f32 %v2218, %v2302
      %v2305 = vmul.f32 %v2219, %v2302
      %v2306 = vmul.f32 %v2220, %v2302
      %v2307 = vld [vmem:[%s4 + $0x8] sm:$0x1]
      %v2308 = vperm.slane %v2307, 0
      %v2309 = vmul.f32 %v2217, %v2308
      %v2310 = vmul.f32 %v2218, %v2308
      %v2311 = vmul.f32 %v2219, %v2308
      %v2312 = vmul.f32 %v2220, %v2308
      %v2313 = vld [vmem:[%s4 + $0x9] sm:$0x1]
      %v2314 = vperm.slane %v2313, 0
      %v2315 = vmul.f32 %v2251, %v2314
      %v2316 = vmul.f32 %v2252, %v2314
      %v2317 = vmul.f32 %v2253, %v2314
      %v2318 = vmul.f32 %v2254, %v2314
      %v2319 = vld [vmem:[%s4 + $0xa] sm:$0x1]
      %v2320 = vperm.slane %v2319, 0
      %v2321 = vmul.f32 %v2285, %v2320
      %v2322 = vmul.f32 %v2286, %v2320
      %v2323 = vmul.f32 %v2287, %v2320
      %v2324 = vmul.f32 %v2288, %v2320
      %v2325 = vld [vmem:[%s11 + $0xc0] sm:$0xff]
      %v2326 = vld [vmem:[%s11 + $0xc8] sm:$0xf]
      %v2327 = vld [vmem:[%s11 + $0xcc] sm:$0xff]
      %v2328 = vld [vmem:[%s11 + $0xd4] sm:$0xf]
      %v2329 = vld [vmem:[%s11 + $0xd8] sm:$0xff]
      %v2330 = vld [vmem:[%s11 + $0xe0] sm:$0xf]
      %v2331 = vld [vmem:[%s11 + $0xe4] sm:$0xff]
      %v2332 = vld [vmem:[%s11 + $0xec] sm:$0xf]
      %v2333 = vld [vmem:[%s11 + $0xf0] sm:$0xff]
      %v2334 = vld [vmem:[%s11 + $0xf8] sm:$0xf]
      %v2335 = vld [vmem:[%s11 + $0xfc] sm:$0xff]
      %v2336 = vld [vmem:[%s11 + $0x104] sm:$0xf]
      %v2337 = vld [vmem:[%s11 + $0x108] sm:$0xff]
      %v2338 = vld [vmem:[%s11 + $0x110] sm:$0xf]
      %v2339 = vld [vmem:[%s11 + $0x114] sm:$0xff]
      %v2340 = vld [vmem:[%s11 + $0x11c] sm:$0xf]
      %v2341 = vpack.c.bf16 %v2224, %v2223
      %v2342 = vpack.c.bf16 %v2226, %v2225
      %v2343 = vpack.c.bf16 %v2258, %v2257
      %v2344 = vpack.c.bf16 %v2260, %v2259
      %v2345 = vpack.c.bf16 %v2292, %v2291
      %v2346 = vpack.c.bf16 %v2294, %v2293
      %v2347 = vpack.c.bf16 %v2298, %v2297
      %v2348 = vpack.c.bf16 %v2300, %v2299
      %v2349 = vpack.c.bf16 %v2186, %v2185
      %v2350 = vpack.c.bf16 %v2188, %v2187
      %v2351 = vpack.c.bf16 %v2304, %v2303
      %v2352 = vpack.c.bf16 %v2306, %v2305
      %v2353 = vpack.c.bf16 %v2310, %v2309
      %v2354 = vpack.c.bf16 %v2312, %v2311
      %v2355 = vpack.c.bf16 %v2316, %v2315
      %v2356 = vpack.c.bf16 %v2318, %v2317
      %v2357 = vpack.c.bf16 %v2322, %v2321
      %v2358 = vpack.c.bf16 %v2324, %v2323
      %v2375 = vunpack.c.l.b16 %v2325
      %v2376 = vunpack.c.h.b16 %v2325
      %v2377 = vunpack.c.l.b16 %v2326
      %v2378 = vunpack.c.l.b16 %v2327
      %v2379 = vunpack.c.h.b16 %v2327
      %v2380 = vunpack.c.l.b16 %v2328
      %v2381 = vunpack.c.l.b16 %v2329
      %v2382 = vunpack.c.h.b16 %v2329
      %v2383 = vunpack.c.l.b16 %v2330
      %v2384 = vunpack.c.l.b16 %v2331
      %v2385 = vunpack.c.h.b16 %v2331
      %v2386 = vunpack.c.l.b16 %v2332
      %v2387 = vunpack.c.l.b16 %v2333
      %v2388 = vunpack.c.h.b16 %v2333
      %v2389 = vunpack.c.l.b16 %v2334
      %v2390 = vunpack.c.l.b16 %v2335
      %v2391 = vunpack.c.h.b16 %v2335
      %v2392 = vunpack.c.l.b16 %v2336
      %v2393 = vunpack.c.l.b16 %v2337
      %v2394 = vunpack.c.h.b16 %v2337
      %v2395 = vunpack.c.l.b16 %v2338
      %v2396 = vunpack.c.l.b16 %v2339
      %v2397 = vunpack.c.h.b16 %v2339
      %v2398 = vunpack.c.l.b16 %v2340
      %v2399 = vpack.c.b16 %v2378, %v2375
      %v2400 = vpack.c.b16 %v2379, %v2376
      %v2401 = vpack.c.b16 %v2380, %v2377
      %v2402 = vpack.c.b16 %v2384, %v2381
      %v2403 = vpack.c.b16 %v2385, %v2382
      %v2404 = vpack.c.b16 %v2386, %v2383
      %v2405 = vpack.c.b16 %v2390, %v2387
      %v2406 = vpack.c.b16 %v2391, %v2388
      %v2407 = vpack.c.b16 %v2392, %v2389
      %v2408 = vpack.c.b16 %v2396, %v2393
      %v2409 = vpack.c.b16 %v2397, %v2394
      %v2410 = vpack.c.b16 %v2398, %v2395
      %vm2419 = vcmask 261120
      %v2421 = vsel %vm2419, %v2401, 0
      %v2424 = vsel %vm2419, %v2404, 0
      %v2427 = vsel %vm2419, %v2407, 0
      %v2430 = vsel %vm2419, %v2410, 0
      %2432 = vmatpush.bf16.msra.mxu0 %v2348
      %2433 = vmatpush.bf16.msra.mxu0 %v2347
      %2434 = vmatpush.bf16.msra.mxu0 %v2346
      %2435 = vmatpush.bf16.msra.mxu0 %v2345
      %2436 = vmatpush.bf16.msra.mxu0 %v2344
      %2437 = vmatpush.bf16.msra.mxu0 %v2343
      %2438 = vmatpush.bf16.msra.mxu0 %v2342
      %2439 = vmatpush.bf16.msra.mxu0 %v2341
      %2440 = vmatmul.bf16.gmra.mxu0 %v2399
      %v2441 = vpop.f32.mrf.mxu0
      %v2442 = vadd.f32 0.0, %v2441
      %v2443 = vpop.f32.mrf.mxu0
      %v2444 = vadd.f32 0.0, %v2443
      %2445 = vmatmul.bf16.gmra.mxu0 %v2402
      %v2446 = vpop.f32.mrf.mxu0
      %v2447 = vadd.f32 0.0, %v2446
      %v2448 = vpop.f32.mrf.mxu0
      %v2449 = vadd.f32 0.0, %v2448
      %2450 = vmatmul.bf16.gmra.mxu0 %v2405
      %v2451 = vpop.f32.mrf.mxu0
      %v2452 = vadd.f32 0.0, %v2451
      %v2453 = vpop.f32.mrf.mxu0
      %v2454 = vadd.f32 0.0, %v2453
      %2455 = vmatmul.bf16.gmra.mxu0 %v2408
      %v2456 = vpop.f32.mrf.mxu0
      %v2457 = vadd.f32 0.0, %v2456
      %v2458 = vpop.f32.mrf.mxu0
      %v2459 = vadd.f32 0.0, %v2458
      %2460 = vdwg.mxu0
      %2461 = vmatpush.bf16.msra.mxu0 %v2356
      %2462 = vmatpush.bf16.msra.mxu0 %v2355
      %2463 = vmatpush.bf16.msra.mxu0 %v2354
      %2464 = vmatpush.bf16.msra.mxu0 %v2353
      %2465 = vmatpush.bf16.msra.mxu0 %v2352
      %2466 = vmatpush.bf16.msra.mxu0 %v2351
      %2467 = vmatpush.bf16.msra.mxu0 %v2350
      %2468 = vmatpush.bf16.msra.mxu0 %v2349
      %2469 = vmatmul.bf16.gmra.mxu0 %v2400
      %v2470 = vpop.f32.mrf.mxu0
      %v2471 = vadd.f32 %v2442, %v2470
      %v2472 = vpop.f32.mrf.mxu0
      %v2473 = vadd.f32 %v2444, %v2472
      %2474 = vmatmul.bf16.gmra.mxu0 %v2403
      %v2475 = vpop.f32.mrf.mxu0
      %v2476 = vadd.f32 %v2447, %v2475
      %v2477 = vpop.f32.mrf.mxu0
      %v2478 = vadd.f32 %v2449, %v2477
      %2479 = vmatmul.bf16.gmra.mxu0 %v2406
      %v2480 = vpop.f32.mrf.mxu0
      %v2481 = vadd.f32 %v2452, %v2480
      %v2482 = vpop.f32.mrf.mxu0
      %v2483 = vadd.f32 %v2454, %v2482
      %2484 = vmatmul.bf16.gmra.mxu0 %v2409
      %v2485 = vpop.f32.mrf.mxu0
      %v2486 = vadd.f32 %v2457, %v2485
      %v2487 = vpop.f32.mrf.mxu0
      %v2488 = vadd.f32 %v2459, %v2487
      %2489 = vdwg.mxu0
      %2490 = vmatpush.bf16.msra.mxu0 0
      %2491 = vmatpush.bf16.msra.mxu0 0
      %2492 = vmatpush.bf16.msra.mxu0 0
      %2493 = vmatpush.bf16.msra.mxu0 0
      %2494 = vmatpush.bf16.msra.mxu0 0
      %2495 = vmatpush.bf16.msra.mxu0 0
      %2496 = vmatpush.bf16.msra.mxu0 %v2358
      %2497 = vmatpush.bf16.msra.mxu0 %v2357
      %2498 = vmatmul.bf16.gmra.mxu0 %v2421
      %v2499 = vpop.f32.mrf.mxu0
      %v2500 = vadd.f32 %v2471, %v2499
      %v2501 = vpop.f32.mrf.mxu0
      %v2502 = vadd.f32 %v2473, %v2501
      %2503 = vmatmul.bf16.gmra.mxu0 %v2424
      %v2504 = vpop.f32.mrf.mxu0
      %v2505 = vadd.f32 %v2476, %v2504
      %v2506 = vpop.f32.mrf.mxu0
      %v2507 = vadd.f32 %v2478, %v2506
      %2508 = vmatmul.bf16.gmra.mxu0 %v2427
      %v2509 = vpop.f32.mrf.mxu0
      %v2510 = vadd.f32 %v2481, %v2509
      %v2511 = vpop.f32.mrf.mxu0
      %v2512 = vadd.f32 %v2483, %v2511
      %2513 = vmatmul.bf16.gmra.mxu0 %v2430
      %v2514 = vpop.f32.mrf.mxu0
      %v2515 = vadd.f32 %v2486, %v2514
      %v2516 = vpop.f32.mrf.mxu0
      %v2517 = vadd.f32 %v2488, %v2516
      %2518 = vdwg.mxu0
      %v2519 = vpack.c.bf16 %v2502, %v2500
      %v2520 = vpack.c.bf16 %v2507, %v2505
      %v2521 = vpack.c.bf16 %v2512, %v2510
      %v2522 = vpack.c.bf16 %v2517, %v2515
      %v2523 = vld [vmem:[%s8] sm:$0x3]
      %v2525 = vsel %vm1406, %v2519, 0
      %v2528 = vsel %vm1406, %v2520, 0
      %v2531 = vsel %vm1406, %v2521, 0
      %v2534 = vsel %vm1406, %v2522, 0
      %vm2536 = vcmask 1041408
      %v2538 = vsel %vm2536, %v2523, 0
      %2540 = vmatpush.bf16.msra.mxu0 0
      %2541 = vmatpush.bf16.msra.mxu0 0
      %2542 = vmatpush.bf16.msra.mxu0 0
      %2543 = vmatpush.bf16.msra.mxu0 0
      %2544 = vmatpush.bf16.msra.mxu0 0
      %2545 = vmatpush.bf16.msra.mxu0 0
      %2546 = vmatpush.bf16.msra.mxu0 0
      %2547 = vmatpush.bf16.msra.mxu0 %v2538
      %2548 = vmatmul.bf16.gmra.mxu0 %v2525
      %v2549 = vpop.f32.mrf.mxu0
      %v2550 = vadd.f32 0.0, %v2549
      %v2551 = vpop.f32.mrf.mxu0
      %v2552 = vadd.f32 0.0, %v2551
      %2553 = vmatmul.bf16.gmra.mxu0 %v2528
      %v2554 = vpop.f32.mrf.mxu0
      %v2555 = vadd.f32 0.0, %v2554
      %v2556 = vpop.f32.mrf.mxu0
      %v2557 = vadd.f32 0.0, %v2556
      %2558 = vmatmul.bf16.gmra.mxu0 %v2531
      %v2559 = vpop.f32.mrf.mxu0
      %v2560 = vadd.f32 0.0, %v2559
      %v2561 = vpop.f32.mrf.mxu0
      %v2562 = vadd.f32 0.0, %v2561
      %2563 = vmatmul.bf16.gmra.mxu0 %v2534
      %v2564 = vpop.f32.mrf.mxu0
      %v2565 = vadd.f32 0.0, %v2564
      %v2566 = vpop.f32.mrf.mxu0
      %v2567 = vadd.f32 0.0, %v2566
      %2568 = vdwg.mxu0
      %2571 = vrot.lane.b32.xlu0 %v2555, 113
      %v2572 = vpop.permute.xlu0 %2571
      %2573 = vrot.lane.b32.xlu0 %v2557, 113
      %v2574 = vpop.permute.xlu0 %2573
      %2577 = vrot.lane.b32.xlu0 %v2555, 1
      %v2578 = vpop.permute.xlu0 %2577
      %2579 = vrot.lane.b32.xlu0 %v2557, 1
      %v2580 = vpop.permute.xlu0 %2579
      %v2583 = vsel %vm941, %v2572, %v2578
      %v2584 = vsel %vm941, %v2574, %v2580
      %v2585 = vadd.f32 %v2550, %v2583
      %v2586 = vadd.f32 %v2552, %v2584
      %2589 = vrot.lane.b32.xlu0 %v2560, 116
      %v2590 = vpop.permute.xlu0 %2589
      %2591 = vrot.lane.b32.xlu0 %v2562, 116
      %v2592 = vpop.permute.xlu0 %2591
      %2595 = vrot.lane.b32.xlu0 %v2560, 4
      %v2596 = vpop.permute.xlu0 %2595
      %2597 = vrot.lane.b32.xlu0 %v2562, 4
      %v2598 = vpop.permute.xlu0 %2597
      %v2601 = vsel %vm1406, %v2590, %v2596
      %v2602 = vsel %vm1406, %v2592, %v2598
      %v2603 = vadd.f32 %v2585, %v2601
      %v2604 = vadd.f32 %v2586, %v2602
      %2607 = vrot.lane.b32.xlu0 %v2565, 117
      %v2608 = vpop.permute.xlu0 %2607
      %2609 = vrot.lane.b32.xlu0 %v2567, 117
      %v2610 = vpop.permute.xlu0 %2609
      %2613 = vrot.lane.b32.xlu0 %v2565, 5
      %v2614 = vpop.permute.xlu0 %2613
      %2615 = vrot.lane.b32.xlu0 %v2567, 5
      %v2616 = vpop.permute.xlu0 %2615
      %v2619 = vsel %vm1387, %v2608, %v2614
      %v2620 = vsel %vm1387, %v2610, %v2616
      %v2621 = vadd.f32 %v2603, %v2619
      %v2622 = vadd.f32 %v2604, %v2620
      %v2623 = vld [vmem:[%s12 + $0x68] sm:$0xff]
      %v2624 = vld [vmem:[%s12 + $0x70] sm:$0xff]
      %2626 = vset.pattern.permute.xlu0 0
      %2627 = vperm.xlu0 %2626, %v2623
      %v2628 = vpop.permute.xlu0 %2627
      %2631 = vset.pattern.permute.xlu0 0
      %2632 = vperm.xlu0 %2631, %v2624
      %v2633 = vpop.permute.xlu0 %2632
      %v2635 = vadd.f32 %v2621, %v2628
      %v2636 = vadd.f32 %v2622, %v2633
      %v2637 = vmax.f32 %v2635, 0.0
      %v2638 = vmax.f32 %v2636, 0.0
      %v2639 = vadd.f32 %v2637, %v1787
      %v2640 = vadd.f32 %v2638, %v1788
      %2643 = vrot.lane.b32.xlu0 %v2639, 117
      %v2644 = vpop.permute.xlu0 %2643
      %2645 = vrot.lane.b32.xlu0 %v2640, 117
      %v2646 = vpop.permute.xlu0 %2645
      %2649 = vrot.lane.b32.xlu0 %v2639, 5
      %v2650 = vpop.permute.xlu0 %2649
      %2651 = vrot.lane.b32.xlu0 %v2640, 5
      %v2652 = vpop.permute.xlu0 %2651
      %v2655 = vsel %vm1387, %v2644, %v2650
      %v2656 = vsel %vm1387, %v2646, %v2652
      %v2657 = vmul.f32 %v2655, %v1391
      %v2658 = vmul.f32 %v2656, %v1391
      %2659 = vrot.lane.b32.xlu0 %v2639, 116
      %v2660 = vpop.permute.xlu0 %2659
      %2661 = vrot.lane.b32.xlu0 %v2640, 116
      %v2662 = vpop.permute.xlu0 %2661
      %2665 = vrot.lane.b32.xlu0 %v2639, 4
      %v2666 = vpop.permute.xlu0 %2665
      %2667 = vrot.lane.b32.xlu0 %v2640, 4
      %v2668 = vpop.permute.xlu0 %2667
      %v2671 = vsel %vm1406, %v2660, %v2666
      %v2672 = vsel %vm1406, %v2662, %v2668
      %v2673 = vmul.f32 %v2671, %v1410
      %v2674 = vmul.f32 %v2672, %v1410
      %2675 = vrot.lane.b32.xlu0 %v2639, 115
      %v2676 = vpop.permute.xlu0 %2675
      %2677 = vrot.lane.b32.xlu0 %v2640, 115
      %v2678 = vpop.permute.xlu0 %2677
      %2681 = vrot.lane.b32.xlu0 %v2639, 3
      %v2682 = vpop.permute.xlu0 %2681
      %2683 = vrot.lane.b32.xlu0 %v2640, 3
      %v2684 = vpop.permute.xlu0 %2683
      %v2687 = vsel %vm1425, %v2676, %v2682
      %v2688 = vsel %vm1425, %v2678, %v2684
      %v2689 = vmul.f32 %v2687, %v1429
      %v2690 = vmul.f32 %v2688, %v1429
      %2691 = vrot.lane.b32.xlu0 %v2639, 113
      %v2692 = vpop.permute.xlu0 %2691
      %2693 = vrot.lane.b32.xlu0 %v2640, 113
      %v2694 = vpop.permute.xlu0 %2693
      %2697 = vrot.lane.b32.xlu0 %v2639, 1
      %v2698 = vpop.permute.xlu0 %2697
      %2699 = vrot.lane.b32.xlu0 %v2640, 1
      %v2700 = vpop.permute.xlu0 %2699
      %v2703 = vsel %vm941, %v2692, %v2698
      %v2704 = vsel %vm941, %v2694, %v2700
      %v2705 = vmul.f32 %v2703, %v1447
      %v2706 = vmul.f32 %v2704, %v1447
      %2707 = vrot.lane.b32.xlu0 %v2639, 127
      %v2708 = vpop.permute.xlu0 %2707
      %2709 = vrot.lane.b32.xlu0 %v2640, 127
      %v2710 = vpop.permute.xlu0 %2709
      %2713 = vrot.lane.b32.xlu0 %v2639, 15
      %v2714 = vpop.permute.xlu0 %2713
      %2715 = vrot.lane.b32.xlu0 %v2640, 15
      %v2716 = vpop.permute.xlu0 %2715
      %v2719 = vsel %vm1462, %v2708, %v2714
      %v2720 = vsel %vm1462, %v2710, %v2716
      %v2721 = vmul.f32 %v2719, %v1466
      %v2722 = vmul.f32 %v2720, %v1466
      %2723 = vrot.lane.b32.xlu0 %v2639, 125
      %v2724 = vpop.permute.xlu0 %2723
      %2725 = vrot.lane.b32.xlu0 %v2640, 125
      %v2726 = vpop.permute.xlu0 %2725
      %2729 = vrot.lane.b32.xlu0 %v2639, 13
      %v2730 = vpop.permute.xlu0 %2729
      %2731 = vrot.lane.b32.xlu0 %v2640, 13
      %v2732 = vpop.permute.xlu0 %2731
      %v2735 = vsel %vm1481, %v2724, %v2730
      %v2736 = vsel %vm1481, %v2726, %v2732
      %v2737 = vmul.f32 %v2735, %v1485
      %v2738 = vmul.f32 %v2736, %v1485
      %2739 = vrot.lane.b32.xlu0 %v2639, 124
      %v2740 = vpop.permute.xlu0 %2739
      %2741 = vrot.lane.b32.xlu0 %v2640, 124
      %v2742 = vpop.permute.xlu0 %2741
      %2745 = vrot.lane.b32.xlu0 %v2639, 12
      %v2746 = vpop.permute.xlu0 %2745
      %2747 = vrot.lane.b32.xlu0 %v2640, 12
      %v2748 = vpop.permute.xlu0 %2747
      %v2751 = vsel %vm1500, %v2740, %v2746
      %v2752 = vsel %vm1500, %v2742, %v2748
      %v2753 = vmul.f32 %v2751, %v1504
      %v2754 = vmul.f32 %v2752, %v1504
      %2755 = vrot.lane.b32.xlu0 %v2639, 123
      %v2756 = vpop.permute.xlu0 %2755
      %2757 = vrot.lane.b32.xlu0 %v2640, 123
      %v2758 = vpop.permute.xlu0 %2757
      %2761 = vrot.lane.b32.xlu0 %v2639, 11
      %v2762 = vpop.permute.xlu0 %2761
      %2763 = vrot.lane.b32.xlu0 %v2640, 11
      %v2764 = vpop.permute.xlu0 %2763
      %v2767 = vsel %vm1519, %v2756, %v2762
      %v2768 = vsel %vm1519, %v2758, %v2764
      %v2769 = vmul.f32 %v2767, %v1523
      %v2770 = vmul.f32 %v2768, %v1523
      %v2771 = vld [vmem:[%s11 + $0x120] sm:$0xff]
      %v2772 = vld [vmem:[%s11 + $0x12c] sm:$0xff]
      %v2773 = vpack.c.bf16 %v2658, %v2657
      %v2774 = vpack.c.bf16 %v2674, %v2673
      %v2775 = vpack.c.bf16 %v2690, %v2689
      %v2776 = vpack.c.bf16 %v2706, %v2705
      %v2777 = vpack.c.bf16 %v2640, %v2639
      %v2778 = vpack.c.bf16 %v2722, %v2721
      %v2779 = vpack.c.bf16 %v2738, %v2737
      %v2780 = vpack.c.bf16 %v2754, %v2753
      %v2781 = vpack.c.bf16 %v2770, %v2769
      %v2782 = vld [vmem:[%s12 + $0x78] sm:$0xff]
      %v2783 = vld [vmem:[%s12 + $0x80] sm:$0xff]
      %2785 = vset.pattern.permute.xlu0 0
      %2786 = vperm.xlu0 %2785, %v2782
      %v2787 = vpop.permute.xlu0 %2786
      %2790 = vset.pattern.permute.xlu0 0
      %2791 = vperm.xlu0 %2790, %v2783
      %v2792 = vpop.permute.xlu0 %2791
      %v2796 = vunpack.c.l.b16 %v2771
      %v2797 = vunpack.c.h.b16 %v2771
      %v2798 = vunpack.c.l.b16 %v2772
      %v2799 = vunpack.c.h.b16 %v2772
      %v2800 = vpack.c.b16 %v2798, %v2796
      %v2801 = vpack.c.b16 %v2799, %v2797
      %v2804 = vsel %vm1558, %v2801, 0
      %2806 = vmatpush.bf16.msra.mxu0 %v2780
      %2807 = vmatpush.bf16.msra.mxu0 %v2779
      %2808 = vmatpush.bf16.msra.mxu0 %v2778
      %2809 = vmatpush.bf16.msra.mxu0 %v2777
      %2810 = vmatpush.bf16.msra.mxu0 %v2776
      %2811 = vmatpush.bf16.msra.mxu0 %v2775
      %2812 = vmatpush.bf16.msra.mxu0 %v2774
      %2813 = vmatpush.bf16.msra.mxu0 %v2773
      %2814 = vmatmul.bf16.gmra.mxu0 %v2800
      %v2815 = vpop.f32.mrf.mxu0
      %v2816 = vadd.f32 %v2787, %v2815
      %v2817 = vpop.f32.mrf.mxu0
      %v2818 = vadd.f32 %v2792, %v2817
      %2819 = vdwg.mxu0
      %2820 = vmatpush.bf16.msra.mxu0 0
      %2821 = vmatpush.bf16.msra.mxu0 0
      %2822 = vmatpush.bf16.msra.mxu0 0
      %2823 = vmatpush.bf16.msra.mxu0 0
      %2824 = vmatpush.bf16.msra.mxu0 0
      %2825 = vmatpush.bf16.msra.mxu0 0
      %2826 = vmatpush.bf16.msra.mxu0 0
      %2827 = vmatpush.bf16.msra.mxu0 %v2781
      %2828 = vmatmul.bf16.gmra.mxu0 %v2804
      %v2829 = vpop.f32.mrf.mxu0
      %v2830 = vadd.f32 %v2816, %v2829
      %v2831 = vpop.f32.mrf.mxu0
      %v2832 = vadd.f32 %v2818, %v2831
      %2833 = vdwg.mxu0
      %v2834 = vmax.f32 %v2830, 0.0
      %v2835 = vmax.f32 %v2832, 0.0
      %2838 = vrot.lane.b32.xlu0 %v2834, 117
      %v2839 = vpop.permute.xlu0 %2838
      %2840 = vrot.lane.b32.xlu0 %v2835, 117
      %v2841 = vpop.permute.xlu0 %2840
      %2844 = vrot.lane.b32.xlu0 %v2834, 5
      %v2845 = vpop.permute.xlu0 %2844
      %2846 = vrot.lane.b32.xlu0 %v2835, 5
      %v2847 = vpop.permute.xlu0 %2846
      %v2850 = vsel %vm1387, %v2839, %v2845
      %v2851 = vsel %vm1387, %v2841, %v2847
      %v2852 = vmul.f32 %v2850, %v1391
      %v2853 = vmul.f32 %v2851, %v1391
      %2854 = vrot.lane.b32.xlu0 %v2834, 116
      %v2855 = vpop.permute.xlu0 %2854
      %2856 = vrot.lane.b32.xlu0 %v2835, 116
      %v2857 = vpop.permute.xlu0 %2856
      %2860 = vrot.lane.b32.xlu0 %v2834, 4
      %v2861 = vpop.permute.xlu0 %2860
      %2862 = vrot.lane.b32.xlu0 %v2835, 4
      %v2863 = vpop.permute.xlu0 %2862
      %v2866 = vsel %vm1406, %v2855, %v2861
      %v2867 = vsel %vm1406, %v2857, %v2863
      %v2868 = vmul.f32 %v2866, %v1410
      %v2869 = vmul.f32 %v2867, %v1410
      %2870 = vrot.lane.b32.xlu0 %v2834, 115
      %v2871 = vpop.permute.xlu0 %2870
      %2872 = vrot.lane.b32.xlu0 %v2835, 115
      %v2873 = vpop.permute.xlu0 %2872
      %2876 = vrot.lane.b32.xlu0 %v2834, 3
      %v2877 = vpop.permute.xlu0 %2876
      %2878 = vrot.lane.b32.xlu0 %v2835, 3
      %v2879 = vpop.permute.xlu0 %2878
      %v2882 = vsel %vm1425, %v2871, %v2877
      %v2883 = vsel %vm1425, %v2873, %v2879
      %v2884 = vmul.f32 %v2882, %v1429
      %v2885 = vmul.f32 %v2883, %v1429
      %2886 = vrot.lane.b32.xlu0 %v2834, 113
      %v2887 = vpop.permute.xlu0 %2886
      %2888 = vrot.lane.b32.xlu0 %v2835, 113
      %v2889 = vpop.permute.xlu0 %2888
      %2892 = vrot.lane.b32.xlu0 %v2834, 1
      %v2893 = vpop.permute.xlu0 %2892
      %2894 = vrot.lane.b32.xlu0 %v2835, 1
      %v2895 = vpop.permute.xlu0 %2894
      %v2898 = vsel %vm941, %v2887, %v2893
      %v2899 = vsel %vm941, %v2889, %v2895
      %v2900 = vmul.f32 %v2898, %v1447
      %v2901 = vmul.f32 %v2899, %v1447
      %2902 = vrot.lane.b32.xlu0 %v2834, 127
      %v2903 = vpop.permute.xlu0 %2902
      %2904 = vrot.lane.b32.xlu0 %v2835, 127
      %v2905 = vpop.permute.xlu0 %2904
      %2908 = vrot.lane.b32.xlu0 %v2834, 15
      %v2909 = vpop.permute.xlu0 %2908
      %2910 = vrot.lane.b32.xlu0 %v2835, 15
      %v2911 = vpop.permute.xlu0 %2910
      %v2914 = vsel %vm1462, %v2903, %v2909
      %v2915 = vsel %vm1462, %v2905, %v2911
      %v2916 = vmul.f32 %v2914, %v1466
      %v2917 = vmul.f32 %v2915, %v1466
      %2918 = vrot.lane.b32.xlu0 %v2834, 125
      %v2919 = vpop.permute.xlu0 %2918
      %2920 = vrot.lane.b32.xlu0 %v2835, 125
      %v2921 = vpop.permute.xlu0 %2920
      %2924 = vrot.lane.b32.xlu0 %v2834, 13
      %v2925 = vpop.permute.xlu0 %2924
      %2926 = vrot.lane.b32.xlu0 %v2835, 13
      %v2927 = vpop.permute.xlu0 %2926
      %v2930 = vsel %vm1481, %v2919, %v2925
      %v2931 = vsel %vm1481, %v2921, %v2927
      %v2932 = vmul.f32 %v2930, %v1485
      %v2933 = vmul.f32 %v2931, %v1485
      %2934 = vrot.lane.b32.xlu0 %v2834, 124
      %v2935 = vpop.permute.xlu0 %2934
      %2936 = vrot.lane.b32.xlu0 %v2835, 124
      %v2937 = vpop.permute.xlu0 %2936
      %2940 = vrot.lane.b32.xlu0 %v2834, 12
      %v2941 = vpop.permute.xlu0 %2940
      %2942 = vrot.lane.b32.xlu0 %v2835, 12
      %v2943 = vpop.permute.xlu0 %2942
      %v2946 = vsel %vm1500, %v2935, %v2941
      %v2947 = vsel %vm1500, %v2937, %v2943
      %v2948 = vmul.f32 %v2946, %v1504
      %v2949 = vmul.f32 %v2947, %v1504
      %2950 = vrot.lane.b32.xlu0 %v2834, 123
      %v2951 = vpop.permute.xlu0 %2950
      %2952 = vrot.lane.b32.xlu0 %v2835, 123
      %v2953 = vpop.permute.xlu0 %2952
      %2956 = vrot.lane.b32.xlu0 %v2834, 11
      %v2957 = vpop.permute.xlu0 %2956
      %2958 = vrot.lane.b32.xlu0 %v2835, 11
      %v2959 = vpop.permute.xlu0 %2958
      %v2962 = vsel %vm1519, %v2951, %v2957
      %v2963 = vsel %vm1519, %v2953, %v2959
      %v2964 = vmul.f32 %v2962, %v1523
      %v2965 = vmul.f32 %v2963, %v1523
      %v2966 = vld [vmem:[%s11 + $0x138] sm:$0xff]
      %v2967 = vld [vmem:[%s11 + $0x144] sm:$0xff]
      %v2968 = vpack.c.bf16 %v2853, %v2852
      %v2969 = vpack.c.bf16 %v2869, %v2868
      %v2970 = vpack.c.bf16 %v2885, %v2884
      %v2971 = vpack.c.bf16 %v2901, %v2900
      %v2972 = vpack.c.bf16 %v2835, %v2834
      %v2973 = vpack.c.bf16 %v2917, %v2916
      %v2974 = vpack.c.bf16 %v2933, %v2932
      %v2975 = vpack.c.bf16 %v2949, %v2948
      %v2976 = vpack.c.bf16 %v2965, %v2964
      %v2977 = vld [vmem:[%s12 + $0x88] sm:$0xff]
      %v2978 = vld [vmem:[%s12 + $0x90] sm:$0xff]
      %2980 = vset.pattern.permute.xlu0 0
      %2981 = vperm.xlu0 %2980, %v2977
      %v2982 = vpop.permute.xlu0 %2981
      %2985 = vset.pattern.permute.xlu0 0
      %2986 = vperm.xlu0 %2985, %v2978
      %v2987 = vpop.permute.xlu0 %2986
      %v2991 = vunpack.c.l.b16 %v2966
      %v2992 = vunpack.c.h.b16 %v2966
      %v2993 = vunpack.c.l.b16 %v2967
      %v2994 = vunpack.c.h.b16 %v2967
      %v2995 = vpack.c.b16 %v2993, %v2991
      %v2996 = vpack.c.b16 %v2994, %v2992
      %v2999 = vsel %vm1558, %v2996, 0
      %3001 = vmatpush.bf16.msra.mxu0 %v2975
      %3002 = vmatpush.bf16.msra.mxu0 %v2974
      %3003 = vmatpush.bf16.msra.mxu0 %v2973
      %3004 = vmatpush.bf16.msra.mxu0 %v2972
      %3005 = vmatpush.bf16.msra.mxu0 %v2971
      %3006 = vmatpush.bf16.msra.mxu0 %v2970
      %3007 = vmatpush.bf16.msra.mxu0 %v2969
      %3008 = vmatpush.bf16.msra.mxu0 %v2968
      %3009 = vmatmul.bf16.gmra.mxu0 %v2995
      %v3010 = vpop.f32.mrf.mxu0
      %v3011 = vadd.f32 %v2982, %v3010
      %v3012 = vpop.f32.mrf.mxu0
      %v3013 = vadd.f32 %v2987, %v3012
      %3014 = vdwg.mxu0
      %3015 = vmatpush.bf16.msra.mxu0 0
      %3016 = vmatpush.bf16.msra.mxu0 0
      %3017 = vmatpush.bf16.msra.mxu0 0
      %3018 = vmatpush.bf16.msra.mxu0 0
      %3019 = vmatpush.bf16.msra.mxu0 0
      %3020 = vmatpush.bf16.msra.mxu0 0
      %3021 = vmatpush.bf16.msra.mxu0 0
      %3022 = vmatpush.bf16.msra.mxu0 %v2976
      %3023 = vmatmul.bf16.gmra.mxu0 %v2999
      %v3024 = vpop.f32.mrf.mxu0
      %v3025 = vadd.f32 %v3011, %v3024
      %v3026 = vpop.f32.mrf.mxu0
      %v3027 = vadd.f32 %v3013, %v3026
      %3028 = vdwg.mxu0
      %v3029 = vadd.f32 %v3025, %v2639
      %v3030 = vadd.f32 %v3027, %v2640
      %v3031 = vmax.f32 %v3029, 0.0
      %v3032 = vmax.f32 %v3030, 0.0
      %v3033 = vadd.f32 %v3031, %v1371
      %v3034 = vadd.f32 %v3032, %v1372
      %3037 = vrot.lane.b32.xlu0 %v3033, 117
      %v3038 = vpop.permute.xlu0 %3037
      %3039 = vrot.lane.b32.xlu0 %v3034, 117
      %v3040 = vpop.permute.xlu0 %3039
      %3043 = vrot.lane.b32.xlu0 %v3033, 5
      %v3044 = vpop.permute.xlu0 %3043
      %3045 = vrot.lane.b32.xlu0 %v3034, 5
      %v3046 = vpop.permute.xlu0 %3045
      %v3049 = vsel %vm1387, %v3038, %v3044
      %v3050 = vsel %vm1387, %v3040, %v3046
      %v3051 = vmul.f32 %v3049, %v1391
      %v3052 = vmul.f32 %v3050, %v1391
      %3053 = vrot.lane.b32.xlu0 %v3033, 116
      %v3054 = vpop.permute.xlu0 %3053
      %3055 = vrot.lane.b32.xlu0 %v3034, 116
      %v3056 = vpop.permute.xlu0 %3055
      %3059 = vrot.lane.b32.xlu0 %v3033, 4
      %v3060 = vpop.permute.xlu0 %3059
      %3061 = vrot.lane.b32.xlu0 %v3034, 4
      %v3062 = vpop.permute.xlu0 %3061
      %v3065 = vsel %vm1406, %v3054, %v3060
      %v3066 = vsel %vm1406, %v3056, %v3062
      %v3067 = vmul.f32 %v3065, %v1410
      %v3068 = vmul.f32 %v3066, %v1410
      %3069 = vrot.lane.b32.xlu0 %v3033, 115
      %v3070 = vpop.permute.xlu0 %3069
      %3071 = vrot.lane.b32.xlu0 %v3034, 115
      %v3072 = vpop.permute.xlu0 %3071
      %3075 = vrot.lane.b32.xlu0 %v3033, 3
      %v3076 = vpop.permute.xlu0 %3075
      %3077 = vrot.lane.b32.xlu0 %v3034, 3
      %v3078 = vpop.permute.xlu0 %3077
      %v3081 = vsel %vm1425, %v3070, %v3076
      %v3082 = vsel %vm1425, %v3072, %v3078
      %v3083 = vmul.f32 %v3081, %v1429
      %v3084 = vmul.f32 %v3082, %v1429
      %3085 = vrot.lane.b32.xlu0 %v3033, 113
      %v3086 = vpop.permute.xlu0 %3085
      %3087 = vrot.lane.b32.xlu0 %v3034, 113
      %v3088 = vpop.permute.xlu0 %3087
      %3091 = vrot.lane.b32.xlu0 %v3033, 1
      %v3092 = vpop.permute.xlu0 %3091
      %3093 = vrot.lane.b32.xlu0 %v3034, 1
      %v3094 = vpop.permute.xlu0 %3093
      %v3097 = vsel %vm941, %v3086, %v3092
      %v3098 = vsel %vm941, %v3088, %v3094
      %v3099 = vmul.f32 %v3097, %v1447
      %v3100 = vmul.f32 %v3098, %v1447
      %3101 = vrot.lane.b32.xlu0 %v3033, 127
      %v3102 = vpop.permute.xlu0 %3101
      %3103 = vrot.lane.b32.xlu0 %v3034, 127
      %v3104 = vpop.permute.xlu0 %3103
      %3107 = vrot.lane.b32.xlu0 %v3033, 15
      %v3108 = vpop.permute.xlu0 %3107
      %3109 = vrot.lane.b32.xlu0 %v3034, 15
      %v3110 = vpop.permute.xlu0 %3109
      %v3113 = vsel %vm1462, %v3102, %v3108
      %v3114 = vsel %vm1462, %v3104, %v3110
      %v3115 = vmul.f32 %v3113, %v1466
      %v3116 = vmul.f32 %v3114, %v1466
      %3117 = vrot.lane.b32.xlu0 %v3033, 125
      %v3118 = vpop.permute.xlu0 %3117
      %3119 = vrot.lane.b32.xlu0 %v3034, 125
      %v3120 = vpop.permute.xlu0 %3119
      %3123 = vrot.lane.b32.xlu0 %v3033, 13
      %v3124 = vpop.permute.xlu0 %3123
      %3125 = vrot.lane.b32.xlu0 %v3034, 13
      %v3126 = vpop.permute.xlu0 %3125
      %v3129 = vsel %vm1481, %v3118, %v3124
      %v3130 = vsel %vm1481, %v3120, %v3126
      %v3131 = vmul.f32 %v3129, %v1485
      %v3132 = vmul.f32 %v3130, %v1485
      %3133 = vrot.lane.b32.xlu0 %v3033, 124
      %v3134 = vpop.permute.xlu0 %3133
      %3135 = vrot.lane.b32.xlu0 %v3034, 124
      %v3136 = vpop.permute.xlu0 %3135
      %3139 = vrot.lane.b32.xlu0 %v3033, 12
      %v3140 = vpop.permute.xlu0 %3139
      %3141 = vrot.lane.b32.xlu0 %v3034, 12
      %v3142 = vpop.permute.xlu0 %3141
      %v3145 = vsel %vm1500, %v3134, %v3140
      %v3146 = vsel %vm1500, %v3136, %v3142
      %v3147 = vmul.f32 %v3145, %v1504
      %v3148 = vmul.f32 %v3146, %v1504
      %3149 = vrot.lane.b32.xlu0 %v3033, 123
      %v3150 = vpop.permute.xlu0 %3149
      %3151 = vrot.lane.b32.xlu0 %v3034, 123
      %v3152 = vpop.permute.xlu0 %3151
      %3155 = vrot.lane.b32.xlu0 %v3033, 11
      %v3156 = vpop.permute.xlu0 %3155
      %3157 = vrot.lane.b32.xlu0 %v3034, 11
      %v3158 = vpop.permute.xlu0 %3157
      %v3161 = vsel %vm1519, %v3150, %v3156
      %v3162 = vsel %vm1519, %v3152, %v3158
      %v3163 = vmul.f32 %v3161, %v1523
      %v3164 = vmul.f32 %v3162, %v1523
      %v3165 = vld [vmem:[%s11 + $0x150] sm:$0xff]
      %v3166 = vld [vmem:[%s11 + $0x15c] sm:$0xff]
      %v3167 = vld [vmem:[%s11 + $0x168] sm:$0xff]
      %v3168 = vld [vmem:[%s11 + $0x174] sm:$0xff]
      %v3169 = vpack.c.bf16 %v3052, %v3051
      %v3170 = vpack.c.bf16 %v3068, %v3067
      %v3171 = vpack.c.bf16 %v3084, %v3083
      %v3172 = vpack.c.bf16 %v3100, %v3099
      %v3173 = vpack.c.bf16 %v3034, %v3033
      %v3174 = vpack.c.bf16 %v3116, %v3115
      %v3175 = vpack.c.bf16 %v3132, %v3131
      %v3176 = vpack.c.bf16 %v3148, %v3147
      %v3177 = vpack.c.bf16 %v3164, %v3163
      %v3182 = vunpack.c.l.b16 %v3165
      %v3183 = vunpack.c.h.b16 %v3165
      %v3184 = vunpack.c.l.b16 %v3166
      %v3185 = vunpack.c.h.b16 %v3166
      %v3186 = vunpack.c.l.b16 %v3167
      %v3187 = vunpack.c.h.b16 %v3167
      %v3188 = vunpack.c.l.b16 %v3168
      %v3189 = vunpack.c.h.b16 %v3168
      %v3190 = vpack.c.b16 %v3184, %v3182
      %v3191 = vpack.c.b16 %v3185, %v3183
      %v3192 = vpack.c.b16 %v3188, %v3186
      %v3193 = vpack.c.b16 %v3189, %v3187
      %v3197 = vsel %vm1558, %v3191, 0
      %v3200 = vsel %vm1558, %v3193, 0
      %3202 = vmatpush.bf16.msra.mxu0 %v3176
      %3203 = vmatpush.bf16.msra.mxu0 %v3175
      %3204 = vmatpush.bf16.msra.mxu0 %v3174
      %3205 = vmatpush.bf16.msra.mxu0 %v3173
      %3206 = vmatpush.bf16.msra.mxu0 %v3172
      %3207 = vmatpush.bf16.msra.mxu0 %v3171
      %3208 = vmatpush.bf16.msra.mxu0 %v3170
      %3209 = vmatpush.bf16.msra.mxu0 %v3169
      %3210 = vmatmul.bf16.gmra.mxu0 %v3190
      %v3211 = vpop.f32.mrf.mxu0
      %v3212 = vadd.f32 0.0, %v3211
      %v3213 = vpop.f32.mrf.mxu0
      %v3214 = vadd.f32 0.0, %v3213
      %3215 = vmatmul.bf16.gmra.mxu0 %v3192
      %v3216 = vpop.f32.mrf.mxu0
      %v3217 = vadd.f32 0.0, %v3216
      %v3218 = vpop.f32.mrf.mxu0
      %v3219 = vadd.f32 0.0, %v3218
      %3220 = vdwg.mxu0
      %3221 = vmatpush.bf16.msra.mxu0 0
      %3222 = vmatpush.bf16.msra.mxu0 0
      %3223 = vmatpush.bf16.msra.mxu0 0
      %3224 = vmatpush.bf16.msra.mxu0 0
      %3225 = vmatpush.bf16.msra.mxu0 0
      %3226 = vmatpush.bf16.msra.mxu0 0
      %3227 = vmatpush.bf16.msra.mxu0 0
      %3228 = vmatpush.bf16.msra.mxu0 %v3177
      %3229 = vmatmul.bf16.gmra.mxu0 %v3197
      %v3230 = vpop.f32.mrf.mxu0
      %v3231 = vadd.f32 %v3212, %v3230
      %v3232 = vpop.f32.mrf.mxu0
      %v3233 = vadd.f32 %v3214, %v3232
      %3234 = vmatmul.bf16.gmra.mxu0 %v3200
      %v3235 = vpop.f32.mrf.mxu0
      %v3236 = vadd.f32 %v3217, %v3235
      %v3237 = vpop.f32.mrf.mxu0
      %v3238 = vadd.f32 %v3219, %v3237
      %3239 = vdwg.mxu0
      %v3240 = vpack.c.bf16 %v3233, %v3231
      %v3241 = vpack.c.bf16 %v3238, %v3236
      %v3242 = vld [vmem:[%s9] sm:$0xf]
      %v3243 = vld [vmem:[%s9 + $0x4] sm:$0xf]
      %v3246 = vunpack.c.l.b16 %v3242
      %v3247 = vunpack.c.l.b16 %v3243
      %v3248 = vpack.c.b16 %v3247, %v3246
      %v3251 = vsel %vm1558, %v3240, 0
      %v3254 = vsel %vm1558, %v3241, 0
      %3256 = vmatpush.bf16.msra.mxu0 0
      %3257 = vmatpush.bf16.msra.mxu0 0
      %3258 = vmatpush.bf16.msra.mxu0 0
      %3259 = vmatpush.bf16.msra.mxu0 0
      %3260 = vmatpush.bf16.msra.mxu0 0
      %3261 = vmatpush.bf16.msra.mxu0 0
      %3262 = vmatpush.bf16.msra.mxu0 0
      %3263 = vmatpush.bf16.msra.mxu0 %v3248
      %3264 = vmatmul.bf16.gmra.mxu0 %v3251
      %v3265 = vpop.f32.mrf.mxu0
      %v3266 = vadd.f32 0.0, %v3265
      %v3267 = vpop.f32.mrf.mxu0
      %v3268 = vadd.f32 0.0, %v3267
      %3269 = vmatmul.bf16.gmra.mxu0 %v3254
      %v3270 = vpop.f32.mrf.mxu0
      %v3271 = vadd.f32 0.0, %v3270
      %v3272 = vpop.f32.mrf.mxu0
      %v3273 = vadd.f32 0.0, %v3272
      %3274 = vdwg.mxu0
      %3276 = vrot.lane.b32.xlu0 %v3268, 65
      %v3277 = vpop.permute.xlu0 %3276
      %3279 = vrot.lane.b32.xlu0 %v3268, 1
      %v3280 = vpop.permute.xlu0 %3279
      %v3282 = vsel %vm941, %v3277, %v3280
      %v3283 = vadd.f32 %v3266, %v3282
      %3285 = vrot.lane.b32.xlu0 %v3271, 72
      %v3286 = vpop.permute.xlu0 %3285
      %3288 = vrot.lane.b32.xlu0 %v3271, 8
      %v3289 = vpop.permute.xlu0 %3288
      %v3291 = vsel %vm919, %v3286, %v3289
      %v3292 = vadd.f32 %v3283, %v3291
      %3294 = vrot.lane.b32.xlu0 %v3273, 73
      %v3295 = vpop.permute.xlu0 %3294
      %3297 = vrot.lane.b32.xlu0 %v3273, 9
      %v3298 = vpop.permute.xlu0 %3297
      %v3300 = vsel %vm908, %v3295, %v3298
      %v3301 = vadd.f32 %v3292, %v3300
      %v3302 = vld [vmem:[%s12 + $0x98] sm:$0xff]
      %3304 = vset.pattern.permute.xlu0 0
      %3305 = vperm.xlu0 %3304, %v3302
      %v3306 = vpop.permute.xlu0 %3305
      %v3308 = vadd.f32 %v3301, %v3306
      %v3309 = vmax.f32 %v3308, 0.0
      %v3310 = vadd.f32 %v3309, %v1135
      %3312 = vrot.lane.b32.xlu0 %v3310, 73
      %v3313 = vpop.permute.xlu0 %3312
      %3315 = vrot.lane.b32.xlu0 %v3310, 9
      %v3316 = vpop.permute.xlu0 %3315
      %v3318 = vsel %vm908, %v3313, %v3316
      %v3319 = vmul.f32 %v3318, %v911
      %3320 = vrot.lane.b32.xlu0 %v3310, 72
      %v3321 = vpop.permute.xlu0 %3320
      %3323 = vrot.lane.b32.xlu0 %v3310, 8
      %v3324 = vpop.permute.xlu0 %3323
      %v3326 = vsel %vm919, %v3321, %v3324
      %v3327 = vmul.f32 %v3326, %v922
      %3328 = vrot.lane.b32.xlu0 %v3310, 71
      %v3329 = vpop.permute.xlu0 %3328
      %3331 = vrot.lane.b32.xlu0 %v3310, 7
      %v3332 = vpop.permute.xlu0 %3331
      %v3334 = vsel %vm930, %v3329, %v3332
      %v3335 = vmul.f32 %v3334, %v933
      %3336 = vrot.lane.b32.xlu0 %v3310, 65
      %v3337 = vpop.permute.xlu0 %3336
      %3339 = vrot.lane.b32.xlu0 %v3310, 1
      %v3340 = vpop.permute.xlu0 %3339
      %v3342 = vsel %vm941, %v3337, %v3340
      %v3343 = vmul.f32 %v3342, %v944
      %3344 = vrot.lane.b32.xlu0 %v3310, 127
      %v3345 = vpop.permute.xlu0 %3344
      %3347 = vrot.lane.b32.xlu0 %v3310, 63
      %v3348 = vpop.permute.xlu0 %3347
      %v3350 = vsel %vm952, %v3345, %v3348
      %v3351 = vmul.f32 %v3350, %v955
      %3352 = vrot.lane.b32.xlu0 %v3310, 121
      %v3353 = vpop.permute.xlu0 %3352
      %3355 = vrot.lane.b32.xlu0 %v3310, 57
      %v3356 = vpop.permute.xlu0 %3355
      %v3358 = vsel %vm963, %v3353, %v3356
      %v3359 = vmul.f32 %v3358, %v966
      %3360 = vrot.lane.b32.xlu0 %v3310, 120
      %v3361 = vpop.permute.xlu0 %3360
      %3363 = vrot.lane.b32.xlu0 %v3310, 56
      %v3364 = vpop.permute.xlu0 %3363
      %v3366 = vsel %vm974, %v3361, %v3364
      %v3367 = vmul.f32 %v3366, %v977
      %3368 = vrot.lane.b32.xlu0 %v3310, 119
      %v3369 = vpop.permute.xlu0 %3368
      %3371 = vrot.lane.b32.xlu0 %v3310, 55
      %v3372 = vpop.permute.xlu0 %3371
      %v3374 = vsel %vm985, %v3369, %v3372
      %v3375 = vmul.f32 %v3374, %v988
      %v3376 = vld [vmem:[%s11 + $0x180] sm:$0xf]
      %v3377 = vld [vmem:[%s11 + $0x18c] sm:$0xf]
      %v3378 = vpack.c.bf16 %v3327, %v3319
      %v3379 = vpack.c.bf16 %v3343, %v3335
      %v3380 = vpack.c.bf16 %v3351, %v3310
      %v3381 = vpack.c.bf16 %v3367, %v3359
      %v3382 = vpack.c.bf16 %v3375, %v3375
      %v3385 = vunpack.c.l.b16 %v3376
      %v3386 = vunpack.c.l.b16 %v3377
      %v3387 = vpack.c.b16 %v3386, %v3385
      %v3389 = vsel %vm1002, %v3387, 0
      %v3392 = vsel %vm1006, %v3382, 0
      %3394 = vmatpush.bf16.msra.mxu0 0
      %3395 = vmatpush.bf16.msra.mxu0 0
      %3396 = vmatpush.bf16.msra.mxu0 0
      %3397 = vmatpush.bf16.msra.mxu0 %v3392
      %3398 = vmatpush.bf16.msra.mxu0 %v3381
      %3399 = vmatpush.bf16.msra.mxu0 %v3380
      %3400 = vmatpush.bf16.msra.mxu0 %v3379
      %3401 = vmatpush.bf16.msra.mxu0 %v3378
      %3402 = vmatmul.bf16.gmra.mxu0 %v3389
      %v3403 = vpop.f32.mrf.mxu0
      %v3404 = vadd.f32 0.0, %v3403
      %v3405 = vpop.f32.mrf.mxu0
      %3406 = vdwg.mxu0
      %v3407 = vld [vmem:[%s12 + $0xa0] sm:$0xff]
      %3409 = vset.pattern.permute.xlu0 0
      %3410 = vperm.xlu0 %3409, %v3407
      %v3411 = vpop.permute.xlu0 %3410
      %v3413 = vadd.f32 %v3404, %v3411
      %v3414 = vmax.f32 %v3413, 0.0
      %3416 = vrot.lane.b32.xlu0 %v3414, 73
      %v3417 = vpop.permute.xlu0 %3416
      %3419 = vrot.lane.b32.xlu0 %v3414, 9
      %v3420 = vpop.permute.xlu0 %3419
      %v3422 = vsel %vm908, %v3417, %v3420
      %v3423 = vmul.f32 %v3422, %v911
      %3424 = vrot.lane.b32.xlu0 %v3414, 72
      %v3425 = vpop.permute.xlu0 %3424
      %3427 = vrot.lane.b32.xlu0 %v3414, 8
      %v3428 = vpop.permute.xlu0 %3427
      %v3430 = vsel %vm919, %v3425, %v3428
      %v3431 = vmul.f32 %v3430, %v922
      %3432 = vrot.lane.b32.xlu0 %v3414, 71
      %v3433 = vpop.permute.xlu0 %3432
      %3435 = vrot.lane.b32.xlu0 %v3414, 7
      %v3436 = vpop.permute.xlu0 %3435
      %v3438 = vsel %vm930, %v3433, %v3436
      %v3439 = vmul.f32 %v3438, %v933
      %3440 = vrot.lane.b32.xlu0 %v3414, 65
      %v3441 = vpop.permute.xlu0 %3440
      %3443 = vrot.lane.b32.xlu0 %v3414, 1
      %v3444 = vpop.permute.xlu0 %3443
      %v3446 = vsel %vm941, %v3441, %v3444
      %v3447 = vmul.f32 %v3446, %v944
      %3448 = vrot.lane.b32.xlu0 %v3414, 127
      %v3449 = vpop.permute.xlu0 %3448
      %3451 = vrot.lane.b32.xlu0 %v3414, 63
      %v3452 = vpop.permute.xlu0 %3451
      %v3454 = vsel %vm952, %v3449, %v3452
      %v3455 = vmul.f32 %v3454, %v955
      %3456 = vrot.lane.b32.xlu0 %v3414, 121
      %v3457 = vpop.permute.xlu0 %3456
      %3459 = vrot.lane.b32.xlu0 %v3414, 57
      %v3460 = vpop.permute.xlu0 %3459
      %v3462 = vsel %vm963, %v3457, %v3460
      %v3463 = vmul.f32 %v3462, %v966
      %3464 = vrot.lane.b32.xlu0 %v3414, 120
      %v3465 = vpop.permute.xlu0 %3464
      %3467 = vrot.lane.b32.xlu0 %v3414, 56
      %v3468 = vpop.permute.xlu0 %3467
      %v3470 = vsel %vm974, %v3465, %v3468
      %v3471 = vmul.f32 %v3470, %v977
      %3472 = vrot.lane.b32.xlu0 %v3414, 119
      %v3473 = vpop.permute.xlu0 %3472
      %3475 = vrot.lane.b32.xlu0 %v3414, 55
      %v3476 = vpop.permute.xlu0 %3475
      %v3478 = vsel %vm985, %v3473, %v3476
      %v3479 = vmul.f32 %v3478, %v988
      %v3480 = vld [vmem:[%s11 + $0x198] sm:$0xf]
      %v3481 = vld [vmem:[%s11 + $0x1a4] sm:$0xf]
      %v3482 = vpack.c.bf16 %v3431, %v3423
      %v3483 = vpack.c.bf16 %v3447, %v3439
      %v3484 = vpack.c.bf16 %v3455, %v3414
      %v3485 = vpack.c.bf16 %v3471, %v3463
      %v3486 = vpack.c.bf16 %v3479, %v3479
      %v3489 = vunpack.c.l.b16 %v3480
      %v3490 = vunpack.c.l.b16 %v3481
      %v3491 = vpack.c.b16 %v3490, %v3489
      %v3493 = vsel %vm1002, %v3491, 0
      %v3496 = vsel %vm1006, %v3486, 0
      %3498 = vmatpush.bf16.msra.mxu0 0
      %3499 = vmatpush.bf16.msra.mxu0 0
      %3500 = vmatpush.bf16.msra.mxu0 0
      %3501 = vmatpush.bf16.msra.mxu0 %v3496
      %3502 = vmatpush.bf16.msra.mxu0 %v3485
      %3503 = vmatpush.bf16.msra.mxu0 %v3484
      %3504 = vmatpush.bf16.msra.mxu0 %v3483
      %3505 = vmatpush.bf16.msra.mxu0 %v3482
      %3506 = vmatmul.bf16.gmra.mxu0 %v3493
      %v3507 = vpop.f32.mrf.mxu0
      %v3508 = vadd.f32 0.0, %v3507
      %v3509 = vpop.f32.mrf.mxu0
      %3510 = vdwg.mxu0
      %v3511 = vld [vmem:[%s12 + $0xa8] sm:$0xff]
      %3513 = vset.pattern.permute.xlu0 0
      %3514 = vperm.xlu0 %3513, %v3511
      %v3515 = vpop.permute.xlu0 %3514
      %v3517 = vadd.f32 %v3508, %v3515
      %v3518 = vadd.f32 %v3517, %v3310
      %v3519 = vmax.f32 %v3518, 0.0
      %v3520 = vadd.f32 %v3519, %v900
      %3522 = vrot.lane.b32.xlu0 %v3520, 73
      %v3523 = vpop.permute.xlu0 %3522
      %3525 = vrot.lane.b32.xlu0 %v3520, 9
      %v3526 = vpop.permute.xlu0 %3525
      %v3528 = vsel %vm908, %v3523, %v3526
      %v3529 = vmul.f32 %v3528, %v911
      %3530 = vrot.lane.b32.xlu0 %v3520, 72
      %v3531 = vpop.permute.xlu0 %3530
      %3533 = vrot.lane.b32.xlu0 %v3520, 8
      %v3534 = vpop.permute.xlu0 %3533
      %v3536 = vsel %vm919, %v3531, %v3534
      %v3537 = vmul.f32 %v3536, %v922
      %3538 = vrot.lane.b32.xlu0 %v3520, 71
      %v3539 = vpop.permute.xlu0 %3538
      %3541 = vrot.lane.b32.xlu0 %v3520, 7
      %v3542 = vpop.permute.xlu0 %3541
      %v3544 = vsel %vm930, %v3539, %v3542
      %v3545 = vmul.f32 %v3544, %v933
      %3546 = vrot.lane.b32.xlu0 %v3520, 65
      %v3547 = vpop.permute.xlu0 %3546
      %3549 = vrot.lane.b32.xlu0 %v3520, 1
      %v3550 = vpop.permute.xlu0 %3549
      %v3552 = vsel %vm941, %v3547, %v3550
      %v3553 = vmul.f32 %v3552, %v944
      %3554 = vrot.lane.b32.xlu0 %v3520, 127
      %v3555 = vpop.permute.xlu0 %3554
      %3557 = vrot.lane.b32.xlu0 %v3520, 63
      %v3558 = vpop.permute.xlu0 %3557
      %v3560 = vsel %vm952, %v3555, %v3558
      %v3561 = vmul.f32 %v3560, %v955
      %3562 = vrot.lane.b32.xlu0 %v3520, 121
      %v3563 = vpop.permute.xlu0 %3562
      %3565 = vrot.lane.b32.xlu0 %v3520, 57
      %v3566 = vpop.permute.xlu0 %3565
      %v3568 = vsel %vm963, %v3563, %v3566
      %v3569 = vmul.f32 %v3568, %v966
      %3570 = vrot.lane.b32.xlu0 %v3520, 120
      %v3571 = vpop.permute.xlu0 %3570
      %3573 = vrot.lane.b32.xlu0 %v3520, 56
      %v3574 = vpop.permute.xlu0 %3573
      %v3576 = vsel %vm974, %v3571, %v3574
      %v3577 = vmul.f32 %v3576, %v977
      %3578 = vrot.lane.b32.xlu0 %v3520, 119
      %v3579 = vpop.permute.xlu0 %3578
      %3581 = vrot.lane.b32.xlu0 %v3520, 55
      %v3582 = vpop.permute.xlu0 %3581
      %v3584 = vsel %vm985, %v3579, %v3582
      %v3585 = vmul.f32 %v3584, %v988
      %v3586 = vld [vmem:[%s11 + $0x1b0] sm:$0xf]
      %v3587 = vld [vmem:[%s11 + $0x1bc] sm:$0xf]
      %v3588 = vld [vmem:[%s11 + $0x1c8] sm:$0xf]
      %v3589 = vld [vmem:[%s11 + $0x1d4] sm:$0xf]
      %v3590 = vpack.c.bf16 %v3537, %v3529
      %v3591 = vpack.c.bf16 %v3553, %v3545
      %v3592 = vpack.c.bf16 %v3561, %v3520
      %v3593 = vpack.c.bf16 %v3577, %v3569
      %v3594 = vpack.c.bf16 %v3585, %v3585
      %v3599 = vunpack.c.l.b16 %v3586
      %v3600 = vunpack.c.l.b16 %v3587
      %v3601 = vunpack.c.l.b16 %v3588
      %v3602 = vunpack.c.l.b16 %v3589
      %v3603 = vpack.c.b16 %v3600, %v3599
      %v3604 = vpack.c.b16 %v3602, %v3601
      %v3606 = vsel %vm1002, %v3603, 0
      %v3609 = vsel %vm1002, %v3604, 0
      %v3612 = vsel %vm1006, %v3594, 0
      %3614 = vmatpush.bf16.msra.mxu0 0
      %3615 = vmatpush.bf16.msra.mxu0 0
      %3616 = vmatpush.bf16.msra.mxu0 0
      %3617 = vmatpush.bf16.msra.mxu0 %v3612
      %3618 = vmatpush.bf16.msra.mxu0 %v3593
      %3619 = vmatpush.bf16.msra.mxu0 %v3592
      %3620 = vmatpush.bf16.msra.mxu0 %v3591
      %3621 = vmatpush.bf16.msra.mxu0 %v3590
      %3622 = vmatmul.bf16.gmra.mxu0 %v3606
      %v3623 = vpop.f32.mrf.mxu0
      %v3624 = vadd.f32 0.0, %v3623
      %v3625 = vpop.f32.mrf.mxu0
      %v3626 = vadd.f32 0.0, %v3625
      %3627 = vmatmul.bf16.gmra.mxu0 %v3609
      %v3628 = vpop.f32.mrf.mxu0
      %v3629 = vadd.f32 0.0, %v3628
      %v3630 = vpop.f32.mrf.mxu0
      %v3631 = vadd.f32 0.0, %v3630
      %3632 = vdwg.mxu0
      %v3633 = vpack.c.bf16 %v3626, %v3624
      %v3634 = vpack.c.bf16 %v3631, %v3629
      %v3635 = vld [vmem:[%s10] sm:$0xff]
      %v3636 = vld [vmem:[%s10 + $0x8] sm:$0xff]
      %v3637 = vld [vmem:[%s10 + $0x10] sm:$0xff]
      %v3638 = vld [vmem:[%s10 + $0x18] sm:$0xff]
      %v3639 = vld [vmem:[%s10 + $0x20] sm:$0xff]
      %v3640 = vld [vmem:[%s10 + $0x28] sm:$0xff]
      %v3641 = vld [vmem:[%s10 + $0x30] sm:$0xff]
      %v3642 = vld [vmem:[%s10 + $0x38] sm:$0xff]
      %v3651 = vunpack.c.l.b16 %v3635
      %v3652 = vunpack.c.h.b16 %v3635
      %v3653 = vunpack.c.l.b16 %v3636
      %v3654 = vunpack.c.h.b16 %v3636
      %v3655 = vunpack.c.l.b16 %v3637
      %v3656 = vunpack.c.h.b16 %v3637
      %v3657 = vunpack.c.l.b16 %v3638
      %v3658 = vunpack.c.h.b16 %v3638
      %v3659 = vunpack.c.l.b16 %v3639
      %v3660 = vunpack.c.h.b16 %v3639
      %v3661 = vunpack.c.l.b16 %v3640
      %v3662 = vunpack.c.h.b16 %v3640
      %v3663 = vunpack.c.l.b16 %v3641
      %v3664 = vunpack.c.h.b16 %v3641
      %v3665 = vunpack.c.l.b16 %v3642
      %v3666 = vunpack.c.h.b16 %v3642
      %v3667 = vpack.c.b16 %v3653, %v3651
      %v3668 = vpack.c.b16 %v3654, %v3652
      %v3669 = vpack.c.b16 %v3657, %v3655
      %v3670 = vpack.c.b16 %v3658, %v3656
      %v3671 = vpack.c.b16 %v3661, %v3659
      %v3672 = vpack.c.b16 %v3662, %v3660
      %v3673 = vpack.c.b16 %v3665, %v3663
      %v3674 = vpack.c.b16 %v3666, %v3664
      %v3684 = vsel %vm1353, %v3633, 0
      %v3687 = vsel %vm1353, %v3634, 0
      %3689 = vmatpush.bf16.msra.mxu0 0
      %3690 = vmatpush.bf16.msra.mxu0 0
      %3691 = vmatpush.bf16.msra.mxu0 0
      %3692 = vmatpush.bf16.msra.mxu0 0
      %3693 = vmatpush.bf16.msra.mxu0 %v3673
      %3694 = vmatpush.bf16.msra.mxu0 %v3671
      %3695 = vmatpush.bf16.msra.mxu0 %v3669
      %3696 = vmatpush.bf16.msra.mxu0 %v3667
      %3697 = vmatmul.bf16.gmra.mxu0 %v3684
      %v3698 = vpop.f32.mrf.mxu0
      %v3699 = vadd.f32 0.0, %v3698
      %v3700 = vpop.f32.mrf.mxu0
      %v3701 = vadd.f32 0.0, %v3700
      %3702 = vmatmul.bf16.gmra.mxu0 %v3687
      %v3703 = vpop.f32.mrf.mxu0
      %v3704 = vadd.f32 0.0, %v3703
      %v3705 = vpop.f32.mrf.mxu0
      %v3706 = vadd.f32 0.0, %v3705
      %3707 = vdwg.mxu0
      %3708 = vmatpush.bf16.msra.mxu0 0
      %3709 = vmatpush.bf16.msra.mxu0 0
      %3710 = vmatpush.bf16.msra.mxu0 0
      %3711 = vmatpush.bf16.msra.mxu0 0
      %3712 = vmatpush.bf16.msra.mxu0 %v3674
      %3713 = vmatpush.bf16.msra.mxu0 %v3672
      %3714 = vmatpush.bf16.msra.mxu0 %v3670
      %3715 = vmatpush.bf16.msra.mxu0 %v3668
      %3716 = vmatmul.bf16.gmra.mxu0 %v3684
      %v3717 = vpop.f32.mrf.mxu0
      %v3718 = vadd.f32 0.0, %v3717
      %v3719 = vpop.f32.mrf.mxu0
      %v3720 = vadd.f32 0.0, %v3719
      %3721 = vmatmul.bf16.gmra.mxu0 %v3687
      %v3722 = vpop.f32.mrf.mxu0
      %v3723 = vadd.f32 0.0, %v3722
      %v3724 = vpop.f32.mrf.mxu0
      %v3725 = vadd.f32 0.0, %v3724
      %3726 = vdwg.mxu0
      %3727 = vrot.lane.b32.xlu0 %v3701, 1
      %v3728 = vpop.permute.xlu0 %3727
      %3729 = vrot.lane.b32.xlu0 %v3720, 1
      %v3730 = vpop.permute.xlu0 %3729
      %v3731 = vsel %vm516, %v3728, %v3730
      %v3732 = vsel %vm516, %v3730, %v3728
      %v3733 = vadd.f32 %v3699, %v3732
      %v3734 = vadd.f32 %v3718, %v3731
      %3735 = vrot.lane.b32.xlu0 %v3704, 16
      %v3736 = vpop.permute.xlu0 %3735
      %3737 = vrot.lane.b32.xlu0 %v3723, 16
      %v3738 = vpop.permute.xlu0 %3737
      %v3739 = vsel %vm468, %v3736, %v3738
      %v3740 = vsel %vm468, %v3738, %v3736
      %v3741 = vadd.f32 %v3733, %v3740
      %v3742 = vadd.f32 %v3734, %v3739
      %3743 = vrot.lane.b32.xlu0 %v3706, 17
      %v3744 = vpop.permute.xlu0 %3743
      %3745 = vrot.lane.b32.xlu0 %v3725, 17
      %v3746 = vpop.permute.xlu0 %3745
      %v3747 = vsel %vm453, %v3744, %v3746
      %v3748 = vsel %vm453, %v3746, %v3744
      %v3749 = vadd.f32 %v3741, %v3748
      %v3750 = vadd.f32 %v3742, %v3747
      %v3751 = vld [vmem:[%s12 + $0xb0] sm:$0xff]
      %3753 = vset.pattern.permute.xlu0 0
      %3754 = vperm.xlu0 %3753, %v3751
      %v3755 = vpop.permute.xlu0 %3754
      %v3757 = vadd.f32 %v3749, %v3755
      %v3758 = vadd.f32 %v3750, %v3755
      %v3759 = vmax.f32 %v3757, 0.0
      %v3760 = vmax.f32 %v3758, 0.0
      %3761 = vst [vmem:[%s442] sm:$0xff] %v3759
      %3762 = vst [vmem:[%s442 + $0x8] sm:$0xff] %v3760
      %s3763 = smul.u32 2, %s24
      %p3764 = scmp.lt.s32.totalorder %s3763, 3
      %s3765 = scalar_select %p3764, %s3763, 3
      %s3766 = smul.addr %s3765, 8
      %s3767 = scalar_lea.vmem %s13, %s3766
      // Predicated region
      $region73: #{_lambda_.1} parent=71 // pred_check
        %p3768 = pneg %p320
      $region74: #{_lambda_.1} parent=71 // pred_check_branch
        %3770 = sbr.rel (%p3768) target = $region76
      $region75: #{_lambda_.1} parent=71 // pred_region
        %s3771 = smul.u32 2, %s24
      $region76: #{_lambda_.1} parent=71 // pred_fallthru
        _
    $region72: #{_lambda_.1} parent=5 // pred_fallthru
      _
    %p3772 = scmp.le.s32.totalorder 2, %s19
    // Predicated region
    $region77: #{_lambda_.1} parent=5 // pred_check
      %p3773 = pneg %p3772
    $region78: #{_lambda_.1} parent=5 // pred_check_branch
      %3775 = sbr.rel (%p3773) target = $region80
    $region79: #{_lambda_.1} parent=5 // pred_region
      %s3776 = ssub.s32 %s19, 2
      // Predicated region
      $region81: #{_lambda_.1} parent=79 // pred_check
        %p3777 = pneg %p326
      $region82: #{_lambda_.1} parent=79 // pred_check_branch
        %3779 = sbr.rel (%p3777) target = $region84
      $region83: #{_lambda_.1} parent=79 // pred_region
        %s3780 = smul.u32 2, %s25
        %p3781 = scmp.lt.s32.totalorder %s3780, 3
        %s3782 = scalar_select %p3781, %s3780, 3
        %s3783 = smul.addr %s3782, 8
        %s3784 = scalar_lea.vmem %s13, %s3783
      $region84: #{_lambda_.1} parent=79 // pred_fallthru
        _
    $region80: #{_lambda_.1} parent=5 // pred_fallthru
      _
  $region6: #{_lambda_.1} parent=0 // loop_footer
    %s23 = sadd.s32 1, %s19
  $region7: #{_lambda_.1} parent=0 // loop_footer_branch
    %18 = sbr.rel target = $region3
  $region8: #{_lambda_.1} parent=0 // loop_exit
    _

</llo_original>
